<compile_context>
chip_gen: v7x
topology: tpu7x:2x2x1
jax: 0.10.0
libtpu: 0.0.40
codegen_flags: <defaults>
</compile_context>

<pallas_src>
import functools

import jax
import jax.numpy as jnp
from jax.experimental import pallas as pl
from jax.experimental.pallas import tpu as pltpu

EPS = 1e-5


# ----------------------------------------------------------------------------
# In-kernel helpers (traced inline; all configuration is static Python)
# ----------------------------------------------------------------------------
def _relu6(v):
    return jnp.minimum(jnp.maximum(v, 0.0), 6.0)


def _expand_1x1(w_ref, xv):
    """1x1 conv: Cin broadcast-FMAs (VPU) for shallow Cin, MXU otherwise.

    w_ref: (R, Cin) VMEM ref;  xv: (Cin, L) value  ->  (R, L) f32.
    """
    cin = xv.shape[0]
    if cin <= 8:
        h = w_ref[:, 0:1] * xv[0:1, :]
        for c in range(1, cin):
            h = h + w_ref[:, c:c + 1] * xv[c:c + 1, :]
        return h
    return jnp.dot(w_ref[...], xv, preferred_element_type=jnp.float32)


def _dw3x3_s1(ex, wd_ref, *, H, W):
    """Stride-1 3x3 depthwise conv on a flat (EC, N*H*W) activation.

    Each tap = lane-roll of `ex` (XLU) * per-channel weight * edge mask.
    Rolls wrap across row/image boundaries; the contaminated positions are
    exactly the ones zeroed by the row/column masks.
    """
    _, L = ex.shape
    HW = H * W
    pos = jax.lax.broadcasted_iota(jnp.int32, (1, L), 1)
    col = pos % W
    rc = pos % HW                                   # i*W + j within the image
    col_gt0 = (col > 0).astype(jnp.float32)
    col_ltw = (col < W - 1).astype(jnp.float32)
    row_gt0 = (rc >= W).astype(jnp.float32)
    row_lth = (rc < (H - 1) * W).astype(jnp.float32)
    rmask = {-1: row_gt0, 0: None, 1: row_lth}
    cmask = {-1: col_gt0, 0: None, 1: col_ltw}

    acc = None
    t = 0
    for di in (-1, 0, 1):
        for dj in (-1, 0, 1):
            d = di * W + dj                         # flat neighbour offset
            tap = ex if d == 0 else pltpu.roll(ex, shift=(-d) % L, axis=1)
            tap = tap * wd_ref[:, t:t + 1]
            rm, cm = rmask[di], cmask[dj]
            mask = rm if cm is None else (cm if rm is None else rm * cm)
            if mask is not None:
                tap = tap * mask
            acc = tap if acc is None else acc + tap
            t += 1
    return acc


def _dw3x3_s2(ex_poly, wd_ref, *, Ho, Wo, L):
    """Stride-2 3x3 depthwise computed directly at output resolution.

    `ex_poly` is (EC, 4*L) in polyphase-class-major order: lane block
    k = p*2+q holds the expanded activation at input pixels (2*io+p, 2*jo+q),
    flattened (n, io, jo) row-major, with L = N*Ho*Wo.  Each of the 9 taps is
    one polyphase class rolled by {0, 1, Wo, Wo+1} lanes plus an edge mask, so
    no selector matmul and no full-resolution depthwise is needed.
    Requires even H and W.
    """
    pos = jax.lax.broadcasted_iota(jnp.int32, (1, L), 1)
    col_gt0 = ((pos % Wo) > 0).astype(jnp.float32)
    row_gt0 = ((pos % (Ho * Wo)) >= Wo).astype(jnp.float32)

    acc = None
    t = 0
    for di in (-1, 0, 1):
        p = di % 2                                  # input-row parity of tap
        ri = (di - p) // 2                          # macro-row offset: -1 or 0
        for dj in (-1, 0, 1):
            q = dj % 2
            rj = (dj - q) // 2                      # macro-col offset: -1 or 0
            k = p * 2 + q
            src = ex_poly[:, k * L:(k + 1) * L]     # lane-aligned class slice
            d = ri * Wo + rj                        # in {-(Wo+1), -Wo, -1, 0}
            tap = src if d == 0 else pltpu.roll(src, shift=-d, axis=1)
            tap = tap * wd_ref[:, t:t + 1]
            mask = None
            if ri == -1:
                mask = row_gt0
            if rj == -1:
                mask = col_gt0 if mask is None else mask * col_gt0
            if mask is not None:
                tap = tap * mask
            acc = tap if acc is None else acc + tap
            t += 1
    return acc


def _ir_block(xv, w1_ref, wd_ref, w3_ref, b_ref, *, EC, Cout, N, H, W,
              stride, skip):
    """One inverted-residual block on a flat (Cin, N*H*W) activation.

    For stride == 2 the input must be in polyphase-class-major order (see
    _dw3x3_s2).  Output is always standard (n, i, j) row-major, shape
    (Cout, N*Ho*Wo).  skip in {'none', 'identity', 'proj'} (static).
    """
    # 1x1 expansion (+ fused un-normalized skip-projection rows), BN1 folded.
    h = _expand_1x1(w1_ref, xv)
    b1 = b_ref[0:EC, :]
    b2 = b_ref[EC:2 * EC, :]
    b3 = b_ref[2 * EC:2 * EC + Cout, :]
    ex = _relu6((h[0:EC, :] if skip == "proj" else h) + b1)

    # 3x3 depthwise (rolled taps + edge masks), BN2 folded.
    if stride == 1:
        dw = _dw3x3_s1(ex, wd_ref, H=H, W=W)
    else:
        Ho, Wo = H // 2, W // 2
        dw = _dw3x3_s2(ex, wd_ref, Ho=Ho, Wo=Wo, L=N * Ho * Wo)
    dw = _relu6(dw + b2)

    # 1x1 projection (MXU) + BN3 shift + skip.
    out = jnp.dot(w3_ref[...], dw, preferred_element_type=jnp.float32) + b3
    if skip == "identity":
        out = out + xv
    elif skip == "proj":
        out = out + h[EC:, :]
    return out


def _make_double_conv_kernel(*, N, H, W, stride, EC1, EC2, Cout, skip1):
    Ho = (H - 1) // stride + 1
    Wo = (W - 1) // stride + 1

    def kernel(x_ref, w1a_ref, wda_ref, w3a_ref, ba_ref,
               w1b_ref, wdb_ref, w3b_ref, bb_ref, o_ref):
        xv = x_ref[...].astype(jnp.float32)
        y1 = _ir_block(xv, w1a_ref, wda_ref, w3a_ref, ba_ref,
                       EC=EC1, Cout=Cout, N=N, H=H, W=W,
                       stride=stride, skip=skip1)
        y2 = _ir_block(y1, w1b_ref, wdb_ref, w3b_ref, bb_ref,
                       EC=EC2, Cout=Cout, N=N, H=Ho, W=Wo,
                       stride=1, skip="identity")
        o_ref[...] = y2.astype(o_ref.dtype)

    return kernel


# ----------------------------------------------------------------------------
# Wrapper: the whole DoubleConv == one pallas_call (no grid, single block)
# ----------------------------------------------------------------------------
def _fold_ir_params(p):
    """Fold BN scales into the conv weights; concatenate the three BN shifts."""
    w1f = p["w1"] * p["bn1_scale"][:, None]          # (EC, Cin)
    wdf = p["wd"] * p["bn2_scale"][:, None]          # (EC, 9)
    w3f = p["w3"] * p["bn3_scale"][:, None]          # (Cout, EC)
    b = jnp.concatenate(
        [p["bn1_shift"], p["bn2_shift"], p["bn3_shift"]])[:, None]
    return w1f, wdf, w3f, b


def double_conv(x, params, stride):
    """DoubleConv forward: one fused pallas_call, NCHW in / NCHW out."""
    N, Cin, H, W = x.shape
    if stride == 2 and (H % 2 or W % 2):
        raise NotImplementedError("stride-2 polyphase path requires even H, W")
    Ho = (H - 1) // stride + 1
    Wo = (W - 1) // stride + 1
    p1, p2 = params["ir1"], params["ir2"]
    EC1, EC2 = p1["w1"].shape[0], p2["w1"].shape[0]
    Cout = p1["w3"].shape[0]

    w1a, wda, w3a, ba = _fold_ir_params(p1)
    w1b, wdb, w3b, bb = _fold_ir_params(p2)

    if stride == 1:
        skip1 = "proj" if p1["w_skip"] is not None else "identity"
        if skip1 == "proj":
            # Un-normalized skip 1x1 merged into the expansion FMAs.
            w1a = jnp.concatenate([w1a, p1["w_skip"]], axis=0)
    else:
        skip1 = "none"

    # Wrapper-side layout plumbing only (tiny arrays): fold the batch into the
    # lane axis; for stride 2 present x in polyphase (even/odd row, col) order
    # so the strided depthwise needs no in-kernel subsample.
    if stride == 1:
        xk = x.transpose(1, 0, 2, 3).reshape(Cin, N * H * W)
    else:
        xk = (x.reshape(N, Cin, Ho, 2, Wo, 2)
                .transpose(1, 3, 5, 0, 2, 4)
                .reshape(Cin, N * H * W))

    kernel = _make_double_conv_kernel(N=N, H=H, W=W, stride=stride,
                                      EC1=EC1, EC2=EC2, Cout=Cout,
                                      skip1=skip1)
    vmem = pl.BlockSpec(memory_space=pltpu.MemorySpace.VMEM)
    out = pl.pallas_call(
        kernel,
        out_shape=jax.ShapeDtypeStruct((Cout, N * Ho * Wo), x.dtype),
        in_specs=[vmem] * 9,
        out_specs=vmem,
    )(xk, w1a, wda, w3a, ba, w1b, wdb, w3b, bb)
    return out.reshape(Cout, N, Ho, Wo).transpose(1, 0, 2, 3)


# ----------------------------------------------------------------------------
# Parameter construction (deterministic, synthetic; PyTorch (out, in) layout)
# ----------------------------------------------------------------------------
def _bn_fold(key, c):
    k1, k2, k3, k4 = jax.random.split(key, 4)
    gamma = 1.0 + 0.1 * jax.random.normal(k1, (c,))
    beta = 0.1 * jax.random.normal(k2, (c,))
    mean = 0.1 * jax.random.normal(k3, (c,))
    var = 0.5 + jnp.abs(jax.random.normal(k4, (c,))) * 0.1
    scale = gamma / jnp.sqrt(var + EPS)
    shift = beta - mean * scale
    return scale.astype(jnp.float32), shift.astype(jnp.float32)


def make_ir_params(key, in_c, out_c, stride, t):
    ex_c = int(in_c * t)
    ks = jax.random.split(key, 7)
    p = {}
    p["w1"] = (0.2 * jax.random.normal(ks[0], (ex_c, in_c))).astype(jnp.float32)
    p["bn1_scale"], p["bn1_shift"] = _bn_fold(ks[1], ex_c)
    p["wd"] = (0.2 * jax.random.normal(ks[2], (ex_c, 9))).astype(jnp.float32)
    p["bn2_scale"], p["bn2_shift"] = _bn_fold(ks[3], ex_c)
    p["w3"] = (0.2 * jax.random.normal(ks[4], (out_c, ex_c))).astype(jnp.float32)
    p["bn3_scale"], p["bn3_shift"] = _bn_fold(ks[5], out_c)
    if stride == 1 and in_c != out_c:
        p["w_skip"] = (0.2 * jax.random.normal(ks[6], (out_c, in_c))).astype(jnp.float32)
    else:
        p["w_skip"] = None
    return p


def make_double_conv_params(key, c_in, t, c_out, s):
    k1, k2 = jax.random.split(key)
    return {"ir1": make_ir_params(k1, c_in, c_out, s, t),
            "ir2": make_ir_params(k2, c_out, c_out, 1, t)}


# ----------------------------------------------------------------------------
# Pure-JAX reference (NCHW, for correctness check)
# ----------------------------------------------------------------------------
def _ref_ir(x, p, stride):
    def pw(w, a):
        return jnp.einsum("oc,nchw->nohw", w, a)

    sc1 = p["bn1_scale"][None, :, None, None]; sh1 = p["bn1_shift"][None, :, None, None]
    sc2 = p["bn2_scale"][None, :, None, None]; sh2 = p["bn2_shift"][None, :, None, None]
    sc3 = p["bn3_scale"][None, :, None, None]; sh3 = p["bn3_shift"][None, :, None, None]

    ex = jnp.clip(pw(p["w1"], x) * sc1 + sh1, 0.0, 6.0)
    N, C, H, W = ex.shape
    Ho = (H - 1) // stride + 1
    Wo = (W - 1) // stride + 1
    xp = jnp.pad(ex, ((0, 0), (0, 0), (1, 1), (1, 1)))
    wd = p["wd"].reshape(C, 3, 3)
    acc = jnp.zeros((N, C, Ho, Wo), jnp.float32)
    for ki in range(3):
        for kj in range(3):
            sl = xp[:, :, ki:ki + (Ho - 1) * stride + 1:stride,
                    kj:kj + (Wo - 1) * stride + 1:stride]
            acc = acc + sl * wd[:, ki, kj][None, :, None, None]
    dw = jnp.clip(acc * sc2 + sh2, 0.0, 6.0)
    out = pw(p["w3"], dw) * sc3 + sh3
    if stride == 1:
        res = pw(p["w_skip"], x) if p["w_skip"] is not None else x
        out = out + res
    return out


def ref_double_conv(x, params, stride):
    x = _ref_ir(x, params["ir1"], stride)
    x = _ref_ir(x, params["ir2"], 1)
    return x


# ----------------------------------------------------------------------------
if __name__ == "__main__":
    key = jax.random.PRNGKey(0)
    kx, kp1, kp2 = jax.random.split(key, 3)

    # DoubleConv(c_in=4, t=6, c_out=8, s=...) on a (2, 4, 16, 16) NCHW input.
    x = jax.random.normal(kx, (2, 4, 16, 16), dtype=jnp.float32)

    ok = True
    for s, kp in ((1, kp1), (2, kp2)):
        params = make_double_conv_params(kp, c_in=4, t=6, c_out=8, s=s)
        fwd = jax.jit(functools.partial(double_conv, stride=s))
        out = jax.block_until_ready(fwd(x, params))
        ref = jax.block_until_ready(ref_double_conv(x, params, s))
        if out.shape != ref.shape:
            ok = False
        elif not bool(jnp.allclose(out, ref, rtol=1e-3, atol=1e-3)):
            ok = False

    print("KERNEL_OK" if ok else "KERNEL_MISMATCH")
</pallas_src>

<mosaic_0001>
module attributes {stable_mosaic.version = 11 : i64} {
  func.func @kernel(%arg0: memref<4x512xf32, #tpu.memory_space<vmem>>, %arg1: memref<32x4xf32, #tpu.memory_space<vmem>>, %arg2: memref<24x9xf32, #tpu.memory_space<vmem>>, %arg3: memref<8x24xf32, #tpu.memory_space<vmem>>, %arg4: memref<56x1xf32, #tpu.memory_space<vmem>>, %arg5: memref<48x8xf32, #tpu.memory_space<vmem>>, %arg6: memref<48x9xf32, #tpu.memory_space<vmem>>, %arg7: memref<8x48xf32, #tpu.memory_space<vmem>>, %arg8: memref<104x1xf32, #tpu.memory_space<vmem>>, %arg9: memref<8x512xf32, #tpu.memory_space<vmem>>) attributes {dimension_semantics = [], scalar_prefetch = 0 : i64, scratch_operands = 0 : i64, tpu.core_type = #tpu.core_type<tc>} {
    %c0 = arith.constant 0 : index
    %c0_0 = arith.constant 0 : index
    %0 = vector.load %arg0[%c0, %c0_0] : memref<4x512xf32, #tpu.memory_space<vmem>>, vector<4x512xf32>
    %c0_1 = arith.constant 0 : index
    %c0_2 = arith.constant 0 : index
    %1 = vector.load %arg1[%c0_1, %c0_2] : memref<32x4xf32, #tpu.memory_space<vmem>>, vector<32x1xf32>
    %2 = vector.extract_strided_slice %0 {offsets = [0, 0], sizes = [1, 512], strides = [1, 1]} : vector<4x512xf32> to vector<1x512xf32>
    %3 = vector.broadcast %1 : vector<32x1xf32> to vector<32x512xf32>
    %4 = vector.broadcast %2 : vector<1x512xf32> to vector<32x512xf32>
    %5 = arith.mulf %3, %4 : vector<32x512xf32>
    %c0_3 = arith.constant 0 : index
    %c1 = arith.constant 1 : index
    %6 = vector.load %arg1[%c0_3, %c1] : memref<32x4xf32, #tpu.memory_space<vmem>>, vector<32x1xf32>
    %7 = vector.extract_strided_slice %0 {offsets = [1, 0], sizes = [1, 512], strides = [1, 1]} : vector<4x512xf32> to vector<1x512xf32>
    %8 = vector.broadcast %6 : vector<32x1xf32> to vector<32x512xf32>
    %9 = vector.broadcast %7 : vector<1x512xf32> to vector<32x512xf32>
    %10 = arith.mulf %8, %9 : vector<32x512xf32>
    %11 = arith.addf %5, %10 : vector<32x512xf32>
    %c0_4 = arith.constant 0 : index
    %c2 = arith.constant 2 : index
    %12 = vector.load %arg1[%c0_4, %c2] : memref<32x4xf32, #tpu.memory_space<vmem>>, vector<32x1xf32>
    %13 = vector.extract_strided_slice %0 {offsets = [2, 0], sizes = [1, 512], strides = [1, 1]} : vector<4x512xf32> to vector<1x512xf32>
    %14 = vector.broadcast %12 : vector<32x1xf32> to vector<32x512xf32>
    %15 = vector.broadcast %13 : vector<1x512xf32> to vector<32x512xf32>
    %16 = arith.mulf %14, %15 : vector<32x512xf32>
    %17 = arith.addf %11, %16 : vector<32x512xf32>
    %c0_5 = arith.constant 0 : index
    %c3 = arith.constant 3 : index
    %18 = vector.load %arg1[%c0_5, %c3] : memref<32x4xf32, #tpu.memory_space<vmem>>, vector<32x1xf32>
    %19 = vector.extract_strided_slice %0 {offsets = [3, 0], sizes = [1, 512], strides = [1, 1]} : vector<4x512xf32> to vector<1x512xf32>
    %20 = vector.broadcast %18 : vector<32x1xf32> to vector<32x512xf32>
    %21 = vector.broadcast %19 : vector<1x512xf32> to vector<32x512xf32>
    %22 = arith.mulf %20, %21 : vector<32x512xf32>
    %23 = arith.addf %17, %22 : vector<32x512xf32>
    %c0_6 = arith.constant 0 : index
    %c0_7 = arith.constant 0 : index
    %24 = vector.load %arg4[%c0_6, %c0_7] : memref<56x1xf32, #tpu.memory_space<vmem>>, vector<24x1xf32>
    %c24 = arith.constant 24 : index
    %c0_8 = arith.constant 0 : index
    %25 = vector.load %arg4[%c24, %c0_8] : memref<56x1xf32, #tpu.memory_space<vmem>>, vector<24x1xf32>
    %c48 = arith.constant 48 : index
    %c0_9 = arith.constant 0 : index
    %26 = vector.load %arg4[%c48, %c0_9] : memref<56x1xf32, #tpu.memory_space<vmem>>, vector<8x1xf32>
    %27 = vector.extract_strided_slice %23 {offsets = [0, 0], sizes = [24, 512], strides = [1, 1]} : vector<32x512xf32> to vector<24x512xf32>
    %28 = vector.broadcast %24 : vector<24x1xf32> to vector<24x512xf32>
    %29 = arith.addf %27, %28 : vector<24x512xf32>
    %cst = arith.constant 0.000000e+00 : f32
    %30 = vector.broadcast %cst : f32 to vector<24x512xf32>
    %31 = arith.maximumf %29, %30 : vector<24x512xf32>
    %cst_10 = arith.constant 6.000000e+00 : f32
    %32 = vector.broadcast %cst_10 : f32 to vector<24x512xf32>
    %33 = arith.minimumf %31, %32 : vector<24x512xf32>
    %34 = tpu.iota {dimensions = array<i32: 1>} : vector<1x512xi32>
    %c16_i32 = arith.constant 16 : i32
    %c0_i32 = arith.constant 0 : i32
    %35 = arith.cmpi eq, %c16_i32, %c0_i32 : i32
    %c1_i32 = arith.constant 1 : i32
    %36 = arith.select %35, %c1_i32, %c16_i32 : i32
    %37 = vector.broadcast %36 : i32 to vector<1x512xi32>
    %38 = arith.remsi %34, %37 : vector<1x512xi32>
    %c0_i32_11 = arith.constant 0 : i32
    %39 = vector.broadcast %c0_i32_11 : i32 to vector<1x512xi32>
    %40 = arith.cmpi ne, %38, %39 : vector<1x512xi32>
    %c0_i32_12 = arith.constant 0 : i32
    %41 = vector.broadcast %c0_i32_12 : i32 to vector<1x512xi32>
    %42 = arith.cmpi slt, %38, %41 : vector<1x512xi32>
    %c0_i32_13 = arith.constant 0 : i32
    %43 = arith.cmpi slt, %36, %c0_i32_13 : i32
    %44 = vector.broadcast %43 : i1 to vector<1x512xi1>
    %45 = vector.broadcast %44 : vector<1x512xi1> to vector<1x512xi1>
    %46 = arith.xori %42, %45 : vector<1x512xi1>
    %47 = arith.andi %46, %40 : vector<1x512xi1>
    %48 = vector.broadcast %36 : i32 to vector<1x512xi32>
    %49 = arith.addi %38, %48 : vector<1x512xi32>
    %50 = arith.select %47, %49, %38 : vector<1x512xi1>, vector<1x512xi32>
    %c256_i32 = arith.constant 256 : i32
    %c0_i32_14 = arith.constant 0 : i32
    %51 = arith.cmpi eq, %c256_i32, %c0_i32_14 : i32
    %c1_i32_15 = arith.constant 1 : i32
    %52 = arith.select %51, %c1_i32_15, %c256_i32 : i32
    %53 = vector.broadcast %52 : i32 to vector<1x512xi32>
    %54 = arith.remsi %34, %53 : vector<1x512xi32>
    %c0_i32_16 = arith.constant 0 : i32
    %55 = vector.broadcast %c0_i32_16 : i32 to vector<1x512xi32>
    %56 = arith.cmpi ne, %54, %55 : vector<1x512xi32>
    %c0_i32_17 = arith.constant 0 : i32
    %57 = vector.broadcast %c0_i32_17 : i32 to vector<1x512xi32>
    %58 = arith.cmpi slt, %54, %57 : vector<1x512xi32>
    %c0_i32_18 = arith.constant 0 : i32
    %59 = arith.cmpi slt, %52, %c0_i32_18 : i32
    %60 = vector.broadcast %59 : i1 to vector<1x512xi1>
    %61 = vector.broadcast %60 : vector<1x512xi1> to vector<1x512xi1>
    %62 = arith.xori %58, %61 : vector<1x512xi1>
    %63 = arith.andi %62, %56 : vector<1x512xi1>
    %64 = vector.broadcast %52 : i32 to vector<1x512xi32>
    %65 = arith.addi %54, %64 : vector<1x512xi32>
    %66 = arith.select %63, %65, %54 : vector<1x512xi1>, vector<1x512xi32>
    %c0_i32_19 = arith.constant 0 : i32
    %67 = vector.broadcast %c0_i32_19 : i32 to vector<1x512xi32>
    %68 = arith.cmpi sgt, %50, %67 : vector<1x512xi32>
    %69 = arith.extui %68 : vector<1x512xi1> to vector<1x512xi32>
    %70 = arith.sitofp %69 : vector<1x512xi32> to vector<1x512xf32>
    %c15_i32 = arith.constant 15 : i32
    %71 = vector.broadcast %c15_i32 : i32 to vector<1x512xi32>
    %72 = arith.cmpi slt, %50, %71 : vector<1x512xi32>
    %73 = arith.extui %72 : vector<1x512xi1> to vector<1x512xi32>
    %74 = arith.sitofp %73 : vector<1x512xi32> to vector<1x512xf32>
    %c16_i32_20 = arith.constant 16 : i32
    %75 = vector.broadcast %c16_i32_20 : i32 to vector<1x512xi32>
    %76 = arith.cmpi sge, %66, %75 : vector<1x512xi32>
    %77 = arith.extui %76 : vector<1x512xi1> to vector<1x512xi32>
    %78 = arith.sitofp %77 : vector<1x512xi32> to vector<1x512xf32>
    %c240_i32 = arith.constant 240 : i32
    %79 = vector.broadcast %c240_i32 : i32 to vector<1x512xi32>
    %80 = arith.cmpi slt, %66, %79 : vector<1x512xi32>
    %81 = arith.extui %80 : vector<1x512xi1> to vector<1x512xi32>
    %82 = arith.sitofp %81 : vector<1x512xi32> to vector<1x512xf32>
    %c17_i32 = arith.constant 17 : i32
    %83 = tpu.dynamic_rotate %33 by %c17_i32 dim 1 : vector<24x512xf32>, i32 -> vector<24x512xf32>
    %c0_21 = arith.constant 0 : index
    %c0_22 = arith.constant 0 : index
    %84 = vector.load %arg2[%c0_21, %c0_22] : memref<24x9xf32, #tpu.memory_space<vmem>>, vector<24x1xf32>
    %85 = vector.broadcast %84 : vector<24x1xf32> to vector<24x512xf32>
    %86 = arith.mulf %83, %85 : vector<24x512xf32>
    %87 = arith.mulf %78, %70 : vector<1x512xf32>
    %88 = vector.broadcast %87 : vector<1x512xf32> to vector<24x512xf32>
    %89 = arith.mulf %86, %88 : vector<24x512xf32>
    %c16_i32_23 = arith.constant 16 : i32
    %90 = tpu.dynamic_rotate %33 by %c16_i32_23 dim 1 : vector<24x512xf32>, i32 -> vector<24x512xf32>
    %c0_24 = arith.constant 0 : index
    %c1_25 = arith.constant 1 : index
    %91 = vector.load %arg2[%c0_24, %c1_25] : memref<24x9xf32, #tpu.memory_space<vmem>>, vector<24x1xf32>
    %92 = vector.broadcast %91 : vector<24x1xf32> to vector<24x512xf32>
    %93 = arith.mulf %90, %92 : vector<24x512xf32>
    %94 = vector.broadcast %78 : vector<1x512xf32> to vector<24x512xf32>
    %95 = arith.mulf %93, %94 : vector<24x512xf32>
    %96 = arith.addf %89, %95 : vector<24x512xf32>
    %c15_i32_26 = arith.constant 15 : i32
    %97 = tpu.dynamic_rotate %33 by %c15_i32_26 dim 1 : vector<24x512xf32>, i32 -> vector<24x512xf32>
    %c0_27 = arith.constant 0 : index
    %c2_28 = arith.constant 2 : index
    %98 = vector.load %arg2[%c0_27, %c2_28] : memref<24x9xf32, #tpu.memory_space<vmem>>, vector<24x1xf32>
    %99 = vector.broadcast %98 : vector<24x1xf32> to vector<24x512xf32>
    %100 = arith.mulf %97, %99 : vector<24x512xf32>
    %101 = arith.mulf %78, %74 : vector<1x512xf32>
    %102 = vector.broadcast %101 : vector<1x512xf32> to vector<24x512xf32>
    %103 = arith.mulf %100, %102 : vector<24x512xf32>
    %104 = arith.addf %96, %103 : vector<24x512xf32>
    %c1_i32_29 = arith.constant 1 : i32
    %105 = tpu.dynamic_rotate %33 by %c1_i32_29 dim 1 : vector<24x512xf32>, i32 -> vector<24x512xf32>
    %c0_30 = arith.constant 0 : index
    %c3_31 = arith.constant 3 : index
    %106 = vector.load %arg2[%c0_30, %c3_31] : memref<24x9xf32, #tpu.memory_space<vmem>>, vector<24x1xf32>
    %107 = vector.broadcast %106 : vector<24x1xf32> to vector<24x512xf32>
    %108 = arith.mulf %105, %107 : vector<24x512xf32>
    %109 = vector.broadcast %70 : vector<1x512xf32> to vector<24x512xf32>
    %110 = arith.mulf %108, %109 : vector<24x512xf32>
    %111 = arith.addf %104, %110 : vector<24x512xf32>
    %c0_32 = arith.constant 0 : index
    %c4 = arith.constant 4 : index
    %112 = vector.load %arg2[%c0_32, %c4] : memref<24x9xf32, #tpu.memory_space<vmem>>, vector<24x1xf32>
    %113 = vector.broadcast %112 : vector<24x1xf32> to vector<24x512xf32>
    %114 = arith.mulf %33, %113 : vector<24x512xf32>
    %115 = arith.addf %111, %114 : vector<24x512xf32>
    %c511_i32 = arith.constant 511 : i32
    %116 = tpu.dynamic_rotate %33 by %c511_i32 dim 1 : vector<24x512xf32>, i32 -> vector<24x512xf32>
    %c0_33 = arith.constant 0 : index
    %c5 = arith.constant 5 : index
    %117 = vector.load %arg2[%c0_33, %c5] : memref<24x9xf32, #tpu.memory_space<vmem>>, vector<24x1xf32>
    %118 = vector.broadcast %117 : vector<24x1xf32> to vector<24x512xf32>
    %119 = arith.mulf %116, %118 : vector<24x512xf32>
    %120 = vector.broadcast %74 : vector<1x512xf32> to vector<24x512xf32>
    %121 = arith.mulf %119, %120 : vector<24x512xf32>
    %122 = arith.addf %115, %121 : vector<24x512xf32>
    %c497_i32 = arith.constant 497 : i32
    %123 = tpu.dynamic_rotate %33 by %c497_i32 dim 1 : vector<24x512xf32>, i32 -> vector<24x512xf32>
    %c0_34 = arith.constant 0 : index
    %c6 = arith.constant 6 : index
    %124 = vector.load %arg2[%c0_34, %c6] : memref<24x9xf32, #tpu.memory_space<vmem>>, vector<24x1xf32>
    %125 = vector.broadcast %124 : vector<24x1xf32> to vector<24x512xf32>
    %126 = arith.mulf %123, %125 : vector<24x512xf32>
    %127 = arith.mulf %82, %70 : vector<1x512xf32>
    %128 = vector.broadcast %127 : vector<1x512xf32> to vector<24x512xf32>
    %129 = arith.mulf %126, %128 : vector<24x512xf32>
    %130 = arith.addf %122, %129 : vector<24x512xf32>
    %c496_i32 = arith.constant 496 : i32
    %131 = tpu.dynamic_rotate %33 by %c496_i32 dim 1 : vector<24x512xf32>, i32 -> vector<24x512xf32>
    %c0_35 = arith.constant 0 : index
    %c7 = arith.constant 7 : index
    %132 = vector.load %arg2[%c0_35, %c7] : memref<24x9xf32, #tpu.memory_space<vmem>>, vector<24x1xf32>
    %133 = vector.broadcast %132 : vector<24x1xf32> to vector<24x512xf32>
    %134 = arith.mulf %131, %133 : vector<24x512xf32>
    %135 = vector.broadcast %82 : vector<1x512xf32> to vector<24x512xf32>
    %136 = arith.mulf %134, %135 : vector<24x512xf32>
    %137 = arith.addf %130, %136 : vector<24x512xf32>
    %c495_i32 = arith.constant 495 : i32
    %138 = tpu.dynamic_rotate %33 by %c495_i32 dim 1 : vector<24x512xf32>, i32 -> vector<24x512xf32>
    %c0_36 = arith.constant 0 : index
    %c8 = arith.constant 8 : index
    %139 = vector.load %arg2[%c0_36, %c8] : memref<24x9xf32, #tpu.memory_space<vmem>>, vector<24x1xf32>
    %140 = vector.broadcast %139 : vector<24x1xf32> to vector<24x512xf32>
    %141 = arith.mulf %138, %140 : vector<24x512xf32>
    %142 = arith.mulf %82, %74 : vector<1x512xf32>
    %143 = vector.broadcast %142 : vector<1x512xf32> to vector<24x512xf32>
    %144 = arith.mulf %141, %143 : vector<24x512xf32>
    %145 = arith.addf %137, %144 : vector<24x512xf32>
    %146 = vector.broadcast %25 : vector<24x1xf32> to vector<24x512xf32>
    %147 = arith.addf %145, %146 : vector<24x512xf32>
    %cst_37 = arith.constant 0.000000e+00 : f32
    %148 = vector.broadcast %cst_37 : f32 to vector<24x512xf32>
    %149 = arith.maximumf %147, %148 : vector<24x512xf32>
    %cst_38 = arith.constant 6.000000e+00 : f32
    %150 = vector.broadcast %cst_38 : f32 to vector<24x512xf32>
    %151 = arith.minimumf %149, %150 : vector<24x512xf32>
    %c0_39 = arith.constant 0 : index
    %c0_40 = arith.constant 0 : index
    %152 = vector.load %arg3[%c0_39, %c0_40] : memref<8x24xf32, #tpu.memory_space<vmem>>, vector<8x24xf32>
    %cst_41 = arith.constant dense<0.000000e+00> : vector<8x512xf32>
    %153 = tpu.matmul %152, %151, %cst_41 {dimension_numbers = #tpu.dot_dimension_numbers<[1], [0], [0], [1], [0, 0, 1, 1], [], []>} : vector<8x24xf32>, vector<24x512xf32>, vector<8x512xf32> -> vector<8x512xf32>
    %154 = vector.broadcast %26 : vector<8x1xf32> to vector<8x512xf32>
    %155 = arith.addf %153, %154 : vector<8x512xf32>
    %156 = vector.extract_strided_slice %23 {offsets = [24, 0], sizes = [8, 512], strides = [1, 1]} : vector<32x512xf32> to vector<8x512xf32>
    %157 = arith.addf %155, %156 : vector<8x512xf32>
    %c0_42 = arith.constant 0 : index
    %c0_43 = arith.constant 0 : index
    %158 = vector.load %arg5[%c0_42, %c0_43] : memref<48x8xf32, #tpu.memory_space<vmem>>, vector<48x1xf32>
    %159 = vector.extract_strided_slice %157 {offsets = [0, 0], sizes = [1, 512], strides = [1, 1]} : vector<8x512xf32> to vector<1x512xf32>
    %160 = vector.broadcast %158 : vector<48x1xf32> to vector<48x512xf32>
    %161 = vector.broadcast %159 : vector<1x512xf32> to vector<48x512xf32>
    %162 = arith.mulf %160, %161 : vector<48x512xf32>
    %c0_44 = arith.constant 0 : index
    %c1_45 = arith.constant 1 : index
    %163 = vector.load %arg5[%c0_44, %c1_45] : memref<48x8xf32, #tpu.memory_space<vmem>>, vector<48x1xf32>
    %164 = vector.extract_strided_slice %157 {offsets = [1, 0], sizes = [1, 512], strides = [1, 1]} : vector<8x512xf32> to vector<1x512xf32>
    %165 = vector.broadcast %163 : vector<48x1xf32> to vector<48x512xf32>
    %166 = vector.broadcast %164 : vector<1x512xf32> to vector<48x512xf32>
    %167 = arith.mulf %165, %166 : vector<48x512xf32>
    %168 = arith.addf %162, %167 : vector<48x512xf32>
    %c0_46 = arith.constant 0 : index
    %c2_47 = arith.constant 2 : index
    %169 = vector.load %arg5[%c0_46, %c2_47] : memref<48x8xf32, #tpu.memory_space<vmem>>, vector<48x1xf32>
    %170 = vector.extract_strided_slice %157 {offsets = [2, 0], sizes = [1, 512], strides = [1, 1]} : vector<8x512xf32> to vector<1x512xf32>
    %171 = vector.broadcast %169 : vector<48x1xf32> to vector<48x512xf32>
    %172 = vector.broadcast %170 : vector<1x512xf32> to vector<48x512xf32>
    %173 = arith.mulf %171, %172 : vector<48x512xf32>
    %174 = arith.addf %168, %173 : vector<48x512xf32>
    %c0_48 = arith.constant 0 : index
    %c3_49 = arith.constant 3 : index
    %175 = vector.load %arg5[%c0_48, %c3_49] : memref<48x8xf32, #tpu.memory_space<vmem>>, vector<48x1xf32>
    %176 = vector.extract_strided_slice %157 {offsets = [3, 0], sizes = [1, 512], strides = [1, 1]} : vector<8x512xf32> to vector<1x512xf32>
    %177 = vector.broadcast %175 : vector<48x1xf32> to vector<48x512xf32>
    %178 = vector.broadcast %176 : vector<1x512xf32> to vector<48x512xf32>
    %179 = arith.mulf %177, %178 : vector<48x512xf32>
    %180 = arith.addf %174, %179 : vector<48x512xf32>
    %c0_50 = arith.constant 0 : index
    %c4_51 = arith.constant 4 : index
    %181 = vector.load %arg5[%c0_50, %c4_51] : memref<48x8xf32, #tpu.memory_space<vmem>>, vector<48x1xf32>
    %182 = vector.extract_strided_slice %157 {offsets = [4, 0], sizes = [1, 512], strides = [1, 1]} : vector<8x512xf32> to vector<1x512xf32>
    %183 = vector.broadcast %181 : vector<48x1xf32> to vector<48x512xf32>
    %184 = vector.broadcast %182 : vector<1x512xf32> to vector<48x512xf32>
    %185 = arith.mulf %183, %184 : vector<48x512xf32>
    %186 = arith.addf %180, %185 : vector<48x512xf32>
    %c0_52 = arith.constant 0 : index
    %c5_53 = arith.constant 5 : index
    %187 = vector.load %arg5[%c0_52, %c5_53] : memref<48x8xf32, #tpu.memory_space<vmem>>, vector<48x1xf32>
    %188 = vector.extract_strided_slice %157 {offsets = [5, 0], sizes = [1, 512], strides = [1, 1]} : vector<8x512xf32> to vector<1x512xf32>
    %189 = vector.broadcast %187 : vector<48x1xf32> to vector<48x512xf32>
    %190 = vector.broadcast %188 : vector<1x512xf32> to vector<48x512xf32>
    %191 = arith.mulf %189, %190 : vector<48x512xf32>
    %192 = arith.addf %186, %191 : vector<48x512xf32>
    %c0_54 = arith.constant 0 : index
    %c6_55 = arith.constant 6 : index
    %193 = vector.load %arg5[%c0_54, %c6_55] : memref<48x8xf32, #tpu.memory_space<vmem>>, vector<48x1xf32>
    %194 = vector.extract_strided_slice %157 {offsets = [6, 0], sizes = [1, 512], strides = [1, 1]} : vector<8x512xf32> to vector<1x512xf32>
    %195 = vector.broadcast %193 : vector<48x1xf32> to vector<48x512xf32>
    %196 = vector.broadcast %194 : vector<1x512xf32> to vector<48x512xf32>
    %197 = arith.mulf %195, %196 : vector<48x512xf32>
    %198 = arith.addf %192, %197 : vector<48x512xf32>
    %c0_56 = arith.constant 0 : index
    %c7_57 = arith.constant 7 : index
    %199 = vector.load %arg5[%c0_56, %c7_57] : memref<48x8xf32, #tpu.memory_space<vmem>>, vector<48x1xf32>
    %200 = vector.extract_strided_slice %157 {offsets = [7, 0], sizes = [1, 512], strides = [1, 1]} : vector<8x512xf32> to vector<1x512xf32>
    %201 = vector.broadcast %199 : vector<48x1xf32> to vector<48x512xf32>
    %202 = vector.broadcast %200 : vector<1x512xf32> to vector<48x512xf32>
    %203 = arith.mulf %201, %202 : vector<48x512xf32>
    %204 = arith.addf %198, %203 : vector<48x512xf32>
    %c0_58 = arith.constant 0 : index
    %c0_59 = arith.constant 0 : index
    %205 = vector.load %arg8[%c0_58, %c0_59] : memref<104x1xf32, #tpu.memory_space<vmem>>, vector<48x1xf32>
    %c48_60 = arith.constant 48 : index
    %c0_61 = arith.constant 0 : index
    %206 = vector.load %arg8[%c48_60, %c0_61] : memref<104x1xf32, #tpu.memory_space<vmem>>, vector<48x1xf32>
    %c96 = arith.constant 96 : index
    %c0_62 = arith.constant 0 : index
    %207 = vector.load %arg8[%c96, %c0_62] : memref<104x1xf32, #tpu.memory_space<vmem>>, vector<8x1xf32>
    %208 = vector.broadcast %205 : vector<48x1xf32> to vector<48x512xf32>
    %209 = arith.addf %204, %208 : vector<48x512xf32>
    %cst_63 = arith.constant 0.000000e+00 : f32
    %210 = vector.broadcast %cst_63 : f32 to vector<48x512xf32>
    %211 = arith.maximumf %209, %210 : vector<48x512xf32>
    %cst_64 = arith.constant 6.000000e+00 : f32
    %212 = vector.broadcast %cst_64 : f32 to vector<48x512xf32>
    %213 = arith.minimumf %211, %212 : vector<48x512xf32>
    %214 = tpu.iota {dimensions = array<i32: 1>} : vector<1x512xi32>
    %c16_i32_65 = arith.constant 16 : i32
    %c0_i32_66 = arith.constant 0 : i32
    %215 = arith.cmpi eq, %c16_i32_65, %c0_i32_66 : i32
    %c1_i32_67 = arith.constant 1 : i32
    %216 = arith.select %215, %c1_i32_67, %c16_i32_65 : i32
    %217 = vector.broadcast %216 : i32 to vector<1x512xi32>
    %218 = arith.remsi %214, %217 : vector<1x512xi32>
    %c0_i32_68 = arith.constant 0 : i32
    %219 = vector.broadcast %c0_i32_68 : i32 to vector<1x512xi32>
    %220 = arith.cmpi ne, %218, %219 : vector<1x512xi32>
    %c0_i32_69 = arith.constant 0 : i32
    %221 = vector.broadcast %c0_i32_69 : i32 to vector<1x512xi32>
    %222 = arith.cmpi slt, %218, %221 : vector<1x512xi32>
    %c0_i32_70 = arith.constant 0 : i32
    %223 = arith.cmpi slt, %216, %c0_i32_70 : i32
    %224 = vector.broadcast %223 : i1 to vector<1x512xi1>
    %225 = vector.broadcast %224 : vector<1x512xi1> to vector<1x512xi1>
    %226 = arith.xori %222, %225 : vector<1x512xi1>
    %227 = arith.andi %226, %220 : vector<1x512xi1>
    %228 = vector.broadcast %216 : i32 to vector<1x512xi32>
    %229 = arith.addi %218, %228 : vector<1x512xi32>
    %230 = arith.select %227, %229, %218 : vector<1x512xi1>, vector<1x512xi32>
    %c256_i32_71 = arith.constant 256 : i32
    %c0_i32_72 = arith.constant 0 : i32
    %231 = arith.cmpi eq, %c256_i32_71, %c0_i32_72 : i32
    %c1_i32_73 = arith.constant 1 : i32
    %232 = arith.select %231, %c1_i32_73, %c256_i32_71 : i32
    %233 = vector.broadcast %232 : i32 to vector<1x512xi32>
    %234 = arith.remsi %214, %233 : vector<1x512xi32>
    %c0_i32_74 = arith.constant 0 : i32
    %235 = vector.broadcast %c0_i32_74 : i32 to vector<1x512xi32>
    %236 = arith.cmpi ne, %234, %235 : vector<1x512xi32>
    %c0_i32_75 = arith.constant 0 : i32
    %237 = vector.broadcast %c0_i32_75 : i32 to vector<1x512xi32>
    %238 = arith.cmpi slt, %234, %237 : vector<1x512xi32>
    %c0_i32_76 = arith.constant 0 : i32
    %239 = arith.cmpi slt, %232, %c0_i32_76 : i32
    %240 = vector.broadcast %239 : i1 to vector<1x512xi1>
    %241 = vector.broadcast %240 : vector<1x512xi1> to vector<1x512xi1>
    %242 = arith.xori %238, %241 : vector<1x512xi1>
    %243 = arith.andi %242, %236 : vector<1x512xi1>
    %244 = vector.broadcast %232 : i32 to vector<1x512xi32>
    %245 = arith.addi %234, %244 : vector<1x512xi32>
    %246 = arith.select %243, %245, %234 : vector<1x512xi1>, vector<1x512xi32>
    %c0_i32_77 = arith.constant 0 : i32
    %247 = vector.broadcast %c0_i32_77 : i32 to vector<1x512xi32>
    %248 = arith.cmpi sgt, %230, %247 : vector<1x512xi32>
    %249 = arith.extui %248 : vector<1x512xi1> to vector<1x512xi32>
    %250 = arith.sitofp %249 : vector<1x512xi32> to vector<1x512xf32>
    %c15_i32_78 = arith.constant 15 : i32
    %251 = vector.broadcast %c15_i32_78 : i32 to vector<1x512xi32>
    %252 = arith.cmpi slt, %230, %251 : vector<1x512xi32>
    %253 = arith.extui %252 : vector<1x512xi1> to vector<1x512xi32>
    %254 = arith.sitofp %253 : vector<1x512xi32> to vector<1x512xf32>
    %c16_i32_79 = arith.constant 16 : i32
    %255 = vector.broadcast %c16_i32_79 : i32 to vector<1x512xi32>
    %256 = arith.cmpi sge, %246, %255 : vector<1x512xi32>
    %257 = arith.extui %256 : vector<1x512xi1> to vector<1x512xi32>
    %258 = arith.sitofp %257 : vector<1x512xi32> to vector<1x512xf32>
    %c240_i32_80 = arith.constant 240 : i32
    %259 = vector.broadcast %c240_i32_80 : i32 to vector<1x512xi32>
    %260 = arith.cmpi slt, %246, %259 : vector<1x512xi32>
    %261 = arith.extui %260 : vector<1x512xi1> to vector<1x512xi32>
    %262 = arith.sitofp %261 : vector<1x512xi32> to vector<1x512xf32>
    %c17_i32_81 = arith.constant 17 : i32
    %263 = tpu.dynamic_rotate %213 by %c17_i32_81 dim 1 : vector<48x512xf32>, i32 -> vector<48x512xf32>
    %c0_82 = arith.constant 0 : index
    %c0_83 = arith.constant 0 : index
    %264 = vector.load %arg6[%c0_82, %c0_83] : memref<48x9xf32, #tpu.memory_space<vmem>>, vector<48x1xf32>
    %265 = vector.broadcast %264 : vector<48x1xf32> to vector<48x512xf32>
    %266 = arith.mulf %263, %265 : vector<48x512xf32>
    %267 = arith.mulf %258, %250 : vector<1x512xf32>
    %268 = vector.broadcast %267 : vector<1x512xf32> to vector<48x512xf32>
    %269 = arith.mulf %266, %268 : vector<48x512xf32>
    %c16_i32_84 = arith.constant 16 : i32
    %270 = tpu.dynamic_rotate %213 by %c16_i32_84 dim 1 : vector<48x512xf32>, i32 -> vector<48x512xf32>
    %c0_85 = arith.constant 0 : index
    %c1_86 = arith.constant 1 : index
    %271 = vector.load %arg6[%c0_85, %c1_86] : memref<48x9xf32, #tpu.memory_space<vmem>>, vector<48x1xf32>
    %272 = vector.broadcast %271 : vector<48x1xf32> to vector<48x512xf32>
    %273 = arith.mulf %270, %272 : vector<48x512xf32>
    %274 = vector.broadcast %258 : vector<1x512xf32> to vector<48x512xf32>
    %275 = arith.mulf %273, %274 : vector<48x512xf32>
    %276 = arith.addf %269, %275 : vector<48x512xf32>
    %c15_i32_87 = arith.constant 15 : i32
    %277 = tpu.dynamic_rotate %213 by %c15_i32_87 dim 1 : vector<48x512xf32>, i32 -> vector<48x512xf32>
    %c0_88 = arith.constant 0 : index
    %c2_89 = arith.constant 2 : index
    %278 = vector.load %arg6[%c0_88, %c2_89] : memref<48x9xf32, #tpu.memory_space<vmem>>, vector<48x1xf32>
    %279 = vector.broadcast %278 : vector<48x1xf32> to vector<48x512xf32>
    %280 = arith.mulf %277, %279 : vector<48x512xf32>
    %281 = arith.mulf %258, %254 : vector<1x512xf32>
    %282 = vector.broadcast %281 : vector<1x512xf32> to vector<48x512xf32>
    %283 = arith.mulf %280, %282 : vector<48x512xf32>
    %284 = arith.addf %276, %283 : vector<48x512xf32>
    %c1_i32_90 = arith.constant 1 : i32
    %285 = tpu.dynamic_rotate %213 by %c1_i32_90 dim 1 : vector<48x512xf32>, i32 -> vector<48x512xf32>
    %c0_91 = arith.constant 0 : index
    %c3_92 = arith.constant 3 : index
    %286 = vector.load %arg6[%c0_91, %c3_92] : memref<48x9xf32, #tpu.memory_space<vmem>>, vector<48x1xf32>
    %287 = vector.broadcast %286 : vector<48x1xf32> to vector<48x512xf32>
    %288 = arith.mulf %285, %287 : vector<48x512xf32>
    %289 = vector.broadcast %250 : vector<1x512xf32> to vector<48x512xf32>
    %290 = arith.mulf %288, %289 : vector<48x512xf32>
    %291 = arith.addf %284, %290 : vector<48x512xf32>
    %c0_93 = arith.constant 0 : index
    %c4_94 = arith.constant 4 : index
    %292 = vector.load %arg6[%c0_93, %c4_94] : memref<48x9xf32, #tpu.memory_space<vmem>>, vector<48x1xf32>
    %293 = vector.broadcast %292 : vector<48x1xf32> to vector<48x512xf32>
    %294 = arith.mulf %213, %293 : vector<48x512xf32>
    %295 = arith.addf %291, %294 : vector<48x512xf32>
    %c511_i32_95 = arith.constant 511 : i32
    %296 = tpu.dynamic_rotate %213 by %c511_i32_95 dim 1 : vector<48x512xf32>, i32 -> vector<48x512xf32>
    %c0_96 = arith.constant 0 : index
    %c5_97 = arith.constant 5 : index
    %297 = vector.load %arg6[%c0_96, %c5_97] : memref<48x9xf32, #tpu.memory_space<vmem>>, vector<48x1xf32>
    %298 = vector.broadcast %297 : vector<48x1xf32> to vector<48x512xf32>
    %299 = arith.mulf %296, %298 : vector<48x512xf32>
    %300 = vector.broadcast %254 : vector<1x512xf32> to vector<48x512xf32>
    %301 = arith.mulf %299, %300 : vector<48x512xf32>
    %302 = arith.addf %295, %301 : vector<48x512xf32>
    %c497_i32_98 = arith.constant 497 : i32
    %303 = tpu.dynamic_rotate %213 by %c497_i32_98 dim 1 : vector<48x512xf32>, i32 -> vector<48x512xf32>
    %c0_99 = arith.constant 0 : index
    %c6_100 = arith.constant 6 : index
    %304 = vector.load %arg6[%c0_99, %c6_100] : memref<48x9xf32, #tpu.memory_space<vmem>>, vector<48x1xf32>
    %305 = vector.broadcast %304 : vector<48x1xf32> to vector<48x512xf32>
    %306 = arith.mulf %303, %305 : vector<48x512xf32>
    %307 = arith.mulf %262, %250 : vector<1x512xf32>
    %308 = vector.broadcast %307 : vector<1x512xf32> to vector<48x512xf32>
    %309 = arith.mulf %306, %308 : vector<48x512xf32>
    %310 = arith.addf %302, %309 : vector<48x512xf32>
    %c496_i32_101 = arith.constant 496 : i32
    %311 = tpu.dynamic_rotate %213 by %c496_i32_101 dim 1 : vector<48x512xf32>, i32 -> vector<48x512xf32>
    %c0_102 = arith.constant 0 : index
    %c7_103 = arith.constant 7 : index
    %312 = vector.load %arg6[%c0_102, %c7_103] : memref<48x9xf32, #tpu.memory_space<vmem>>, vector<48x1xf32>
    %313 = vector.broadcast %312 : vector<48x1xf32> to vector<48x512xf32>
    %314 = arith.mulf %311, %313 : vector<48x512xf32>
    %315 = vector.broadcast %262 : vector<1x512xf32> to vector<48x512xf32>
    %316 = arith.mulf %314, %315 : vector<48x512xf32>
    %317 = arith.addf %310, %316 : vector<48x512xf32>
    %c495_i32_104 = arith.constant 495 : i32
    %318 = tpu.dynamic_rotate %213 by %c495_i32_104 dim 1 : vector<48x512xf32>, i32 -> vector<48x512xf32>
    %c0_105 = arith.constant 0 : index
    %c8_106 = arith.constant 8 : index
    %319 = vector.load %arg6[%c0_105, %c8_106] : memref<48x9xf32, #tpu.memory_space<vmem>>, vector<48x1xf32>
    %320 = vector.broadcast %319 : vector<48x1xf32> to vector<48x512xf32>
    %321 = arith.mulf %318, %320 : vector<48x512xf32>
    %322 = arith.mulf %262, %254 : vector<1x512xf32>
    %323 = vector.broadcast %322 : vector<1x512xf32> to vector<48x512xf32>
    %324 = arith.mulf %321, %323 : vector<48x512xf32>
    %325 = arith.addf %317, %324 : vector<48x512xf32>
    %326 = vector.broadcast %206 : vector<48x1xf32> to vector<48x512xf32>
    %327 = arith.addf %325, %326 : vector<48x512xf32>
    %cst_107 = arith.constant 0.000000e+00 : f32
    %328 = vector.broadcast %cst_107 : f32 to vector<48x512xf32>
    %329 = arith.maximumf %327, %328 : vector<48x512xf32>
    %cst_108 = arith.constant 6.000000e+00 : f32
    %330 = vector.broadcast %cst_108 : f32 to vector<48x512xf32>
    %331 = arith.minimumf %329, %330 : vector<48x512xf32>
    %c0_109 = arith.constant 0 : index
    %c0_110 = arith.constant 0 : index
    %332 = vector.load %arg7[%c0_109, %c0_110] : memref<8x48xf32, #tpu.memory_space<vmem>>, vector<8x48xf32>
    %cst_111 = arith.constant dense<0.000000e+00> : vector<8x512xf32>
    %333 = tpu.matmul %332, %331, %cst_111 {dimension_numbers = #tpu.dot_dimension_numbers<[1], [0], [0], [1], [0, 0, 1, 1], [], []>} : vector<8x48xf32>, vector<48x512xf32>, vector<8x512xf32> -> vector<8x512xf32>
    %334 = vector.broadcast %207 : vector<8x1xf32> to vector<8x512xf32>
    %335 = arith.addf %333, %334 : vector<8x512xf32>
    %336 = arith.addf %335, %157 : vector<8x512xf32>
    %c0_112 = arith.constant 0 : index
    %c0_113 = arith.constant 0 : index
    %337 = vector.load %arg9[%c0_112, %c0_113] : memref<8x512xf32, #tpu.memory_space<vmem>>, vector<8x512xf32>
    tpu.vector_store %arg9[%c0_112, %c0_113], %336 {strides = array<i32>} : memref<8x512xf32, #tpu.memory_space<vmem>>, vector<8x512xf32>,
    return
  }
}

</mosaic_0001>

<llo_original>
// kernel: double_conv.1
$region0: #{double_conv.1}
  #allocation0 [shape = 'u32[]', space=smem, size = 0x4, offset = 0x4, fixed_abs, tag = 'smem constant byte address 0x4 - core index']
  #allocation1 [shape = 'u32[144,128]{1,0:T(1,128)}', space=vmem, size = 0x12000, scoped, tag = 'internal scratch']
  %s0 = inlined_call_operand.vmem [shape: f32[4,512], index: 0, kind: input, shape index: {}]
  %s1 = inlined_call_operand.vmem [shape: f32[32,4], index: 1, kind: input, shape index: {}]
  %s2 = inlined_call_operand.vmem [shape: f32[24,9], index: 2, kind: input, shape index: {}]
  %s3 = inlined_call_operand.vmem [shape: f32[8,24], index: 3, kind: input, shape index: {}]
  %s4 = inlined_call_operand.vmem [shape: f32[56,1], index: 4, kind: input, shape index: {}]
  %s5 = inlined_call_operand.vmem [shape: f32[48,8], index: 5, kind: input, shape index: {}]
  %s6 = inlined_call_operand.vmem [shape: f32[48,9], index: 6, kind: input, shape index: {}]
  %s7 = inlined_call_operand.vmem [shape: f32[8,48], index: 7, kind: input, shape index: {}]
  %s8 = inlined_call_operand.vmem [shape: f32[104,1], index: 8, kind: input, shape index: {}]
  %s9 = inlined_call_operand.vmem [shape: f32[8,512], index: 9, kind: output, shape index: {}]
  %s10 = sld [smem:[#allocation0]]
  $region46: #{double_conv.1} parent=0
    _
  %s12 = ssub.s32 1, %s10
  %s13 = scalar_select 0, %s12, %s10
  // Predicated region
  $region2: #{double_conv.1} parent=0 // pred_check
    _
  $region3: #{double_conv.1} parent=0 // pred_check_branch
    %15 = sbr.rel (0) target = $region5
  $region4: #{double_conv.1} parent=0 // pred_region
    _
  $region5: #{double_conv.1} parent=0 // pred_fallthru
    _
  // Predicated region
  $region6: #{double_conv.1} parent=0 // pred_check
    _
  $region7: #{double_conv.1} parent=0 // pred_check_branch
    %17 = sbr.rel (0) target = $region9
  $region8: #{double_conv.1} parent=0 // pred_region
    _
  $region9: #{double_conv.1} parent=0 // pred_fallthru
    _
  // Predicated region
  $region10: #{double_conv.1} parent=0 // pred_check
    _
  $region11: #{double_conv.1} parent=0 // pred_check_branch
    %19 = sbr.rel (0) target = $region13
  $region12: #{double_conv.1} parent=0 // pred_region
    _
  $region13: #{double_conv.1} parent=0 // pred_fallthru
    _
  // Predicated region
  $region14: #{double_conv.1} parent=0 // pred_check
    _
  $region15: #{double_conv.1} parent=0 // pred_check_branch
    %21 = sbr.rel (0) target = $region17
  $region16: #{double_conv.1} parent=0 // pred_region
    _
  $region17: #{double_conv.1} parent=0 // pred_fallthru
    _
  // Predicated region
  $region18: #{double_conv.1} parent=0 // pred_check
    _
  $region19: #{double_conv.1} parent=0 // pred_check_branch
    %23 = sbr.rel (0) target = $region21
  $region20: #{double_conv.1} parent=0 // pred_region
    _
  $region21: #{double_conv.1} parent=0 // pred_fallthru
    _
  // Predicated region
  $region22: #{double_conv.1} parent=0 // pred_check
    _
  $region23: #{double_conv.1} parent=0 // pred_check_branch
    %25 = sbr.rel (0) target = $region25
  $region24: #{double_conv.1} parent=0 // pred_region
    _
  $region25: #{double_conv.1} parent=0 // pred_fallthru
    _
  // Predicated region
  $region26: #{double_conv.1} parent=0 // pred_check
    _
  $region27: #{double_conv.1} parent=0 // pred_check_branch
    %27 = sbr.rel (0) target = $region29
  $region28: #{double_conv.1} parent=0 // pred_region
    _
  $region29: #{double_conv.1} parent=0 // pred_fallthru
    _
  // Predicated region
  $region30: #{double_conv.1} parent=0 // pred_check
    _
  $region31: #{double_conv.1} parent=0 // pred_check_branch
    %29 = sbr.rel (0) target = $region33
  $region32: #{double_conv.1} parent=0 // pred_region
    _
  $region33: #{double_conv.1} parent=0 // pred_fallthru
    _
  // Predicated region
  $region34: #{double_conv.1} parent=0 // pred_check
    _
  $region35: #{double_conv.1} parent=0 // pred_check_branch
    %31 = sbr.rel (0) target = $region37
  $region36: #{double_conv.1} parent=0 // pred_region
    _
  $region37: #{double_conv.1} parent=0 // pred_fallthru
    _
  %v32 = vld [vmem:[%s0] sm:$0xff]
  %v33 = vld [vmem:[%s0 + $0x8] sm:$0xff]
  %v34 = vld [vmem:[%s1] sm:$0xff]
  %v35 = vld [vmem:[%s1 + $0x8] sm:$0xff]
  %v36 = vld [vmem:[%s1 + $0x10] sm:$0xff]
  %v37 = vld [vmem:[%s1 + $0x18] sm:$0xff]
  %39 = vset.pattern.permute.xlu0 0
  %40 = vperm.xlu0 %39, %v34
  %v41 = vpop.permute.xlu0 %40
  %44 = vset.pattern.permute.xlu0 0
  %45 = vperm.xlu0 %44, %v35
  %v46 = vpop.permute.xlu0 %45
  %49 = vset.pattern.permute.xlu0 0
  %50 = vperm.xlu0 %49, %v36
  %v51 = vpop.permute.xlu0 %50
  %54 = vset.pattern.permute.xlu0 0
  %55 = vperm.xlu0 %54, %v37
  %v56 = vpop.permute.xlu0 %55
  %v60 = vlaneseq
  %v61 = vshrl.u32 %v60, 7
  %v62 = vsub.s32 0, %v61
  %v63 = vrot.slane %v32, %v62
  %v64 = vlaneseq
  %v65 = vshrl.u32 %v64, 7
  %v66 = vsub.s32 4, %v65
  %v67 = vrot.slane %v32, %v66
  %v68 = vlaneseq
  %v69 = vshrl.u32 %v68, 7
  %v70 = vsub.s32 0, %v69
  %v71 = vrot.slane %v33, %v70
  %v72 = vlaneseq
  %v73 = vshrl.u32 %v72, 7
  %v74 = vsub.s32 4, %v73
  %v75 = vrot.slane %v33, %v74
  %v80 = vlaneseq
  %v81 = vshrl.u32 %v80, 7
  %v82 = vsub.s32 0, %v81
  %v83 = vrot.slane %v63, %v82
  %v84 = vlaneseq
  %v85 = vshrl.u32 %v84, 7
  %v86 = vsub.s32 0, %v85
  %v87 = vrot.slane %v67, %v86
  %v88 = vlaneseq
  %v89 = vshrl.u32 %v88, 7
  %v90 = vsub.s32 0, %v89
  %v91 = vrot.slane %v71, %v90
  %v92 = vlaneseq
  %v93 = vshrl.u32 %v92, 7
  %v94 = vsub.s32 0, %v93
  %v95 = vrot.slane %v75, %v94
  %v96 = vmul.f32 %v41, %v83
  %v97 = vmul.f32 %v41, %v87
  %v98 = vmul.f32 %v41, %v91
  %v99 = vmul.f32 %v41, %v95
  %v100 = vmul.f32 %v46, %v83
  %v101 = vmul.f32 %v46, %v87
  %v102 = vmul.f32 %v46, %v91
  %v103 = vmul.f32 %v46, %v95
  %v104 = vmul.f32 %v51, %v83
  %v105 = vmul.f32 %v51, %v87
  %v106 = vmul.f32 %v51, %v91
  %v107 = vmul.f32 %v51, %v95
  %v108 = vmul.f32 %v56, %v83
  %v109 = vmul.f32 %v56, %v87
  %v110 = vmul.f32 %v56, %v91
  %v111 = vmul.f32 %v56, %v95
  %112 = vset.pattern.permute.xlu0 1
  %113 = vperm.xlu0 %112, %v34
  %v114 = vpop.permute.xlu0 %113
  %116 = vset.pattern.permute.xlu0 1
  %117 = vperm.xlu0 %116, %v35
  %v118 = vpop.permute.xlu0 %117
  %120 = vset.pattern.permute.xlu0 1
  %121 = vperm.xlu0 %120, %v36
  %v122 = vpop.permute.xlu0 %121
  %124 = vset.pattern.permute.xlu0 1
  %125 = vperm.xlu0 %124, %v37
  %v126 = vpop.permute.xlu0 %125
  %v128 = vlaneseq
  %v129 = vshrl.u32 %v128, 7
  %v130 = vsub.s32 1, %v129
  %v131 = vrot.slane %v32, %v130
  %v132 = vlaneseq
  %v133 = vshrl.u32 %v132, 7
  %v134 = vsub.s32 5, %v133
  %v135 = vrot.slane %v32, %v134
  %v136 = vlaneseq
  %v137 = vshrl.u32 %v136, 7
  %v138 = vsub.s32 1, %v137
  %v139 = vrot.slane %v33, %v138
  %v140 = vlaneseq
  %v141 = vshrl.u32 %v140, 7
  %v142 = vsub.s32 5, %v141
  %v143 = vrot.slane %v33, %v142
  %v148 = vlaneseq
  %v149 = vshrl.u32 %v148, 7
  %v150 = vsub.s32 1, %v149
  %v151 = vrot.slane %v131, %v150
  %v152 = vlaneseq
  %v153 = vshrl.u32 %v152, 7
  %v154 = vsub.s32 1, %v153
  %v155 = vrot.slane %v135, %v154
  %v156 = vlaneseq
  %v157 = vshrl.u32 %v156, 7
  %v158 = vsub.s32 1, %v157
  %v159 = vrot.slane %v139, %v158
  %v160 = vlaneseq
  %v161 = vshrl.u32 %v160, 7
  %v162 = vsub.s32 1, %v161
  %v163 = vrot.slane %v143, %v162
  %v164 = vmul.f32 %v114, %v151
  %v165 = vmul.f32 %v114, %v155
  %v166 = vmul.f32 %v114, %v159
  %v167 = vmul.f32 %v114, %v163
  %v168 = vmul.f32 %v118, %v151
  %v169 = vmul.f32 %v118, %v155
  %v170 = vmul.f32 %v118, %v159
  %v171 = vmul.f32 %v118, %v163
  %v172 = vmul.f32 %v122, %v151
  %v173 = vmul.f32 %v122, %v155
  %v174 = vmul.f32 %v122, %v159
  %v175 = vmul.f32 %v122, %v163
  %v176 = vmul.f32 %v126, %v151
  %v177 = vmul.f32 %v126, %v155
  %v178 = vmul.f32 %v126, %v159
  %v179 = vmul.f32 %v126, %v163
  %v180 = vadd.f32 %v96, %v164
  %v181 = vadd.f32 %v97, %v165
  %v182 = vadd.f32 %v98, %v166
  %v183 = vadd.f32 %v99, %v167
  %v184 = vadd.f32 %v100, %v168
  %v185 = vadd.f32 %v101, %v169
  %v186 = vadd.f32 %v102, %v170
  %v187 = vadd.f32 %v103, %v171
  %v188 = vadd.f32 %v104, %v172
  %v189 = vadd.f32 %v105, %v173
  %v190 = vadd.f32 %v106, %v174
  %v191 = vadd.f32 %v107, %v175
  %v192 = vadd.f32 %v108, %v176
  %v193 = vadd.f32 %v109, %v177
  %v194 = vadd.f32 %v110, %v178
  %v195 = vadd.f32 %v111, %v179
  %196 = vset.pattern.permute.xlu0 2
  %197 = vperm.xlu0 %196, %v34
  %v198 = vpop.permute.xlu0 %197
  %200 = vset.pattern.permute.xlu0 2
  %201 = vperm.xlu0 %200, %v35
  %v202 = vpop.permute.xlu0 %201
  %204 = vset.pattern.permute.xlu0 2
  %205 = vperm.xlu0 %204, %v36
  %v206 = vpop.permute.xlu0 %205
  %208 = vset.pattern.permute.xlu0 2
  %209 = vperm.xlu0 %208, %v37
  %v210 = vpop.permute.xlu0 %209
  %v212 = vlaneseq
  %v213 = vshrl.u32 %v212, 7
  %v214 = vsub.s32 2, %v213
  %v215 = vrot.slane %v32, %v214
  %v216 = vlaneseq
  %v217 = vshrl.u32 %v216, 7
  %v218 = vsub.s32 6, %v217
  %v219 = vrot.slane %v32, %v218
  %v220 = vlaneseq
  %v221 = vshrl.u32 %v220, 7
  %v222 = vsub.s32 2, %v221
  %v223 = vrot.slane %v33, %v222
  %v224 = vlaneseq
  %v225 = vshrl.u32 %v224, 7
  %v226 = vsub.s32 6, %v225
  %v227 = vrot.slane %v33, %v226
  %v232 = vlaneseq
  %v233 = vshrl.u32 %v232, 7
  %v234 = vsub.s32 2, %v233
  %v235 = vrot.slane %v215, %v234
  %v236 = vlaneseq
  %v237 = vshrl.u32 %v236, 7
  %v238 = vsub.s32 2, %v237
  %v239 = vrot.slane %v219, %v238
  %v240 = vlaneseq
  %v241 = vshrl.u32 %v240, 7
  %v242 = vsub.s32 2, %v241
  %v243 = vrot.slane %v223, %v242
  %v244 = vlaneseq
  %v245 = vshrl.u32 %v244, 7
  %v246 = vsub.s32 2, %v245
  %v247 = vrot.slane %v227, %v246
  %v248 = vmul.f32 %v198, %v235
  %v249 = vmul.f32 %v198, %v239
  %v250 = vmul.f32 %v198, %v243
  %v251 = vmul.f32 %v198, %v247
  %v252 = vmul.f32 %v202, %v235
  %v253 = vmul.f32 %v202, %v239
  %v254 = vmul.f32 %v202, %v243
  %v255 = vmul.f32 %v202, %v247
  %v256 = vmul.f32 %v206, %v235
  %v257 = vmul.f32 %v206, %v239
  %v258 = vmul.f32 %v206, %v243
  %v259 = vmul.f32 %v206, %v247
  %v260 = vmul.f32 %v210, %v235
  %v261 = vmul.f32 %v210, %v239
  %v262 = vmul.f32 %v210, %v243
  %v263 = vmul.f32 %v210, %v247
  %v264 = vadd.f32 %v180, %v248
  %v265 = vadd.f32 %v181, %v249
  %v266 = vadd.f32 %v182, %v250
  %v267 = vadd.f32 %v183, %v251
  %v268 = vadd.f32 %v184, %v252
  %v269 = vadd.f32 %v185, %v253
  %v270 = vadd.f32 %v186, %v254
  %v271 = vadd.f32 %v187, %v255
  %v272 = vadd.f32 %v188, %v256
  %v273 = vadd.f32 %v189, %v257
  %v274 = vadd.f32 %v190, %v258
  %v275 = vadd.f32 %v191, %v259
  %v276 = vadd.f32 %v192, %v260
  %v277 = vadd.f32 %v193, %v261
  %v278 = vadd.f32 %v194, %v262
  %v279 = vadd.f32 %v195, %v263
  %280 = vset.pattern.permute.xlu0 3
  %281 = vperm.xlu0 %280, %v34
  %v282 = vpop.permute.xlu0 %281
  %284 = vset.pattern.permute.xlu0 3
  %285 = vperm.xlu0 %284, %v35
  %v286 = vpop.permute.xlu0 %285
  %288 = vset.pattern.permute.xlu0 3
  %289 = vperm.xlu0 %288, %v36
  %v290 = vpop.permute.xlu0 %289
  %292 = vset.pattern.permute.xlu0 3
  %293 = vperm.xlu0 %292, %v37
  %v294 = vpop.permute.xlu0 %293
  %v296 = vlaneseq
  %v297 = vshrl.u32 %v296, 7
  %v298 = vsub.s32 3, %v297
  %v299 = vrot.slane %v32, %v298
  %v300 = vlaneseq
  %v301 = vshrl.u32 %v300, 7
  %v302 = vsub.s32 7, %v301
  %v303 = vrot.slane %v32, %v302
  %v304 = vlaneseq
  %v305 = vshrl.u32 %v304, 7
  %v306 = vsub.s32 3, %v305
  %v307 = vrot.slane %v33, %v306
  %v308 = vlaneseq
  %v309 = vshrl.u32 %v308, 7
  %v310 = vsub.s32 7, %v309
  %v311 = vrot.slane %v33, %v310
  %v316 = vlaneseq
  %v317 = vshrl.u32 %v316, 7
  %v318 = vsub.s32 3, %v317
  %v319 = vrot.slane %v299, %v318
  %v320 = vlaneseq
  %v321 = vshrl.u32 %v320, 7
  %v322 = vsub.s32 3, %v321
  %v323 = vrot.slane %v303, %v322
  %v324 = vlaneseq
  %v325 = vshrl.u32 %v324, 7
  %v326 = vsub.s32 3, %v325
  %v327 = vrot.slane %v307, %v326
  %v328 = vlaneseq
  %v329 = vshrl.u32 %v328, 7
  %v330 = vsub.s32 3, %v329
  %v331 = vrot.slane %v311, %v330
  %v332 = vmul.f32 %v282, %v319
  %v333 = vmul.f32 %v282, %v323
  %v334 = vmul.f32 %v282, %v327
  %v335 = vmul.f32 %v282, %v331
  %v336 = vmul.f32 %v286, %v319
  %v337 = vmul.f32 %v286, %v323
  %v338 = vmul.f32 %v286, %v327
  %v339 = vmul.f32 %v286, %v331
  %v340 = vmul.f32 %v290, %v319
  %v341 = vmul.f32 %v290, %v323
  %v342 = vmul.f32 %v290, %v327
  %v343 = vmul.f32 %v290, %v331
  %v344 = vmul.f32 %v294, %v319
  %v345 = vmul.f32 %v294, %v323
  %v346 = vmul.f32 %v294, %v327
  %v347 = vmul.f32 %v294, %v331
  %v348 = vadd.f32 %v264, %v332
  %v349 = vadd.f32 %v265, %v333
  %v350 = vadd.f32 %v266, %v334
  %v351 = vadd.f32 %v267, %v335
  %v352 = vadd.f32 %v268, %v336
  %v353 = vadd.f32 %v269, %v337
  %v354 = vadd.f32 %v270, %v338
  %v355 = vadd.f32 %v271, %v339
  %v356 = vadd.f32 %v272, %v340
  %v357 = vadd.f32 %v273, %v341
  %v358 = vadd.f32 %v274, %v342
  %v359 = vadd.f32 %v275, %v343
  %v360 = vadd.f32 %v276, %v344
  %v361 = vadd.f32 %v277, %v345
  %v362 = vadd.f32 %v278, %v346
  %v363 = vadd.f32 %v279, %v347
  %v364 = vld [vmem:[%s4] sm:$0xff]
  %v365 = vld [vmem:[%s4 + $0x8] sm:$0xff]
  %v366 = vld [vmem:[%s4 + $0x10] sm:$0xff]
  %v367 = vld [vmem:[%s4 + $0x18] sm:$0xff]
  %v368 = vld [vmem:[%s4 + $0x20] sm:$0xff]
  %v369 = vld [vmem:[%s4 + $0x28] sm:$0xff]
  %v370 = vld [vmem:[%s4 + $0x30] sm:$0xff]
  %372 = vset.pattern.permute.xlu0 0
  %373 = vperm.xlu0 %372, %v364
  %v374 = vpop.permute.xlu0 %373
  %377 = vset.pattern.permute.xlu0 0
  %378 = vperm.xlu0 %377, %v365
  %v379 = vpop.permute.xlu0 %378
  %382 = vset.pattern.permute.xlu0 0
  %383 = vperm.xlu0 %382, %v366
  %v384 = vpop.permute.xlu0 %383
  %v386 = vadd.f32 %v348, %v374
  %v387 = vadd.f32 %v349, %v374
  %v388 = vadd.f32 %v350, %v374
  %v389 = vadd.f32 %v351, %v374
  %v390 = vadd.f32 %v352, %v379
  %v391 = vadd.f32 %v353, %v379
  %v392 = vadd.f32 %v354, %v379
  %v393 = vadd.f32 %v355, %v379
  %v394 = vadd.f32 %v356, %v384
  %v395 = vadd.f32 %v357, %v384
  %v396 = vadd.f32 %v358, %v384
  %v397 = vadd.f32 %v359, %v384
  %v398 = vmax.f32 %v386, 0.0
  %v399 = vmax.f32 %v387, 0.0
  %v400 = vmax.f32 %v388, 0.0
  %v401 = vmax.f32 %v389, 0.0
  %v402 = vmax.f32 %v390, 0.0
  %v403 = vmax.f32 %v391, 0.0
  %v404 = vmax.f32 %v392, 0.0
  %v405 = vmax.f32 %v393, 0.0
  %v406 = vmax.f32 %v394, 0.0
  %v407 = vmax.f32 %v395, 0.0
  %v408 = vmax.f32 %v396, 0.0
  %v409 = vmax.f32 %v397, 0.0
  %v410 = vmin.f32 %v398, 6.0
  %v411 = vmin.f32 %v399, 6.0
  %v412 = vmin.f32 %v400, 6.0
  %v413 = vmin.f32 %v401, 6.0
  %v414 = vmin.f32 %v402, 6.0
  %v415 = vmin.f32 %v403, 6.0
  %v416 = vmin.f32 %v404, 6.0
  %v417 = vmin.f32 %v405, 6.0
  %v418 = vmin.f32 %v406, 6.0
  %v419 = vmin.f32 %v407, 6.0
  %v420 = vmin.f32 %v408, 6.0
  %v421 = vmin.f32 %v409, 6.0
  %v422 = vlaneseq
  %v423 = vand.u32 %v422, 127
  %v424 = vadd.s32 %v423, 128
  %v425 = vadd.s32 %v423, 256
  %v426 = vadd.s32 %v423, 384
  %vm427 = vcmp.lt.s32.totalorder %v423, 0
  %v428 = vsub.s32 0, %v423
  %v429 = vsel %vm427, %v428, %v423
  %v430 = vshrl.u32 %v429, 4
  %v431 = vand.u32 %v429, 15
  %v432 = vsub.s32 0, %v431
  %v433 = vsel %vm427, %v432, %v431
  %vm434 = vcmp.lt.s32.totalorder %v424, 0
  %v435 = vsub.s32 0, %v424
  %v436 = vsel %vm434, %v435, %v424
  %v437 = vshrl.u32 %v436, 4
  %v438 = vand.u32 %v436, 15
  %v439 = vsub.s32 0, %v438
  %v440 = vsel %vm434, %v439, %v438
  %vm441 = vcmp.lt.s32.totalorder %v425, 0
  %v442 = vsub.s32 0, %v425
  %v443 = vsel %vm441, %v442, %v425
  %v444 = vshrl.u32 %v443, 4
  %v445 = vand.u32 %v443, 15
  %v446 = vsub.s32 0, %v445
  %v447 = vsel %vm441, %v446, %v445
  %vm448 = vcmp.lt.s32.totalorder %v426, 0
  %v449 = vsub.s32 0, %v426
  %v450 = vsel %vm448, %v449, %v426
  %v451 = vshrl.u32 %v450, 4
  %v452 = vand.u32 %v450, 15
  %v453 = vsub.s32 0, %v452
  %v454 = vsel %vm448, %v453, %v452
  %vm455 = vcmp.ne.s32.totalorder %v433, 0
  %vm456 = vcmp.ne.s32.totalorder %v440, 0
  %vm457 = vcmp.ne.s32.totalorder %v447, 0
  %vm458 = vcmp.ne.s32.totalorder %v454, 0
  %vm459 = vcmp.lt.s32.totalorder %v433, 0
  %vm460 = vcmp.lt.s32.totalorder %v440, 0
  %vm461 = vcmp.lt.s32.totalorder %v447, 0
  %vm462 = vcmp.lt.s32.totalorder %v454, 0
  %vm463 = vmand %vm459, %vm455
  %vm464 = vmand %vm460, %vm456
  %vm465 = vmand %vm461, %vm457
  %vm466 = vmand %vm462, %vm458
  %v467 = vadd.s32 %v433, 16
  %v468 = vadd.s32 %v440, 16
  %v469 = vadd.s32 %v447, 16
  %v470 = vadd.s32 %v454, 16
  %v471 = vsel %vm463, %v467, %v433
  %v472 = vsel %vm464, %v468, %v440
  %v473 = vsel %vm465, %v469, %v447
  %v474 = vsel %vm466, %v470, %v454
  %vm475 = vcmp.lt.s32.totalorder %v423, 0
  %v476 = vsub.s32 0, %v423
  %v477 = vsel %vm475, %v476, %v423
  %v478 = vshrl.u32 %v477, 8
  %v479 = vand.u32 %v477, 255
  %v480 = vsub.s32 0, %v479
  %v481 = vsel %vm475, %v480, %v479
  %vm482 = vcmp.lt.s32.totalorder %v424, 0
  %v483 = vsub.s32 0, %v424
  %v484 = vsel %vm482, %v483, %v424
  %v485 = vshrl.u32 %v484, 8
  %v486 = vand.u32 %v484, 255
  %v487 = vsub.s32 0, %v486
  %v488 = vsel %vm482, %v487, %v486
  %vm489 = vcmp.lt.s32.totalorder %v425, 0
  %v490 = vsub.s32 0, %v425
  %v491 = vsel %vm489, %v490, %v425
  %v492 = vshrl.u32 %v491, 8
  %v493 = vand.u32 %v491, 255
  %v494 = vsub.s32 0, %v493
  %v495 = vsel %vm489, %v494, %v493
  %vm496 = vcmp.lt.s32.totalorder %v426, 0
  %v497 = vsub.s32 0, %v426
  %v498 = vsel %vm496, %v497, %v426
  %v499 = vshrl.u32 %v498, 8
  %v500 = vand.u32 %v498, 255
  %v501 = vsub.s32 0, %v500
  %v502 = vsel %vm496, %v501, %v500
  %vm503 = vcmp.ne.s32.totalorder %v481, 0
  %vm504 = vcmp.ne.s32.totalorder %v488, 0
  %vm505 = vcmp.ne.s32.totalorder %v495, 0
  %vm506 = vcmp.ne.s32.totalorder %v502, 0
  %vm507 = vcmp.lt.s32.totalorder %v481, 0
  %vm508 = vcmp.lt.s32.totalorder %v488, 0
  %vm509 = vcmp.lt.s32.totalorder %v495, 0
  %vm510 = vcmp.lt.s32.totalorder %v502, 0
  %vm511 = vmand %vm507, %vm503
  %vm512 = vmand %vm508, %vm504
  %vm513 = vmand %vm509, %vm505
  %vm514 = vmand %vm510, %vm506
  %v515 = vadd.s32 %v481, 256
  %v516 = vadd.s32 %v488, 256
  %v517 = vadd.s32 %v495, 256
  %v518 = vadd.s32 %v502, 256
  %v519 = vsel %vm511, %v515, %v481
  %v520 = vsel %vm512, %v516, %v488
  %v521 = vsel %vm513, %v517, %v495
  %v522 = vsel %vm514, %v518, %v502
  %vm523 = vcmp.gt.s32.totalorder %v471, 0
  %vm524 = vcmp.gt.s32.totalorder %v472, 0
  %vm525 = vcmp.gt.s32.totalorder %v473, 0
  %vm526 = vcmp.gt.s32.totalorder %v474, 0
  %v527 = vsel %vm523, 1, 0
  %v528 = vsel %vm524, 1, 0
  %v529 = vsel %vm525, 1, 0
  %v530 = vsel %vm526, 1, 0
  %v531 = vcvt.s32.f32 %v527
  %v532 = vcvt.s32.f32 %v528
  %v533 = vcvt.s32.f32 %v529
  %v534 = vcvt.s32.f32 %v530
  %vm535 = vcmp.lt.s32.totalorder %v471, 15
  %vm536 = vcmp.lt.s32.totalorder %v472, 15
  %vm537 = vcmp.lt.s32.totalorder %v473, 15
  %vm538 = vcmp.lt.s32.totalorder %v474, 15
  %v539 = vsel %vm535, 1, 0
  %v540 = vsel %vm536, 1, 0
  %v541 = vsel %vm537, 1, 0
  %v542 = vsel %vm538, 1, 0
  %v543 = vcvt.s32.f32 %v539
  %v544 = vcvt.s32.f32 %v540
  %v545 = vcvt.s32.f32 %v541
  %v546 = vcvt.s32.f32 %v542
  %vm547 = vcmp.ge.s32.totalorder %v519, 16
  %vm548 = vcmp.ge.s32.totalorder %v520, 16
  %vm549 = vcmp.ge.s32.totalorder %v521, 16
  %vm550 = vcmp.ge.s32.totalorder %v522, 16
  %v551 = vsel %vm547, 1, 0
  %v552 = vsel %vm548, 1, 0
  %v553 = vsel %vm549, 1, 0
  %v554 = vsel %vm550, 1, 0
  %v555 = vcvt.s32.f32 %v551
  %v556 = vcvt.s32.f32 %v552
  %v557 = vcvt.s32.f32 %v553
  %v558 = vcvt.s32.f32 %v554
  %vm559 = vcmp.lt.s32.totalorder %v519, 240
  %vm560 = vcmp.lt.s32.totalorder %v520, 240
  %vm561 = vcmp.lt.s32.totalorder %v521, 240
  %vm562 = vcmp.lt.s32.totalorder %v522, 240
  %v563 = vsel %vm559, 1, 0
  %v564 = vsel %vm560, 1, 0
  %v565 = vsel %vm561, 1, 0
  %v566 = vsel %vm562, 1, 0
  %v567 = vcvt.s32.f32 %v563
  %v568 = vcvt.s32.f32 %v564
  %v569 = vcvt.s32.f32 %v565
  %v570 = vcvt.s32.f32 %v566
  %571 = vrot.lane.b32.xlu0 %v410, 17
  %v572 = vpop.permute.xlu0 %571
  %573 = vrot.lane.b32.xlu0 %v414, 17
  %v574 = vpop.permute.xlu0 %573
  %575 = vrot.lane.b32.xlu0 %v418, 17
  %v576 = vpop.permute.xlu0 %575
  %577 = vrot.lane.b32.xlu0 %v411, 17
  %v578 = vpop.permute.xlu0 %577
  %579 = vrot.lane.b32.xlu0 %v415, 17
  %v580 = vpop.permute.xlu0 %579
  %581 = vrot.lane.b32.xlu0 %v419, 17
  %v582 = vpop.permute.xlu0 %581
  %583 = vrot.lane.b32.xlu0 %v412, 17
  %v584 = vpop.permute.xlu0 %583
  %585 = vrot.lane.b32.xlu0 %v416, 17
  %v586 = vpop.permute.xlu0 %585
  %587 = vrot.lane.b32.xlu0 %v420, 17
  %v588 = vpop.permute.xlu0 %587
  %589 = vrot.lane.b32.xlu0 %v413, 17
  %v590 = vpop.permute.xlu0 %589
  %591 = vrot.lane.b32.xlu0 %v417, 17
  %v592 = vpop.permute.xlu0 %591
  %593 = vrot.lane.b32.xlu0 %v421, 17
  %v594 = vpop.permute.xlu0 %593
  %vm595 = vcmp.lt.s32.totalorder %v423, 17
  %v596 = vsel %vm595, %v584, %v590
  %v597 = vsel %vm595, %v586, %v592
  %v598 = vsel %vm595, %v588, %v594
  %v599 = vsel %vm595, %v578, %v584
  %v600 = vsel %vm595, %v580, %v586
  %v601 = vsel %vm595, %v582, %v588
  %v602 = vsel %vm595, %v572, %v578
  %v603 = vsel %vm595, %v574, %v580
  %v604 = vsel %vm595, %v576, %v582
  %v605 = vsel %vm595, %v590, %v572
  %v606 = vsel %vm595, %v592, %v574
  %v607 = vsel %vm595, %v594, %v576
  %v608 = vld [vmem:[%s2] sm:$0xff]
  %v609 = vld [vmem:[%s2 + $0x8] sm:$0xff]
  %v610 = vld [vmem:[%s2 + $0x10] sm:$0xff]
  %612 = vset.pattern.permute.xlu0 0
  %613 = vperm.xlu0 %612, %v608
  %v614 = vpop.permute.xlu0 %613
  %617 = vset.pattern.permute.xlu0 0
  %618 = vperm.xlu0 %617, %v609
  %v619 = vpop.permute.xlu0 %618
  %622 = vset.pattern.permute.xlu0 0
  %623 = vperm.xlu0 %622, %v610
  %v624 = vpop.permute.xlu0 %623
  %v626 = vmul.f32 %v605, %v614
  %v627 = vmul.f32 %v602, %v614
  %v628 = vmul.f32 %v599, %v614
  %v629 = vmul.f32 %v596, %v614
  %v630 = vmul.f32 %v606, %v619
  %v631 = vmul.f32 %v603, %v619
  %v632 = vmul.f32 %v600, %v619
  %v633 = vmul.f32 %v597, %v619
  %v634 = vmul.f32 %v607, %v624
  %v635 = vmul.f32 %v604, %v624
  %v636 = vmul.f32 %v601, %v624
  %v637 = vmul.f32 %v598, %v624
  %v638 = vmul.f32 %v555, %v531
  %v639 = vmul.f32 %v556, %v532
  %v640 = vmul.f32 %v557, %v533
  %v641 = vmul.f32 %v558, %v534
  %v642 = vmul.f32 %v626, %v638
  %v643 = vmul.f32 %v627, %v639
  %v644 = vmul.f32 %v628, %v640
  %v645 = vmul.f32 %v629, %v641
  %v646 = vmul.f32 %v630, %v638
  %v647 = vmul.f32 %v631, %v639
  %v648 = vmul.f32 %v632, %v640
  %v649 = vmul.f32 %v633, %v641
  %v650 = vmul.f32 %v634, %v638
  %v651 = vmul.f32 %v635, %v639
  %v652 = vmul.f32 %v636, %v640
  %v653 = vmul.f32 %v637, %v641
  %654 = vrot.lane.b32.xlu0 %v410, 16
  %v655 = vpop.permute.xlu0 %654
  %656 = vrot.lane.b32.xlu0 %v414, 16
  %v657 = vpop.permute.xlu0 %656
  %658 = vrot.lane.b32.xlu0 %v418, 16
  %v659 = vpop.permute.xlu0 %658
  %660 = vrot.lane.b32.xlu0 %v411, 16
  %v661 = vpop.permute.xlu0 %660
  %662 = vrot.lane.b32.xlu0 %v415, 16
  %v663 = vpop.permute.xlu0 %662
  %664 = vrot.lane.b32.xlu0 %v419, 16
  %v665 = vpop.permute.xlu0 %664
  %666 = vrot.lane.b32.xlu0 %v412, 16
  %v667 = vpop.permute.xlu0 %666
  %668 = vrot.lane.b32.xlu0 %v416, 16
  %v669 = vpop.permute.xlu0 %668
  %670 = vrot.lane.b32.xlu0 %v420, 16
  %v671 = vpop.permute.xlu0 %670
  %672 = vrot.lane.b32.xlu0 %v413, 16
  %v673 = vpop.permute.xlu0 %672
  %674 = vrot.lane.b32.xlu0 %v417, 16
  %v675 = vpop.permute.xlu0 %674
  %676 = vrot.lane.b32.xlu0 %v421, 16
  %v677 = vpop.permute.xlu0 %676
  %vm678 = vcmp.lt.s32.totalorder %v423, 16
  %v679 = vsel %vm678, %v667, %v673
  %v680 = vsel %vm678, %v669, %v675
  %v681 = vsel %vm678, %v671, %v677
  %v682 = vsel %vm678, %v661, %v667
  %v683 = vsel %vm678, %v663, %v669
  %v684 = vsel %vm678, %v665, %v671
  %v685 = vsel %vm678, %v655, %v661
  %v686 = vsel %vm678, %v657, %v663
  %v687 = vsel %vm678, %v659, %v665
  %v688 = vsel %vm678, %v673, %v655
  %v689 = vsel %vm678, %v675, %v657
  %v690 = vsel %vm678, %v677, %v659
  %691 = vset.pattern.permute.xlu0 1
  %692 = vperm.xlu0 %691, %v608
  %v693 = vpop.permute.xlu0 %692
  %695 = vset.pattern.permute.xlu0 1
  %696 = vperm.xlu0 %695, %v609
  %v697 = vpop.permute.xlu0 %696
  %699 = vset.pattern.permute.xlu0 1
  %700 = vperm.xlu0 %699, %v610
  %v701 = vpop.permute.xlu0 %700
  %v703 = vmul.f32 %v688, %v693
  %v704 = vmul.f32 %v685, %v693
  %v705 = vmul.f32 %v682, %v693
  %v706 = vmul.f32 %v679, %v693
  %v707 = vmul.f32 %v689, %v697
  %v708 = vmul.f32 %v686, %v697
  %v709 = vmul.f32 %v683, %v697
  %v710 = vmul.f32 %v680, %v697
  %v711 = vmul.f32 %v690, %v701
  %v712 = vmul.f32 %v687, %v701
  %v713 = vmul.f32 %v684, %v701
  %v714 = vmul.f32 %v681, %v701
  %v715 = vmul.f32 %v703, %v555
  %v716 = vmul.f32 %v704, %v556
  %v717 = vmul.f32 %v705, %v557
  %v718 = vmul.f32 %v706, %v558
  %v719 = vmul.f32 %v707, %v555
  %v720 = vmul.f32 %v708, %v556
  %v721 = vmul.f32 %v709, %v557
  %v722 = vmul.f32 %v710, %v558
  %v723 = vmul.f32 %v711, %v555
  %v724 = vmul.f32 %v712, %v556
  %v725 = vmul.f32 %v713, %v557
  %v726 = vmul.f32 %v714, %v558
  %v727 = vadd.f32 %v642, %v715
  %v728 = vadd.f32 %v643, %v716
  %v729 = vadd.f32 %v644, %v717
  %v730 = vadd.f32 %v645, %v718
  %v731 = vadd.f32 %v646, %v719
  %v732 = vadd.f32 %v647, %v720
  %v733 = vadd.f32 %v648, %v721
  %v734 = vadd.f32 %v649, %v722
  %v735 = vadd.f32 %v650, %v723
  %v736 = vadd.f32 %v651, %v724
  %v737 = vadd.f32 %v652, %v725
  %v738 = vadd.f32 %v653, %v726
  %739 = vrot.lane.b32.xlu0 %v410, 15
  %v740 = vpop.permute.xlu0 %739
  %741 = vrot.lane.b32.xlu0 %v414, 15
  %v742 = vpop.permute.xlu0 %741
  %743 = vrot.lane.b32.xlu0 %v418, 15
  %v744 = vpop.permute.xlu0 %743
  %745 = vrot.lane.b32.xlu0 %v411, 15
  %v746 = vpop.permute.xlu0 %745
  %747 = vrot.lane.b32.xlu0 %v415, 15
  %v748 = vpop.permute.xlu0 %747
  %749 = vrot.lane.b32.xlu0 %v419, 15
  %v750 = vpop.permute.xlu0 %749
  %751 = vrot.lane.b32.xlu0 %v412, 15
  %v752 = vpop.permute.xlu0 %751
  %753 = vrot.lane.b32.xlu0 %v416, 15
  %v754 = vpop.permute.xlu0 %753
  %755 = vrot.lane.b32.xlu0 %v420, 15
  %v756 = vpop.permute.xlu0 %755
  %757 = vrot.lane.b32.xlu0 %v413, 15
  %v758 = vpop.permute.xlu0 %757
  %759 = vrot.lane.b32.xlu0 %v417, 15
  %v760 = vpop.permute.xlu0 %759
  %761 = vrot.lane.b32.xlu0 %v421, 15
  %v762 = vpop.permute.xlu0 %761
  %vm763 = vcmp.lt.s32.totalorder %v423, 15
  %v764 = vsel %vm763, %v752, %v758
  %v765 = vsel %vm763, %v754, %v760
  %v766 = vsel %vm763, %v756, %v762
  %v767 = vsel %vm763, %v746, %v752
  %v768 = vsel %vm763, %v748, %v754
  %v769 = vsel %vm763, %v750, %v756
  %v770 = vsel %vm763, %v740, %v746
  %v771 = vsel %vm763, %v742, %v748
  %v772 = vsel %vm763, %v744, %v750
  %v773 = vsel %vm763, %v758, %v740
  %v774 = vsel %vm763, %v760, %v742
  %v775 = vsel %vm763, %v762, %v744
  %776 = vset.pattern.permute.xlu0 2
  %777 = vperm.xlu0 %776, %v608
  %v778 = vpop.permute.xlu0 %777
  %780 = vset.pattern.permute.xlu0 2
  %781 = vperm.xlu0 %780, %v609
  %v782 = vpop.permute.xlu0 %781
  %784 = vset.pattern.permute.xlu0 2
  %785 = vperm.xlu0 %784, %v610
  %v786 = vpop.permute.xlu0 %785
  %v788 = vmul.f32 %v773, %v778
  %v789 = vmul.f32 %v770, %v778
  %v790 = vmul.f32 %v767, %v778
  %v791 = vmul.f32 %v764, %v778
  %v792 = vmul.f32 %v774, %v782
  %v793 = vmul.f32 %v771, %v782
  %v794 = vmul.f32 %v768, %v782
  %v795 = vmul.f32 %v765, %v782
  %v796 = vmul.f32 %v775, %v786
  %v797 = vmul.f32 %v772, %v786
  %v798 = vmul.f32 %v769, %v786
  %v799 = vmul.f32 %v766, %v786
  %v800 = vmul.f32 %v555, %v543
  %v801 = vmul.f32 %v556, %v544
  %v802 = vmul.f32 %v557, %v545
  %v803 = vmul.f32 %v558, %v546
  %v804 = vmul.f32 %v788, %v800
  %v805 = vmul.f32 %v789, %v801
  %v806 = vmul.f32 %v790, %v802
  %v807 = vmul.f32 %v791, %v803
  %v808 = vmul.f32 %v792, %v800
  %v809 = vmul.f32 %v793, %v801
  %v810 = vmul.f32 %v794, %v802
  %v811 = vmul.f32 %v795, %v803
  %v812 = vmul.f32 %v796, %v800
  %v813 = vmul.f32 %v797, %v801
  %v814 = vmul.f32 %v798, %v802
  %v815 = vmul.f32 %v799, %v803
  %v816 = vadd.f32 %v727, %v804
  %v817 = vadd.f32 %v728, %v805
  %v818 = vadd.f32 %v729, %v806
  %v819 = vadd.f32 %v730, %v807
  %v820 = vadd.f32 %v731, %v808
  %v821 = vadd.f32 %v732, %v809
  %v822 = vadd.f32 %v733, %v810
  %v823 = vadd.f32 %v734, %v811
  %v824 = vadd.f32 %v735, %v812
  %v825 = vadd.f32 %v736, %v813
  %v826 = vadd.f32 %v737, %v814
  %v827 = vadd.f32 %v738, %v815
  %828 = vrot.lane.b32.xlu0 %v410, 1
  %v829 = vpop.permute.xlu0 %828
  %830 = vrot.lane.b32.xlu0 %v414, 1
  %v831 = vpop.permute.xlu0 %830
  %832 = vrot.lane.b32.xlu0 %v418, 1
  %v833 = vpop.permute.xlu0 %832
  %834 = vrot.lane.b32.xlu0 %v411, 1
  %v835 = vpop.permute.xlu0 %834
  %836 = vrot.lane.b32.xlu0 %v415, 1
  %v837 = vpop.permute.xlu0 %836
  %838 = vrot.lane.b32.xlu0 %v419, 1
  %v839 = vpop.permute.xlu0 %838
  %840 = vrot.lane.b32.xlu0 %v412, 1
  %v841 = vpop.permute.xlu0 %840
  %842 = vrot.lane.b32.xlu0 %v416, 1
  %v843 = vpop.permute.xlu0 %842
  %844 = vrot.lane.b32.xlu0 %v420, 1
  %v845 = vpop.permute.xlu0 %844
  %846 = vrot.lane.b32.xlu0 %v413, 1
  %v847 = vpop.permute.xlu0 %846
  %848 = vrot.lane.b32.xlu0 %v417, 1
  %v849 = vpop.permute.xlu0 %848
  %850 = vrot.lane.b32.xlu0 %v421, 1
  %v851 = vpop.permute.xlu0 %850
  %vm852 = vcmp.lt.s32.totalorder %v423, 1
  %v853 = vsel %vm852, %v841, %v847
  %v854 = vsel %vm852, %v843, %v849
  %v855 = vsel %vm852, %v845, %v851
  %v856 = vsel %vm852, %v835, %v841
  %v857 = vsel %vm852, %v837, %v843
  %v858 = vsel %vm852, %v839, %v845
  %v859 = vsel %vm852, %v829, %v835
  %v860 = vsel %vm852, %v831, %v837
  %v861 = vsel %vm852, %v833, %v839
  %v862 = vsel %vm852, %v847, %v829
  %v863 = vsel %vm852, %v849, %v831
  %v864 = vsel %vm852, %v851, %v833
  %865 = vset.pattern.permute.xlu0 3
  %866 = vperm.xlu0 %865, %v608
  %v867 = vpop.permute.xlu0 %866
  %869 = vset.pattern.permute.xlu0 3
  %870 = vperm.xlu0 %869, %v609
  %v871 = vpop.permute.xlu0 %870
  %873 = vset.pattern.permute.xlu0 3
  %874 = vperm.xlu0 %873, %v610
  %v875 = vpop.permute.xlu0 %874
  %v877 = vmul.f32 %v862, %v867
  %v878 = vmul.f32 %v859, %v867
  %v879 = vmul.f32 %v856, %v867
  %v880 = vmul.f32 %v853, %v867
  %v881 = vmul.f32 %v863, %v871
  %v882 = vmul.f32 %v860, %v871
  %v883 = vmul.f32 %v857, %v871
  %v884 = vmul.f32 %v854, %v871
  %v885 = vmul.f32 %v864, %v875
  %v886 = vmul.f32 %v861, %v875
  %v887 = vmul.f32 %v858, %v875
  %v888 = vmul.f32 %v855, %v875
  %v889 = vmul.f32 %v877, %v531
  %v890 = vmul.f32 %v878, %v532
  %v891 = vmul.f32 %v879, %v533
  %v892 = vmul.f32 %v880, %v534
  %v893 = vmul.f32 %v881, %v531
  %v894 = vmul.f32 %v882, %v532
  %v895 = vmul.f32 %v883, %v533
  %v896 = vmul.f32 %v884, %v534
  %v897 = vmul.f32 %v885, %v531
  %v898 = vmul.f32 %v886, %v532
  %v899 = vmul.f32 %v887, %v533
  %v900 = vmul.f32 %v888, %v534
  %v901 = vadd.f32 %v816, %v889
  %v902 = vadd.f32 %v817, %v890
  %v903 = vadd.f32 %v818, %v891
  %v904 = vadd.f32 %v819, %v892
  %v905 = vadd.f32 %v820, %v893
  %v906 = vadd.f32 %v821, %v894
  %v907 = vadd.f32 %v822, %v895
  %v908 = vadd.f32 %v823, %v896
  %v909 = vadd.f32 %v824, %v897
  %v910 = vadd.f32 %v825, %v898
  %v911 = vadd.f32 %v826, %v899
  %v912 = vadd.f32 %v827, %v900
  %913 = vset.pattern.permute.xlu0 4
  %914 = vperm.xlu0 %913, %v608
  %v915 = vpop.permute.xlu0 %914
  %917 = vset.pattern.permute.xlu0 4
  %918 = vperm.xlu0 %917, %v609
  %v919 = vpop.permute.xlu0 %918
  %921 = vset.pattern.permute.xlu0 4
  %922 = vperm.xlu0 %921, %v610
  %v923 = vpop.permute.xlu0 %922
  %v925 = vmul.f32 %v410, %v915
  %v926 = vmul.f32 %v411, %v915
  %v927 = vmul.f32 %v412, %v915
  %v928 = vmul.f32 %v413, %v915
  %v929 = vmul.f32 %v414, %v919
  %v930 = vmul.f32 %v415, %v919
  %v931 = vmul.f32 %v416, %v919
  %v932 = vmul.f32 %v417, %v919
  %v933 = vmul.f32 %v418, %v923
  %v934 = vmul.f32 %v419, %v923
  %v935 = vmul.f32 %v420, %v923
  %v936 = vmul.f32 %v421, %v923
  %v937 = vadd.f32 %v901, %v925
  %v938 = vadd.f32 %v902, %v926
  %v939 = vadd.f32 %v903, %v927
  %v940 = vadd.f32 %v904, %v928
  %v941 = vadd.f32 %v905, %v929
  %v942 = vadd.f32 %v906, %v930
  %v943 = vadd.f32 %v907, %v931
  %v944 = vadd.f32 %v908, %v932
  %v945 = vadd.f32 %v909, %v933
  %v946 = vadd.f32 %v910, %v934
  %v947 = vadd.f32 %v911, %v935
  %v948 = vadd.f32 %v912, %v936
  %949 = vrot.lane.b32.xlu0 %v410, 127
  %v950 = vpop.permute.xlu0 %949
  %951 = vrot.lane.b32.xlu0 %v414, 127
  %v952 = vpop.permute.xlu0 %951
  %953 = vrot.lane.b32.xlu0 %v418, 127
  %v954 = vpop.permute.xlu0 %953
  %955 = vrot.lane.b32.xlu0 %v411, 127
  %v956 = vpop.permute.xlu0 %955
  %957 = vrot.lane.b32.xlu0 %v415, 127
  %v958 = vpop.permute.xlu0 %957
  %959 = vrot.lane.b32.xlu0 %v419, 127
  %v960 = vpop.permute.xlu0 %959
  %961 = vrot.lane.b32.xlu0 %v412, 127
  %v962 = vpop.permute.xlu0 %961
  %963 = vrot.lane.b32.xlu0 %v416, 127
  %v964 = vpop.permute.xlu0 %963
  %965 = vrot.lane.b32.xlu0 %v420, 127
  %v966 = vpop.permute.xlu0 %965
  %967 = vrot.lane.b32.xlu0 %v413, 127
  %v968 = vpop.permute.xlu0 %967
  %969 = vrot.lane.b32.xlu0 %v417, 127
  %v970 = vpop.permute.xlu0 %969
  %971 = vrot.lane.b32.xlu0 %v421, 127
  %v972 = vpop.permute.xlu0 %971
  %vm973 = vcmp.lt.s32.totalorder %v423, 127
  %v974 = vsel %vm973, %v962, %v968
  %v975 = vsel %vm973, %v964, %v970
  %v976 = vsel %vm973, %v966, %v972
  %v977 = vsel %vm973, %v956, %v962
  %v978 = vsel %vm973, %v958, %v964
  %v979 = vsel %vm973, %v960, %v966
  %v980 = vsel %vm973, %v950, %v956
  %v981 = vsel %vm973, %v952, %v958
  %v982 = vsel %vm973, %v954, %v960
  %v983 = vsel %vm973, %v968, %v950
  %v984 = vsel %vm973, %v970, %v952
  %v985 = vsel %vm973, %v972, %v954
  %986 = vset.pattern.permute.xlu0 5
  %987 = vperm.xlu0 %986, %v608
  %v988 = vpop.permute.xlu0 %987
  %990 = vset.pattern.permute.xlu0 5
  %991 = vperm.xlu0 %990, %v609
  %v992 = vpop.permute.xlu0 %991
  %994 = vset.pattern.permute.xlu0 5
  %995 = vperm.xlu0 %994, %v610
  %v996 = vpop.permute.xlu0 %995
  %v998 = vmul.f32 %v980, %v988
  %v999 = vmul.f32 %v977, %v988
  %v1000 = vmul.f32 %v974, %v988
  %v1001 = vmul.f32 %v983, %v988
  %v1002 = vmul.f32 %v981, %v992
  %v1003 = vmul.f32 %v978, %v992
  %v1004 = vmul.f32 %v975, %v992
  %v1005 = vmul.f32 %v984, %v992
  %v1006 = vmul.f32 %v982, %v996
  %v1007 = vmul.f32 %v979, %v996
  %v1008 = vmul.f32 %v976, %v996
  %v1009 = vmul.f32 %v985, %v996
  %v1010 = vmul.f32 %v998, %v543
  %v1011 = vmul.f32 %v999, %v544
  %v1012 = vmul.f32 %v1000, %v545
  %v1013 = vmul.f32 %v1001, %v546
  %v1014 = vmul.f32 %v1002, %v543
  %v1015 = vmul.f32 %v1003, %v544
  %v1016 = vmul.f32 %v1004, %v545
  %v1017 = vmul.f32 %v1005, %v546
  %v1018 = vmul.f32 %v1006, %v543
  %v1019 = vmul.f32 %v1007, %v544
  %v1020 = vmul.f32 %v1008, %v545
  %v1021 = vmul.f32 %v1009, %v546
  %v1022 = vadd.f32 %v937, %v1010
  %v1023 = vadd.f32 %v938, %v1011
  %v1024 = vadd.f32 %v939, %v1012
  %v1025 = vadd.f32 %v940, %v1013
  %v1026 = vadd.f32 %v941, %v1014
  %v1027 = vadd.f32 %v942, %v1015
  %v1028 = vadd.f32 %v943, %v1016
  %v1029 = vadd.f32 %v944, %v1017
  %v1030 = vadd.f32 %v945, %v1018
  %v1031 = vadd.f32 %v946, %v1019
  %v1032 = vadd.f32 %v947, %v1020
  %v1033 = vadd.f32 %v948, %v1021
  %1034 = vrot.lane.b32.xlu0 %v410, 113
  %v1035 = vpop.permute.xlu0 %1034
  %1036 = vrot.lane.b32.xlu0 %v414, 113
  %v1037 = vpop.permute.xlu0 %1036
  %1038 = vrot.lane.b32.xlu0 %v418, 113
  %v1039 = vpop.permute.xlu0 %1038
  %1040 = vrot.lane.b32.xlu0 %v411, 113
  %v1041 = vpop.permute.xlu0 %1040
  %1042 = vrot.lane.b32.xlu0 %v415, 113
  %v1043 = vpop.permute.xlu0 %1042
  %1044 = vrot.lane.b32.xlu0 %v419, 113
  %v1045 = vpop.permute.xlu0 %1044
  %1046 = vrot.lane.b32.xlu0 %v412, 113
  %v1047 = vpop.permute.xlu0 %1046
  %1048 = vrot.lane.b32.xlu0 %v416, 113
  %v1049 = vpop.permute.xlu0 %1048
  %1050 = vrot.lane.b32.xlu0 %v420, 113
  %v1051 = vpop.permute.xlu0 %1050
  %1052 = vrot.lane.b32.xlu0 %v413, 113
  %v1053 = vpop.permute.xlu0 %1052
  %1054 = vrot.lane.b32.xlu0 %v417, 113
  %v1055 = vpop.permute.xlu0 %1054
  %1056 = vrot.lane.b32.xlu0 %v421, 113
  %v1057 = vpop.permute.xlu0 %1056
  %vm1058 = vcmp.lt.s32.totalorder %v423, 113
  %v1059 = vsel %vm1058, %v1047, %v1053
  %v1060 = vsel %vm1058, %v1049, %v1055
  %v1061 = vsel %vm1058, %v1051, %v1057
  %v1062 = vsel %vm1058, %v1041, %v1047
  %v1063 = vsel %vm1058, %v1043, %v1049
  %v1064 = vsel %vm1058, %v1045, %v1051
  %v1065 = vsel %vm1058, %v1035, %v1041
  %v1066 = vsel %vm1058, %v1037, %v1043
  %v1067 = vsel %vm1058, %v1039, %v1045
  %v1068 = vsel %vm1058, %v1053, %v1035
  %v1069 = vsel %vm1058, %v1055, %v1037
  %v1070 = vsel %vm1058, %v1057, %v1039
  %1071 = vset.pattern.permute.xlu0 6
  %1072 = vperm.xlu0 %1071, %v608
  %v1073 = vpop.permute.xlu0 %1072
  %1075 = vset.pattern.permute.xlu0 6
  %1076 = vperm.xlu0 %1075, %v609
  %v1077 = vpop.permute.xlu0 %1076
  %1079 = vset.pattern.permute.xlu0 6
  %1080 = vperm.xlu0 %1079, %v610
  %v1081 = vpop.permute.xlu0 %1080
  %v1083 = vmul.f32 %v1065, %v1073
  %v1084 = vmul.f32 %v1062, %v1073
  %v1085 = vmul.f32 %v1059, %v1073
  %v1086 = vmul.f32 %v1068, %v1073
  %v1087 = vmul.f32 %v1066, %v1077
  %v1088 = vmul.f32 %v1063, %v1077
  %v1089 = vmul.f32 %v1060, %v1077
  %v1090 = vmul.f32 %v1069, %v1077
  %v1091 = vmul.f32 %v1067, %v1081
  %v1092 = vmul.f32 %v1064, %v1081
  %v1093 = vmul.f32 %v1061, %v1081
  %v1094 = vmul.f32 %v1070, %v1081
  %v1095 = vmul.f32 %v567, %v531
  %v1096 = vmul.f32 %v568, %v532
  %v1097 = vmul.f32 %v569, %v533
  %v1098 = vmul.f32 %v570, %v534
  %v1099 = vmul.f32 %v1083, %v1095
  %v1100 = vmul.f32 %v1084, %v1096
  %v1101 = vmul.f32 %v1085, %v1097
  %v1102 = vmul.f32 %v1086, %v1098
  %v1103 = vmul.f32 %v1087, %v1095
  %v1104 = vmul.f32 %v1088, %v1096
  %v1105 = vmul.f32 %v1089, %v1097
  %v1106 = vmul.f32 %v1090, %v1098
  %v1107 = vmul.f32 %v1091, %v1095
  %v1108 = vmul.f32 %v1092, %v1096
  %v1109 = vmul.f32 %v1093, %v1097
  %v1110 = vmul.f32 %v1094, %v1098
  %v1111 = vadd.f32 %v1022, %v1099
  %v1112 = vadd.f32 %v1023, %v1100
  %v1113 = vadd.f32 %v1024, %v1101
  %v1114 = vadd.f32 %v1025, %v1102
  %v1115 = vadd.f32 %v1026, %v1103
  %v1116 = vadd.f32 %v1027, %v1104
  %v1117 = vadd.f32 %v1028, %v1105
  %v1118 = vadd.f32 %v1029, %v1106
  %v1119 = vadd.f32 %v1030, %v1107
  %v1120 = vadd.f32 %v1031, %v1108
  %v1121 = vadd.f32 %v1032, %v1109
  %v1122 = vadd.f32 %v1033, %v1110
  %1123 = vrot.lane.b32.xlu0 %v410, 112
  %v1124 = vpop.permute.xlu0 %1123
  %1125 = vrot.lane.b32.xlu0 %v414, 112
  %v1126 = vpop.permute.xlu0 %1125
  %1127 = vrot.lane.b32.xlu0 %v418, 112
  %v1128 = vpop.permute.xlu0 %1127
  %1129 = vrot.lane.b32.xlu0 %v411, 112
  %v1130 = vpop.permute.xlu0 %1129
  %1131 = vrot.lane.b32.xlu0 %v415, 112
  %v1132 = vpop.permute.xlu0 %1131
  %1133 = vrot.lane.b32.xlu0 %v419, 112
  %v1134 = vpop.permute.xlu0 %1133
  %1135 = vrot.lane.b32.xlu0 %v412, 112
  %v1136 = vpop.permute.xlu0 %1135
  %1137 = vrot.lane.b32.xlu0 %v416, 112
  %v1138 = vpop.permute.xlu0 %1137
  %1139 = vrot.lane.b32.xlu0 %v420, 112
  %v1140 = vpop.permute.xlu0 %1139
  %1141 = vrot.lane.b32.xlu0 %v413, 112
  %v1142 = vpop.permute.xlu0 %1141
  %1143 = vrot.lane.b32.xlu0 %v417, 112
  %v1144 = vpop.permute.xlu0 %1143
  %1145 = vrot.lane.b32.xlu0 %v421, 112
  %v1146 = vpop.permute.xlu0 %1145
  %vm1147 = vcmp.lt.s32.totalorder %v423, 112
  %v1148 = vsel %vm1147, %v1136, %v1142
  %v1149 = vsel %vm1147, %v1138, %v1144
  %v1150 = vsel %vm1147, %v1140, %v1146
  %v1151 = vsel %vm1147, %v1130, %v1136
  %v1152 = vsel %vm1147, %v1132, %v1138
  %v1153 = vsel %vm1147, %v1134, %v1140
  %v1154 = vsel %vm1147, %v1124, %v1130
  %v1155 = vsel %vm1147, %v1126, %v1132
  %v1156 = vsel %vm1147, %v1128, %v1134
  %v1157 = vsel %vm1147, %v1142, %v1124
  %v1158 = vsel %vm1147, %v1144, %v1126
  %v1159 = vsel %vm1147, %v1146, %v1128
  %1160 = vset.pattern.permute.xlu0 7
  %1161 = vperm.xlu0 %1160, %v608
  %v1162 = vpop.permute.xlu0 %1161
  %1164 = vset.pattern.permute.xlu0 7
  %1165 = vperm.xlu0 %1164, %v609
  %v1166 = vpop.permute.xlu0 %1165
  %1168 = vset.pattern.permute.xlu0 7
  %1169 = vperm.xlu0 %1168, %v610
  %v1170 = vpop.permute.xlu0 %1169
  %v1172 = vmul.f32 %v1154, %v1162
  %v1173 = vmul.f32 %v1151, %v1162
  %v1174 = vmul.f32 %v1148, %v1162
  %v1175 = vmul.f32 %v1157, %v1162
  %v1176 = vmul.f32 %v1155, %v1166
  %v1177 = vmul.f32 %v1152, %v1166
  %v1178 = vmul.f32 %v1149, %v1166
  %v1179 = vmul.f32 %v1158, %v1166
  %v1180 = vmul.f32 %v1156, %v1170
  %v1181 = vmul.f32 %v1153, %v1170
  %v1182 = vmul.f32 %v1150, %v1170
  %v1183 = vmul.f32 %v1159, %v1170
  %v1184 = vmul.f32 %v1172, %v567
  %v1185 = vmul.f32 %v1173, %v568
  %v1186 = vmul.f32 %v1174, %v569
  %v1187 = vmul.f32 %v1175, %v570
  %v1188 = vmul.f32 %v1176, %v567
  %v1189 = vmul.f32 %v1177, %v568
  %v1190 = vmul.f32 %v1178, %v569
  %v1191 = vmul.f32 %v1179, %v570
  %v1192 = vmul.f32 %v1180, %v567
  %v1193 = vmul.f32 %v1181, %v568
  %v1194 = vmul.f32 %v1182, %v569
  %v1195 = vmul.f32 %v1183, %v570
  %v1196 = vadd.f32 %v1111, %v1184
  %v1197 = vadd.f32 %v1112, %v1185
  %v1198 = vadd.f32 %v1113, %v1186
  %v1199 = vadd.f32 %v1114, %v1187
  %v1200 = vadd.f32 %v1115, %v1188
  %v1201 = vadd.f32 %v1116, %v1189
  %v1202 = vadd.f32 %v1117, %v1190
  %v1203 = vadd.f32 %v1118, %v1191
  %v1204 = vadd.f32 %v1119, %v1192
  %v1205 = vadd.f32 %v1120, %v1193
  %v1206 = vadd.f32 %v1121, %v1194
  %v1207 = vadd.f32 %v1122, %v1195
  %1208 = vrot.lane.b32.xlu0 %v410, 111
  %v1209 = vpop.permute.xlu0 %1208
  %1210 = vrot.lane.b32.xlu0 %v414, 111
  %v1211 = vpop.permute.xlu0 %1210
  %1212 = vrot.lane.b32.xlu0 %v418, 111
  %v1213 = vpop.permute.xlu0 %1212
  %1214 = vrot.lane.b32.xlu0 %v411, 111
  %v1215 = vpop.permute.xlu0 %1214
  %1216 = vrot.lane.b32.xlu0 %v415, 111
  %v1217 = vpop.permute.xlu0 %1216
  %1218 = vrot.lane.b32.xlu0 %v419, 111
  %v1219 = vpop.permute.xlu0 %1218
  %1220 = vrot.lane.b32.xlu0 %v412, 111
  %v1221 = vpop.permute.xlu0 %1220
  %1222 = vrot.lane.b32.xlu0 %v416, 111
  %v1223 = vpop.permute.xlu0 %1222
  %1224 = vrot.lane.b32.xlu0 %v420, 111
  %v1225 = vpop.permute.xlu0 %1224
  %1226 = vrot.lane.b32.xlu0 %v413, 111
  %v1227 = vpop.permute.xlu0 %1226
  %1228 = vrot.lane.b32.xlu0 %v417, 111
  %v1229 = vpop.permute.xlu0 %1228
  %1230 = vrot.lane.b32.xlu0 %v421, 111
  %v1231 = vpop.permute.xlu0 %1230
  %vm1232 = vcmp.lt.s32.totalorder %v423, 111
  %v1233 = vsel %vm1232, %v1221, %v1227
  %v1234 = vsel %vm1232, %v1223, %v1229
  %v1235 = vsel %vm1232, %v1225, %v1231
  %v1236 = vsel %vm1232, %v1215, %v1221
  %v1237 = vsel %vm1232, %v1217, %v1223
  %v1238 = vsel %vm1232, %v1219, %v1225
  %v1239 = vsel %vm1232, %v1209, %v1215
  %v1240 = vsel %vm1232, %v1211, %v1217
  %v1241 = vsel %vm1232, %v1213, %v1219
  %v1242 = vsel %vm1232, %v1227, %v1209
  %v1243 = vsel %vm1232, %v1229, %v1211
  %v1244 = vsel %vm1232, %v1231, %v1213
  %1245 = vset.pattern.permute.xlu0 8
  %1246 = vperm.xlu0 %1245, %v608
  %v1247 = vpop.permute.xlu0 %1246
  %1249 = vset.pattern.permute.xlu0 8
  %1250 = vperm.xlu0 %1249, %v609
  %v1251 = vpop.permute.xlu0 %1250
  %1253 = vset.pattern.permute.xlu0 8
  %1254 = vperm.xlu0 %1253, %v610
  %v1255 = vpop.permute.xlu0 %1254
  %v1257 = vmul.f32 %v1239, %v1247
  %v1258 = vmul.f32 %v1236, %v1247
  %v1259 = vmul.f32 %v1233, %v1247
  %v1260 = vmul.f32 %v1242, %v1247
  %v1261 = vmul.f32 %v1240, %v1251
  %v1262 = vmul.f32 %v1237, %v1251
  %v1263 = vmul.f32 %v1234, %v1251
  %v1264 = vmul.f32 %v1243, %v1251
  %v1265 = vmul.f32 %v1241, %v1255
  %v1266 = vmul.f32 %v1238, %v1255
  %v1267 = vmul.f32 %v1235, %v1255
  %v1268 = vmul.f32 %v1244, %v1255
  %v1269 = vmul.f32 %v567, %v543
  %v1270 = vmul.f32 %v568, %v544
  %v1271 = vmul.f32 %v569, %v545
  %v1272 = vmul.f32 %v570, %v546
  %v1273 = vmul.f32 %v1257, %v1269
  %v1274 = vmul.f32 %v1258, %v1270
  %v1275 = vmul.f32 %v1259, %v1271
  %v1276 = vmul.f32 %v1260, %v1272
  %v1277 = vmul.f32 %v1261, %v1269
  %v1278 = vmul.f32 %v1262, %v1270
  %v1279 = vmul.f32 %v1263, %v1271
  %v1280 = vmul.f32 %v1264, %v1272
  %v1281 = vmul.f32 %v1265, %v1269
  %v1282 = vmul.f32 %v1266, %v1270
  %v1283 = vmul.f32 %v1267, %v1271
  %v1284 = vmul.f32 %v1268, %v1272
  %v1285 = vadd.f32 %v1196, %v1273
  %v1286 = vadd.f32 %v1197, %v1274
  %v1287 = vadd.f32 %v1198, %v1275
  %v1288 = vadd.f32 %v1199, %v1276
  %v1289 = vadd.f32 %v1200, %v1277
  %v1290 = vadd.f32 %v1201, %v1278
  %v1291 = vadd.f32 %v1202, %v1279
  %v1292 = vadd.f32 %v1203, %v1280
  %v1293 = vadd.f32 %v1204, %v1281
  %v1294 = vadd.f32 %v1205, %v1282
  %v1295 = vadd.f32 %v1206, %v1283
  %v1296 = vadd.f32 %v1207, %v1284
  %1298 = vset.pattern.permute.xlu0 0
  %1299 = vperm.xlu0 %1298, %v367
  %v1300 = vpop.permute.xlu0 %1299
  %1303 = vset.pattern.permute.xlu0 0
  %1304 = vperm.xlu0 %1303, %v368
  %v1305 = vpop.permute.xlu0 %1304
  %1308 = vset.pattern.permute.xlu0 0
  %1309 = vperm.xlu0 %1308, %v369
  %v1310 = vpop.permute.xlu0 %1309
  %v1312 = vadd.f32 %v1285, %v1300
  %v1313 = vadd.f32 %v1286, %v1300
  %v1314 = vadd.f32 %v1287, %v1300
  %v1315 = vadd.f32 %v1288, %v1300
  %v1316 = vadd.f32 %v1289, %v1305
  %v1317 = vadd.f32 %v1290, %v1305
  %v1318 = vadd.f32 %v1291, %v1305
  %v1319 = vadd.f32 %v1292, %v1305
  %v1320 = vadd.f32 %v1293, %v1310
  %v1321 = vadd.f32 %v1294, %v1310
  %v1322 = vadd.f32 %v1295, %v1310
  %v1323 = vadd.f32 %v1296, %v1310
  %v1324 = vmax.f32 %v1312, 0.0
  %v1325 = vmax.f32 %v1313, 0.0
  %v1326 = vmax.f32 %v1314, 0.0
  %v1327 = vmax.f32 %v1315, 0.0
  %v1328 = vmax.f32 %v1316, 0.0
  %v1329 = vmax.f32 %v1317, 0.0
  %v1330 = vmax.f32 %v1318, 0.0
  %v1331 = vmax.f32 %v1319, 0.0
  %v1332 = vmax.f32 %v1320, 0.0
  %v1333 = vmax.f32 %v1321, 0.0
  %v1334 = vmax.f32 %v1322, 0.0
  %v1335 = vmax.f32 %v1323, 0.0
  %v1336 = vmin.f32 %v1324, 6.0
  %v1337 = vmin.f32 %v1325, 6.0
  %v1338 = vmin.f32 %v1326, 6.0
  %v1339 = vmin.f32 %v1327, 6.0
  %v1340 = vmin.f32 %v1328, 6.0
  %v1341 = vmin.f32 %v1329, 6.0
  %v1342 = vmin.f32 %v1330, 6.0
  %v1343 = vmin.f32 %v1331, 6.0
  %v1344 = vmin.f32 %v1332, 6.0
  %v1345 = vmin.f32 %v1333, 6.0
  %v1346 = vmin.f32 %v1334, 6.0
  %v1347 = vmin.f32 %v1335, 6.0
  %v1348 = vld [vmem:[%s3] sm:$0xff]
  %1350 = vset.pattern.permute.xlu0 0
  %1351 = vperm.xlu0 %1350, %v370
  %v1352 = vpop.permute.xlu0 %1351
  %vm1354 = vcmask 195584
  %v1356 = vsel %vm1354, %v1348, 0
  %1358 = vmatprep.subr.mxu0 %v1337
  %1359 = vmatpush1.msra.mxu0 %v1336
  %1360 = vmatprep.subr.mxu0 %v1341
  %1361 = vmatpush1.msra.mxu0 %v1340
  %1362 = vmatprep.subr.mxu0 %v1345
  %1363 = vmatpush1.msra.mxu0 %v1344
  %1364 = vmatprep.subr.mxu0 0.0
  %1365 = vmatpush1.msra.mxu0 0.0
  %1366 = vmatprep.subr.mxu0 0.0
  %1367 = vmatpush1.msra.mxu0 0.0
  %1368 = vmatprep.subr.mxu0 0.0
  %1369 = vmatpush1.msra.mxu0 0.0
  %1370 = vmatprep.subr.mxu0 0.0
  %1371 = vmatpush1.msra.mxu0 0.0
  %1372 = vmatprep.subr.mxu0 0.0
  %1373 = vmatpush1.msra.mxu0 0.0
  %1374 = vmatprep.subr.mxu0 0.0
  %1375 = vmatpush1.msra.mxu0 0.0
  %1376 = vmatprep.subr.mxu0 0.0
  %1377 = vmatpush1.msra.mxu0 0.0
  %1378 = vmatprep.subr.mxu0 0.0
  %1379 = vmatpush1.msra.mxu0 0.0
  %1380 = vmatprep.subr.mxu0 0.0
  %1381 = vmatpush1.msra.mxu0 0.0
  %1382 = vmatprep.subr.mxu0 0.0
  %1383 = vmatpush1.msra.mxu0 0.0
  %1384 = vmatprep.subr.mxu0 0.0
  %1385 = vmatpush1.msra.mxu0 0.0
  %1386 = vmatprep.subr.mxu0 0.0
  %1387 = vmatpush1.msra.mxu0 0.0
  %1388 = vmatprep.subr.mxu0 0.0
  %1389 = vmatpush1.msra.mxu0 0.0
  %1390 = vmatprep.subr.mxu0 0.0
  %1391 = vmatpush1.msra.mxu0 0.0
  %1392 = vmatprep.subr.mxu0 0.0
  %1393 = vmatpush1.msra.mxu0 0.0
  %1394 = vmatprep.subr.mxu0 0.0
  %1395 = vmatpush1.msra.mxu0 0.0
  %1396 = vmatprep.subr.mxu0 0.0
  %1397 = vmatpush1.msra.mxu0 0.0
  %1398 = vmatprep.subr.mxu0 0.0
  %1399 = vmatpush1.msra.mxu0 0.0
  %1400 = vmatprep.subr.mxu0 0.0
  %1401 = vmatpush1.msra.mxu0 0.0
  %1402 = vmatprep.subr.mxu0 0.0
  %1403 = vmatpush1.msra.mxu0 0.0
  %1404 = vmatprep.subr.mxu0 0.0
  %1405 = vmatpush1.msra.mxu0 0.0
  %1406 = vmatprep.subr.mxu0 0.0
  %1407 = vmatpush1.msra.mxu0 0.0
  %1408 = vmatprep.subr.mxu0 0.0
  %1409 = vmatpush1.msra.mxu0 0.0
  %1410 = vmatprep.subr.mxu0 0.0
  %1411 = vmatpush1.msra.mxu0 0.0
  %1412 = vmatprep.subr.mxu0 0.0
  %1413 = vmatpush1.msra.mxu0 0.0
  %1414 = vmatprep.subr.mxu0 0.0
  %1415 = vmatpush1.msra.mxu0 0.0
  %1416 = vmatprep.subr.mxu0 0.0
  %1417 = vmatpush1.msra.mxu0 0.0
  %1418 = vmatprep.subr.mxu0 0.0
  %1419 = vmatpush1.msra.mxu0 0.0
  %1420 = vmatprep.subr.mxu0 0.0
  %1421 = vmatpush1.msra.mxu0 0.0
  %1422 = vmatprep.mubr.f32.mxu0 0.0
  %1423 = vmatmul.mubr.f32.gmra.mrb[0].mxu0 %v1356
  %v1424 = vpop.f32.mrb[0].mxu0
  %v1425 = vadd.f32 %v1352, %v1424
  %v1426 = vpop.f32.mrb[0].mxu0
  %v1427 = vadd.f32 %v1352, %v1426
  %1428 = vdwg.mxu0
  %1429 = vmatprep.subr.mxu0 %v1339
  %1430 = vmatpush1.msra.mxu0 %v1338
  %1431 = vmatprep.subr.mxu0 %v1343
  %1432 = vmatpush1.msra.mxu0 %v1342
  %1433 = vmatprep.subr.mxu0 %v1347
  %1434 = vmatpush1.msra.mxu0 %v1346
  %1435 = vmatprep.subr.mxu0 0.0
  %1436 = vmatpush1.msra.mxu0 0.0
  %1437 = vmatprep.subr.mxu0 0.0
  %1438 = vmatpush1.msra.mxu0 0.0
  %1439 = vmatprep.subr.mxu0 0.0
  %1440 = vmatpush1.msra.mxu0 0.0
  %1441 = vmatprep.subr.mxu0 0.0
  %1442 = vmatpush1.msra.mxu0 0.0
  %1443 = vmatprep.subr.mxu0 0.0
  %1444 = vmatpush1.msra.mxu0 0.0
  %1445 = vmatprep.subr.mxu0 0.0
  %1446 = vmatpush1.msra.mxu0 0.0
  %1447 = vmatprep.subr.mxu0 0.0
  %1448 = vmatpush1.msra.mxu0 0.0
  %1449 = vmatprep.subr.mxu0 0.0
  %1450 = vmatpush1.msra.mxu0 0.0
  %1451 = vmatprep.subr.mxu0 0.0
  %1452 = vmatpush1.msra.mxu0 0.0
  %1453 = vmatprep.subr.mxu0 0.0
  %1454 = vmatpush1.msra.mxu0 0.0
  %1455 = vmatprep.subr.mxu0 0.0
  %1456 = vmatpush1.msra.mxu0 0.0
  %1457 = vmatprep.subr.mxu0 0.0
  %1458 = vmatpush1.msra.mxu0 0.0
  %1459 = vmatprep.subr.mxu0 0.0
  %1460 = vmatpush1.msra.mxu0 0.0
  %1461 = vmatprep.subr.mxu0 0.0
  %1462 = vmatpush1.msra.mxu0 0.0
  %1463 = vmatprep.subr.mxu0 0.0
  %1464 = vmatpush1.msra.mxu0 0.0
  %1465 = vmatprep.subr.mxu0 0.0
  %1466 = vmatpush1.msra.mxu0 0.0
  %1467 = vmatprep.subr.mxu0 0.0
  %1468 = vmatpush1.msra.mxu0 0.0
  %1469 = vmatprep.subr.mxu0 0.0
  %1470 = vmatpush1.msra.mxu0 0.0
  %1471 = vmatprep.subr.mxu0 0.0
  %1472 = vmatpush1.msra.mxu0 0.0
  %1473 = vmatprep.subr.mxu0 0.0
  %1474 = vmatpush1.msra.mxu0 0.0
  %1475 = vmatprep.subr.mxu0 0.0
  %1476 = vmatpush1.msra.mxu0 0.0
  %1477 = vmatprep.subr.mxu0 0.0
  %1478 = vmatpush1.msra.mxu0 0.0
  %1479 = vmatprep.subr.mxu0 0.0
  %1480 = vmatpush1.msra.mxu0 0.0
  %1481 = vmatprep.subr.mxu0 0.0
  %1482 = vmatpush1.msra.mxu0 0.0
  %1483 = vmatprep.subr.mxu0 0.0
  %1484 = vmatpush1.msra.mxu0 0.0
  %1485 = vmatprep.subr.mxu0 0.0
  %1486 = vmatpush1.msra.mxu0 0.0
  %1487 = vmatprep.subr.mxu0 0.0
  %1488 = vmatpush1.msra.mxu0 0.0
  %1489 = vmatprep.subr.mxu0 0.0
  %1490 = vmatpush1.msra.mxu0 0.0
  %1491 = vmatprep.subr.mxu0 0.0
  %1492 = vmatpush1.msra.mxu0 0.0
  %1493 = vmatprep.mubr.f32.mxu0 0.0
  %1494 = vmatmul.mubr.f32.gmra.mrb[0].mxu0 %v1356
  %v1495 = vpop.f32.mrb[0].mxu0
  %v1496 = vadd.f32 %v1352, %v1495
  %v1497 = vpop.f32.mrb[0].mxu0
  %v1498 = vadd.f32 %v1352, %v1497
  %1499 = vdwg.mxu0
  %v1500 = vadd.f32 %v1425, %v360
  %v1501 = vadd.f32 %v1427, %v361
  %v1502 = vadd.f32 %v1496, %v362
  %v1503 = vadd.f32 %v1498, %v363
  %v1504 = vld [vmem:[%s5] sm:$0xff]
  %v1505 = vld [vmem:[%s5 + $0x8] sm:$0xff]
  %v1506 = vld [vmem:[%s5 + $0x10] sm:$0xff]
  %v1507 = vld [vmem:[%s5 + $0x18] sm:$0xff]
  %v1508 = vld [vmem:[%s5 + $0x20] sm:$0xff]
  %v1509 = vld [vmem:[%s5 + $0x28] sm:$0xff]
  %1511 = vset.pattern.permute.xlu0 0
  %1512 = vperm.xlu0 %1511, %v1504
  %v1513 = vpop.permute.xlu0 %1512
  %1516 = vset.pattern.permute.xlu0 0
  %1517 = vperm.xlu0 %1516, %v1505
  %v1518 = vpop.permute.xlu0 %1517
  %1521 = vset.pattern.permute.xlu0 0
  %1522 = vperm.xlu0 %1521, %v1506
  %v1523 = vpop.permute.xlu0 %1522
  %1526 = vset.pattern.permute.xlu0 0
  %1527 = vperm.xlu0 %1526, %v1507
  %v1528 = vpop.permute.xlu0 %1527
  %1531 = vset.pattern.permute.xlu0 0
  %1532 = vperm.xlu0 %1531, %v1508
  %v1533 = vpop.permute.xlu0 %1532
  %1536 = vset.pattern.permute.xlu0 0
  %1537 = vperm.xlu0 %1536, %v1509
  %v1538 = vpop.permute.xlu0 %1537
  %v1540 = vlaneseq
  %v1541 = vshrl.u32 %v1540, 7
  %v1542 = vsub.s32 0, %v1541
  %v1543 = vrot.slane %v1500, %v1542
  %v1544 = vlaneseq
  %v1545 = vshrl.u32 %v1544, 7
  %v1546 = vsub.s32 0, %v1545
  %v1547 = vrot.slane %v1501, %v1546
  %v1548 = vlaneseq
  %v1549 = vshrl.u32 %v1548, 7
  %v1550 = vsub.s32 0, %v1549
  %v1551 = vrot.slane %v1502, %v1550
  %v1552 = vlaneseq
  %v1553 = vshrl.u32 %v1552, 7
  %v1554 = vsub.s32 0, %v1553
  %v1555 = vrot.slane %v1503, %v1554
  %v1556 = vmul.f32 %v1513, %v1543
  %v1557 = vmul.f32 %v1513, %v1547
  %v1558 = vmul.f32 %v1513, %v1551
  %v1559 = vmul.f32 %v1513, %v1555
  %v1560 = vmul.f32 %v1518, %v1543
  %v1561 = vmul.f32 %v1518, %v1547
  %v1562 = vmul.f32 %v1518, %v1551
  %v1563 = vmul.f32 %v1518, %v1555
  %v1564 = vmul.f32 %v1523, %v1543
  %v1565 = vmul.f32 %v1523, %v1547
  %v1566 = vmul.f32 %v1523, %v1551
  %v1567 = vmul.f32 %v1523, %v1555
  %v1568 = vmul.f32 %v1528, %v1543
  %v1569 = vmul.f32 %v1528, %v1547
  %v1570 = vmul.f32 %v1528, %v1551
  %v1571 = vmul.f32 %v1528, %v1555
  %v1572 = vmul.f32 %v1533, %v1543
  %v1573 = vmul.f32 %v1533, %v1547
  %v1574 = vmul.f32 %v1533, %v1551
  %v1575 = vmul.f32 %v1533, %v1555
  %v1576 = vmul.f32 %v1538, %v1543
  %v1577 = vmul.f32 %v1538, %v1547
  %v1578 = vmul.f32 %v1538, %v1551
  %v1579 = vmul.f32 %v1538, %v1555
  %1580 = vset.pattern.permute.xlu0 1
  %1581 = vperm.xlu0 %1580, %v1504
  %v1582 = vpop.permute.xlu0 %1581
  %1584 = vset.pattern.permute.xlu0 1
  %1585 = vperm.xlu0 %1584, %v1505
  %v1586 = vpop.permute.xlu0 %1585
  %1588 = vset.pattern.permute.xlu0 1
  %1589 = vperm.xlu0 %1588, %v1506
  %v1590 = vpop.permute.xlu0 %1589
  %1592 = vset.pattern.permute.xlu0 1
  %1593 = vperm.xlu0 %1592, %v1507
  %v1594 = vpop.permute.xlu0 %1593
  %1596 = vset.pattern.permute.xlu0 1
  %1597 = vperm.xlu0 %1596, %v1508
  %v1598 = vpop.permute.xlu0 %1597
  %1600 = vset.pattern.permute.xlu0 1
  %1601 = vperm.xlu0 %1600, %v1509
  %v1602 = vpop.permute.xlu0 %1601
  %v1604 = vlaneseq
  %v1605 = vshrl.u32 %v1604, 7
  %v1606 = vsub.s32 1, %v1605
  %v1607 = vrot.slane %v1500, %v1606
  %v1608 = vlaneseq
  %v1609 = vshrl.u32 %v1608, 7
  %v1610 = vsub.s32 1, %v1609
  %v1611 = vrot.slane %v1501, %v1610
  %v1612 = vlaneseq
  %v1613 = vshrl.u32 %v1612, 7
  %v1614 = vsub.s32 1, %v1613
  %v1615 = vrot.slane %v1502, %v1614
  %v1616 = vlaneseq
  %v1617 = vshrl.u32 %v1616, 7
  %v1618 = vsub.s32 1, %v1617
  %v1619 = vrot.slane %v1503, %v1618
  %v1620 = vmul.f32 %v1582, %v1607
  %v1621 = vmul.f32 %v1582, %v1611
  %v1622 = vmul.f32 %v1582, %v1615
  %v1623 = vmul.f32 %v1582, %v1619
  %v1624 = vmul.f32 %v1586, %v1607
  %v1625 = vmul.f32 %v1586, %v1611
  %v1626 = vmul.f32 %v1586, %v1615
  %v1627 = vmul.f32 %v1586, %v1619
  %v1628 = vmul.f32 %v1590, %v1607
  %v1629 = vmul.f32 %v1590, %v1611
  %v1630 = vmul.f32 %v1590, %v1615
  %v1631 = vmul.f32 %v1590, %v1619
  %v1632 = vmul.f32 %v1594, %v1607
  %v1633 = vmul.f32 %v1594, %v1611
  %v1634 = vmul.f32 %v1594, %v1615
  %v1635 = vmul.f32 %v1594, %v1619
  %v1636 = vmul.f32 %v1598, %v1607
  %v1637 = vmul.f32 %v1598, %v1611
  %v1638 = vmul.f32 %v1598, %v1615
  %v1639 = vmul.f32 %v1598, %v1619
  %v1640 = vmul.f32 %v1602, %v1607
  %v1641 = vmul.f32 %v1602, %v1611
  %v1642 = vmul.f32 %v1602, %v1615
  %v1643 = vmul.f32 %v1602, %v1619
  %v1644 = vadd.f32 %v1556, %v1620
  %v1645 = vadd.f32 %v1557, %v1621
  %v1646 = vadd.f32 %v1558, %v1622
  %v1647 = vadd.f32 %v1559, %v1623
  %v1648 = vadd.f32 %v1560, %v1624
  %v1649 = vadd.f32 %v1561, %v1625
  %v1650 = vadd.f32 %v1562, %v1626
  %v1651 = vadd.f32 %v1563, %v1627
  %v1652 = vadd.f32 %v1564, %v1628
  %v1653 = vadd.f32 %v1565, %v1629
  %v1654 = vadd.f32 %v1566, %v1630
  %v1655 = vadd.f32 %v1567, %v1631
  %v1656 = vadd.f32 %v1568, %v1632
  %v1657 = vadd.f32 %v1569, %v1633
  %v1658 = vadd.f32 %v1570, %v1634
  %v1659 = vadd.f32 %v1571, %v1635
  %v1660 = vadd.f32 %v1572, %v1636
  %v1661 = vadd.f32 %v1573, %v1637
  %v1662 = vadd.f32 %v1574, %v1638
  %v1663 = vadd.f32 %v1575, %v1639
  %v1664 = vadd.f32 %v1576, %v1640
  %v1665 = vadd.f32 %v1577, %v1641
  %v1666 = vadd.f32 %v1578, %v1642
  %v1667 = vadd.f32 %v1579, %v1643
  %1668 = vset.pattern.permute.xlu0 2
  %1669 = vperm.xlu0 %1668, %v1504
  %v1670 = vpop.permute.xlu0 %1669
  %1672 = vset.pattern.permute.xlu0 2
  %1673 = vperm.xlu0 %1672, %v1505
  %v1674 = vpop.permute.xlu0 %1673
  %1676 = vset.pattern.permute.xlu0 2
  %1677 = vperm.xlu0 %1676, %v1506
  %v1678 = vpop.permute.xlu0 %1677
  %1680 = vset.pattern.permute.xlu0 2
  %1681 = vperm.xlu0 %1680, %v1507
  %v1682 = vpop.permute.xlu0 %1681
  %1684 = vset.pattern.permute.xlu0 2
  %1685 = vperm.xlu0 %1684, %v1508
  %v1686 = vpop.permute.xlu0 %1685
  %1688 = vset.pattern.permute.xlu0 2
  %1689 = vperm.xlu0 %1688, %v1509
  %v1690 = vpop.permute.xlu0 %1689
  %v1692 = vlaneseq
  %v1693 = vshrl.u32 %v1692, 7
  %v1694 = vsub.s32 2, %v1693
  %v1695 = vrot.slane %v1500, %v1694
  %v1696 = vlaneseq
  %v1697 = vshrl.u32 %v1696, 7
  %v1698 = vsub.s32 2, %v1697
  %v1699 = vrot.slane %v1501, %v1698
  %v1700 = vlaneseq
  %v1701 = vshrl.u32 %v1700, 7
  %v1702 = vsub.s32 2, %v1701
  %v1703 = vrot.slane %v1502, %v1702
  %v1704 = vlaneseq
  %v1705 = vshrl.u32 %v1704, 7
  %v1706 = vsub.s32 2, %v1705
  %v1707 = vrot.slane %v1503, %v1706
  %v1708 = vmul.f32 %v1670, %v1695
  %v1709 = vmul.f32 %v1670, %v1699
  %v1710 = vmul.f32 %v1670, %v1703
  %v1711 = vmul.f32 %v1670, %v1707
  %v1712 = vmul.f32 %v1674, %v1695
  %v1713 = vmul.f32 %v1674, %v1699
  %v1714 = vmul.f32 %v1674, %v1703
  %v1715 = vmul.f32 %v1674, %v1707
  %v1716 = vmul.f32 %v1678, %v1695
  %v1717 = vmul.f32 %v1678, %v1699
  %v1718 = vmul.f32 %v1678, %v1703
  %v1719 = vmul.f32 %v1678, %v1707
  %v1720 = vmul.f32 %v1682, %v1695
  %v1721 = vmul.f32 %v1682, %v1699
  %v1722 = vmul.f32 %v1682, %v1703
  %v1723 = vmul.f32 %v1682, %v1707
  %v1724 = vmul.f32 %v1686, %v1695
  %v1725 = vmul.f32 %v1686, %v1699
  %v1726 = vmul.f32 %v1686, %v1703
  %v1727 = vmul.f32 %v1686, %v1707
  %v1728 = vmul.f32 %v1690, %v1695
  %v1729 = vmul.f32 %v1690, %v1699
  %v1730 = vmul.f32 %v1690, %v1703
  %v1731 = vmul.f32 %v1690, %v1707
  %v1732 = vadd.f32 %v1644, %v1708
  %v1733 = vadd.f32 %v1645, %v1709
  %v1734 = vadd.f32 %v1646, %v1710
  %v1735 = vadd.f32 %v1647, %v1711
  %v1736 = vadd.f32 %v1648, %v1712
  %v1737 = vadd.f32 %v1649, %v1713
  %v1738 = vadd.f32 %v1650, %v1714
  %v1739 = vadd.f32 %v1651, %v1715
  %v1740 = vadd.f32 %v1652, %v1716
  %v1741 = vadd.f32 %v1653, %v1717
  %v1742 = vadd.f32 %v1654, %v1718
  %v1743 = vadd.f32 %v1655, %v1719
  %v1744 = vadd.f32 %v1656, %v1720
  %v1745 = vadd.f32 %v1657, %v1721
  %v1746 = vadd.f32 %v1658, %v1722
  %v1747 = vadd.f32 %v1659, %v1723
  %v1748 = vadd.f32 %v1660, %v1724
  %v1749 = vadd.f32 %v1661, %v1725
  %v1750 = vadd.f32 %v1662, %v1726
  %v1751 = vadd.f32 %v1663, %v1727
  %v1752 = vadd.f32 %v1664, %v1728
  %v1753 = vadd.f32 %v1665, %v1729
  %v1754 = vadd.f32 %v1666, %v1730
  %v1755 = vadd.f32 %v1667, %v1731
  %1756 = vset.pattern.permute.xlu0 3
  %1757 = vperm.xlu0 %1756, %v1504
  %v1758 = vpop.permute.xlu0 %1757
  %1760 = vset.pattern.permute.xlu0 3
  %1761 = vperm.xlu0 %1760, %v1505
  %v1762 = vpop.permute.xlu0 %1761
  %1764 = vset.pattern.permute.xlu0 3
  %1765 = vperm.xlu0 %1764, %v1506
  %v1766 = vpop.permute.xlu0 %1765
  %1768 = vset.pattern.permute.xlu0 3
  %1769 = vperm.xlu0 %1768, %v1507
  %v1770 = vpop.permute.xlu0 %1769
  %1772 = vset.pattern.permute.xlu0 3
  %1773 = vperm.xlu0 %1772, %v1508
  %v1774 = vpop.permute.xlu0 %1773
  %1776 = vset.pattern.permute.xlu0 3
  %1777 = vperm.xlu0 %1776, %v1509
  %v1778 = vpop.permute.xlu0 %1777
  %v1780 = vlaneseq
  %v1781 = vshrl.u32 %v1780, 7
  %v1782 = vsub.s32 3, %v1781
  %v1783 = vrot.slane %v1500, %v1782
  %v1784 = vlaneseq
  %v1785 = vshrl.u32 %v1784, 7
  %v1786 = vsub.s32 3, %v1785
  %v1787 = vrot.slane %v1501, %v1786
  %v1788 = vlaneseq
  %v1789 = vshrl.u32 %v1788, 7
  %v1790 = vsub.s32 3, %v1789
  %v1791 = vrot.slane %v1502, %v1790
  %v1792 = vlaneseq
  %v1793 = vshrl.u32 %v1792, 7
  %v1794 = vsub.s32 3, %v1793
  %v1795 = vrot.slane %v1503, %v1794
  %v1796 = vmul.f32 %v1758, %v1783
  %v1797 = vmul.f32 %v1758, %v1787
  %v1798 = vmul.f32 %v1758, %v1791
  %v1799 = vmul.f32 %v1758, %v1795
  %v1800 = vmul.f32 %v1762, %v1783
  %v1801 = vmul.f32 %v1762, %v1787
  %v1802 = vmul.f32 %v1762, %v1791
  %v1803 = vmul.f32 %v1762, %v1795
  %v1804 = vmul.f32 %v1766, %v1783
  %v1805 = vmul.f32 %v1766, %v1787
  %v1806 = vmul.f32 %v1766, %v1791
  %v1807 = vmul.f32 %v1766, %v1795
  %v1808 = vmul.f32 %v1770, %v1783
  %v1809 = vmul.f32 %v1770, %v1787
  %v1810 = vmul.f32 %v1770, %v1791
  %v1811 = vmul.f32 %v1770, %v1795
  %v1812 = vmul.f32 %v1774, %v1783
  %v1813 = vmul.f32 %v1774, %v1787
  %v1814 = vmul.f32 %v1774, %v1791
  %v1815 = vmul.f32 %v1774, %v1795
  %v1816 = vmul.f32 %v1778, %v1783
  %v1817 = vmul.f32 %v1778, %v1787
  %v1818 = vmul.f32 %v1778, %v1791
  %v1819 = vmul.f32 %v1778, %v1795
  %v1820 = vadd.f32 %v1732, %v1796
  %v1821 = vadd.f32 %v1733, %v1797
  %v1822 = vadd.f32 %v1734, %v1798
  %v1823 = vadd.f32 %v1735, %v1799
  %v1824 = vadd.f32 %v1736, %v1800
  %v1825 = vadd.f32 %v1737, %v1801
  %v1826 = vadd.f32 %v1738, %v1802
  %v1827 = vadd.f32 %v1739, %v1803
  %v1828 = vadd.f32 %v1740, %v1804
  %v1829 = vadd.f32 %v1741, %v1805
  %v1830 = vadd.f32 %v1742, %v1806
  %v1831 = vadd.f32 %v1743, %v1807
  %v1832 = vadd.f32 %v1744, %v1808
  %v1833 = vadd.f32 %v1745, %v1809
  %v1834 = vadd.f32 %v1746, %v1810
  %v1835 = vadd.f32 %v1747, %v1811
  %v1836 = vadd.f32 %v1748, %v1812
  %v1837 = vadd.f32 %v1749, %v1813
  %v1838 = vadd.f32 %v1750, %v1814
  %v1839 = vadd.f32 %v1751, %v1815
  %v1840 = vadd.f32 %v1752, %v1816
  %v1841 = vadd.f32 %v1753, %v1817
  %v1842 = vadd.f32 %v1754, %v1818
  %v1843 = vadd.f32 %v1755, %v1819
  %1844 = vset.pattern.permute.xlu0 4
  %1845 = vperm.xlu0 %1844, %v1504
  %v1846 = vpop.permute.xlu0 %1845
  %1848 = vset.pattern.permute.xlu0 4
  %1849 = vperm.xlu0 %1848, %v1505
  %v1850 = vpop.permute.xlu0 %1849
  %1852 = vset.pattern.permute.xlu0 4
  %1853 = vperm.xlu0 %1852, %v1506
  %v1854 = vpop.permute.xlu0 %1853
  %1856 = vset.pattern.permute.xlu0 4
  %1857 = vperm.xlu0 %1856, %v1507
  %v1858 = vpop.permute.xlu0 %1857
  %1860 = vset.pattern.permute.xlu0 4
  %1861 = vperm.xlu0 %1860, %v1508
  %v1862 = vpop.permute.xlu0 %1861
  %1864 = vset.pattern.permute.xlu0 4
  %1865 = vperm.xlu0 %1864, %v1509
  %v1866 = vpop.permute.xlu0 %1865
  %v1868 = vlaneseq
  %v1869 = vshrl.u32 %v1868, 7
  %v1870 = vsub.s32 4, %v1869
  %v1871 = vrot.slane %v1500, %v1870
  %v1872 = vlaneseq
  %v1873 = vshrl.u32 %v1872, 7
  %v1874 = vsub.s32 4, %v1873
  %v1875 = vrot.slane %v1501, %v1874
  %v1876 = vlaneseq
  %v1877 = vshrl.u32 %v1876, 7
  %v1878 = vsub.s32 4, %v1877
  %v1879 = vrot.slane %v1502, %v1878
  %v1880 = vlaneseq
  %v1881 = vshrl.u32 %v1880, 7
  %v1882 = vsub.s32 4, %v1881
  %v1883 = vrot.slane %v1503, %v1882
  %v1884 = vmul.f32 %v1846, %v1871
  %v1885 = vmul.f32 %v1846, %v1875
  %v1886 = vmul.f32 %v1846, %v1879
  %v1887 = vmul.f32 %v1846, %v1883
  %v1888 = vmul.f32 %v1850, %v1871
  %v1889 = vmul.f32 %v1850, %v1875
  %v1890 = vmul.f32 %v1850, %v1879
  %v1891 = vmul.f32 %v1850, %v1883
  %v1892 = vmul.f32 %v1854, %v1871
  %v1893 = vmul.f32 %v1854, %v1875
  %v1894 = vmul.f32 %v1854, %v1879
  %v1895 = vmul.f32 %v1854, %v1883
  %v1896 = vmul.f32 %v1858, %v1871
  %v1897 = vmul.f32 %v1858, %v1875
  %v1898 = vmul.f32 %v1858, %v1879
  %v1899 = vmul.f32 %v1858, %v1883
  %v1900 = vmul.f32 %v1862, %v1871
  %v1901 = vmul.f32 %v1862, %v1875
  %v1902 = vmul.f32 %v1862, %v1879
  %v1903 = vmul.f32 %v1862, %v1883
  %v1904 = vmul.f32 %v1866, %v1871
  %v1905 = vmul.f32 %v1866, %v1875
  %v1906 = vmul.f32 %v1866, %v1879
  %v1907 = vmul.f32 %v1866, %v1883
  %v1908 = vadd.f32 %v1820, %v1884
  %v1909 = vadd.f32 %v1821, %v1885
  %v1910 = vadd.f32 %v1822, %v1886
  %v1911 = vadd.f32 %v1823, %v1887
  %v1912 = vadd.f32 %v1824, %v1888
  %v1913 = vadd.f32 %v1825, %v1889
  %v1914 = vadd.f32 %v1826, %v1890
  %v1915 = vadd.f32 %v1827, %v1891
  %v1916 = vadd.f32 %v1828, %v1892
  %v1917 = vadd.f32 %v1829, %v1893
  %v1918 = vadd.f32 %v1830, %v1894
  %v1919 = vadd.f32 %v1831, %v1895
  %v1920 = vadd.f32 %v1832, %v1896
  %v1921 = vadd.f32 %v1833, %v1897
  %v1922 = vadd.f32 %v1834, %v1898
  %v1923 = vadd.f32 %v1835, %v1899
  %v1924 = vadd.f32 %v1836, %v1900
  %v1925 = vadd.f32 %v1837, %v1901
  %v1926 = vadd.f32 %v1838, %v1902
  %v1927 = vadd.f32 %v1839, %v1903
  %v1928 = vadd.f32 %v1840, %v1904
  %v1929 = vadd.f32 %v1841, %v1905
  %v1930 = vadd.f32 %v1842, %v1906
  %v1931 = vadd.f32 %v1843, %v1907
  %1932 = vset.pattern.permute.xlu0 5
  %1933 = vperm.xlu0 %1932, %v1504
  %v1934 = vpop.permute.xlu0 %1933
  %1936 = vset.pattern.permute.xlu0 5
  %1937 = vperm.xlu0 %1936, %v1505
  %v1938 = vpop.permute.xlu0 %1937
  %1940 = vset.pattern.permute.xlu0 5
  %1941 = vperm.xlu0 %1940, %v1506
  %v1942 = vpop.permute.xlu0 %1941
  %1944 = vset.pattern.permute.xlu0 5
  %1945 = vperm.xlu0 %1944, %v1507
  %v1946 = vpop.permute.xlu0 %1945
  %1948 = vset.pattern.permute.xlu0 5
  %1949 = vperm.xlu0 %1948, %v1508
  %v1950 = vpop.permute.xlu0 %1949
  %1952 = vset.pattern.permute.xlu0 5
  %1953 = vperm.xlu0 %1952, %v1509
  %v1954 = vpop.permute.xlu0 %1953
  %v1956 = vlaneseq
  %v1957 = vshrl.u32 %v1956, 7
  %v1958 = vsub.s32 5, %v1957
  %v1959 = vrot.slane %v1500, %v1958
  %v1960 = vlaneseq
  %v1961 = vshrl.u32 %v1960, 7
  %v1962 = vsub.s32 5, %v1961
  %v1963 = vrot.slane %v1501, %v1962
  %v1964 = vlaneseq
  %v1965 = vshrl.u32 %v1964, 7
  %v1966 = vsub.s32 5, %v1965
  %v1967 = vrot.slane %v1502, %v1966
  %v1968 = vlaneseq
  %v1969 = vshrl.u32 %v1968, 7
  %v1970 = vsub.s32 5, %v1969
  %v1971 = vrot.slane %v1503, %v1970
  %v1972 = vmul.f32 %v1934, %v1959
  %v1973 = vmul.f32 %v1934, %v1963
  %v1974 = vmul.f32 %v1934, %v1967
  %v1975 = vmul.f32 %v1934, %v1971
  %v1976 = vmul.f32 %v1938, %v1959
  %v1977 = vmul.f32 %v1938, %v1963
  %v1978 = vmul.f32 %v1938, %v1967
  %v1979 = vmul.f32 %v1938, %v1971
  %v1980 = vmul.f32 %v1942, %v1959
  %v1981 = vmul.f32 %v1942, %v1963
  %v1982 = vmul.f32 %v1942, %v1967
  %v1983 = vmul.f32 %v1942, %v1971
  %v1984 = vmul.f32 %v1946, %v1959
  %v1985 = vmul.f32 %v1946, %v1963
  %v1986 = vmul.f32 %v1946, %v1967
  %v1987 = vmul.f32 %v1946, %v1971
  %v1988 = vmul.f32 %v1950, %v1959
  %v1989 = vmul.f32 %v1950, %v1963
  %v1990 = vmul.f32 %v1950, %v1967
  %v1991 = vmul.f32 %v1950, %v1971
  %v1992 = vmul.f32 %v1954, %v1959
  %v1993 = vmul.f32 %v1954, %v1963
  %v1994 = vmul.f32 %v1954, %v1967
  %v1995 = vmul.f32 %v1954, %v1971
  %v1996 = vadd.f32 %v1908, %v1972
  %v1997 = vadd.f32 %v1909, %v1973
  %v1998 = vadd.f32 %v1910, %v1974
  %v1999 = vadd.f32 %v1911, %v1975
  %v2000 = vadd.f32 %v1912, %v1976
  %v2001 = vadd.f32 %v1913, %v1977
  %v2002 = vadd.f32 %v1914, %v1978
  %v2003 = vadd.f32 %v1915, %v1979
  %v2004 = vadd.f32 %v1916, %v1980
  %v2005 = vadd.f32 %v1917, %v1981
  %v2006 = vadd.f32 %v1918, %v1982
  %v2007 = vadd.f32 %v1919, %v1983
  %v2008 = vadd.f32 %v1920, %v1984
  %v2009 = vadd.f32 %v1921, %v1985
  %v2010 = vadd.f32 %v1922, %v1986
  %v2011 = vadd.f32 %v1923, %v1987
  %v2012 = vadd.f32 %v1924, %v1988
  %v2013 = vadd.f32 %v1925, %v1989
  %v2014 = vadd.f32 %v1926, %v1990
  %v2015 = vadd.f32 %v1927, %v1991
  %v2016 = vadd.f32 %v1928, %v1992
  %v2017 = vadd.f32 %v1929, %v1993
  %v2018 = vadd.f32 %v1930, %v1994
  %v2019 = vadd.f32 %v1931, %v1995
  %2020 = vset.pattern.permute.xlu0 6
  %2021 = vperm.xlu0 %2020, %v1504
  %v2022 = vpop.permute.xlu0 %2021
  %2024 = vset.pattern.permute.xlu0 6
  %2025 = vperm.xlu0 %2024, %v1505
  %v2026 = vpop.permute.xlu0 %2025
  %2028 = vset.pattern.permute.xlu0 6
  %2029 = vperm.xlu0 %2028, %v1506
  %v2030 = vpop.permute.xlu0 %2029
  %2032 = vset.pattern.permute.xlu0 6
  %2033 = vperm.xlu0 %2032, %v1507
  %v2034 = vpop.permute.xlu0 %2033
  %2036 = vset.pattern.permute.xlu0 6
  %2037 = vperm.xlu0 %2036, %v1508
  %v2038 = vpop.permute.xlu0 %2037
  %2040 = vset.pattern.permute.xlu0 6
  %2041 = vperm.xlu0 %2040, %v1509
  %v2042 = vpop.permute.xlu0 %2041
  %v2044 = vlaneseq
  %v2045 = vshrl.u32 %v2044, 7
  %v2046 = vsub.s32 6, %v2045
  %v2047 = vrot.slane %v1500, %v2046
  %v2048 = vlaneseq
  %v2049 = vshrl.u32 %v2048, 7
  %v2050 = vsub.s32 6, %v2049
  %v2051 = vrot.slane %v1501, %v2050
  %v2052 = vlaneseq
  %v2053 = vshrl.u32 %v2052, 7
  %v2054 = vsub.s32 6, %v2053
  %v2055 = vrot.slane %v1502, %v2054
  %v2056 = vlaneseq
  %v2057 = vshrl.u32 %v2056, 7
  %v2058 = vsub.s32 6, %v2057
  %v2059 = vrot.slane %v1503, %v2058
  %v2060 = vmul.f32 %v2022, %v2047
  %v2061 = vmul.f32 %v2022, %v2051
  %v2062 = vmul.f32 %v2022, %v2055
  %v2063 = vmul.f32 %v2022, %v2059
  %v2064 = vmul.f32 %v2026, %v2047
  %v2065 = vmul.f32 %v2026, %v2051
  %v2066 = vmul.f32 %v2026, %v2055
  %v2067 = vmul.f32 %v2026, %v2059
  %v2068 = vmul.f32 %v2030, %v2047
  %v2069 = vmul.f32 %v2030, %v2051
  %v2070 = vmul.f32 %v2030, %v2055
  %v2071 = vmul.f32 %v2030, %v2059
  %v2072 = vmul.f32 %v2034, %v2047
  %v2073 = vmul.f32 %v2034, %v2051
  %v2074 = vmul.f32 %v2034, %v2055
  %v2075 = vmul.f32 %v2034, %v2059
  %v2076 = vmul.f32 %v2038, %v2047
  %v2077 = vmul.f32 %v2038, %v2051
  %v2078 = vmul.f32 %v2038, %v2055
  %v2079 = vmul.f32 %v2038, %v2059
  %v2080 = vmul.f32 %v2042, %v2047
  %v2081 = vmul.f32 %v2042, %v2051
  %v2082 = vmul.f32 %v2042, %v2055
  %v2083 = vmul.f32 %v2042, %v2059
  %v2084 = vadd.f32 %v1996, %v2060
  %v2085 = vadd.f32 %v1997, %v2061
  %v2086 = vadd.f32 %v1998, %v2062
  %v2087 = vadd.f32 %v1999, %v2063
  %v2088 = vadd.f32 %v2000, %v2064
  %v2089 = vadd.f32 %v2001, %v2065
  %v2090 = vadd.f32 %v2002, %v2066
  %v2091 = vadd.f32 %v2003, %v2067
  %v2092 = vadd.f32 %v2004, %v2068
  %v2093 = vadd.f32 %v2005, %v2069
  %v2094 = vadd.f32 %v2006, %v2070
  %v2095 = vadd.f32 %v2007, %v2071
  %v2096 = vadd.f32 %v2008, %v2072
  %v2097 = vadd.f32 %v2009, %v2073
  %v2098 = vadd.f32 %v2010, %v2074
  %v2099 = vadd.f32 %v2011, %v2075
  %v2100 = vadd.f32 %v2012, %v2076
  %v2101 = vadd.f32 %v2013, %v2077
  %v2102 = vadd.f32 %v2014, %v2078
  %v2103 = vadd.f32 %v2015, %v2079
  %v2104 = vadd.f32 %v2016, %v2080
  %v2105 = vadd.f32 %v2017, %v2081
  %v2106 = vadd.f32 %v2018, %v2082
  %v2107 = vadd.f32 %v2019, %v2083
  %2108 = vset.pattern.permute.xlu0 7
  %2109 = vperm.xlu0 %2108, %v1504
  %v2110 = vpop.permute.xlu0 %2109
  %2112 = vset.pattern.permute.xlu0 7
  %2113 = vperm.xlu0 %2112, %v1505
  %v2114 = vpop.permute.xlu0 %2113
  %2116 = vset.pattern.permute.xlu0 7
  %2117 = vperm.xlu0 %2116, %v1506
  %v2118 = vpop.permute.xlu0 %2117
  %2120 = vset.pattern.permute.xlu0 7
  %2121 = vperm.xlu0 %2120, %v1507
  %v2122 = vpop.permute.xlu0 %2121
  %2124 = vset.pattern.permute.xlu0 7
  %2125 = vperm.xlu0 %2124, %v1508
  %v2126 = vpop.permute.xlu0 %2125
  %2128 = vset.pattern.permute.xlu0 7
  %2129 = vperm.xlu0 %2128, %v1509
  %v2130 = vpop.permute.xlu0 %2129
  %v2132 = vlaneseq
  %v2133 = vshrl.u32 %v2132, 7
  %v2134 = vsub.s32 7, %v2133
  %v2135 = vrot.slane %v1500, %v2134
  %v2136 = vlaneseq
  %v2137 = vshrl.u32 %v2136, 7
  %v2138 = vsub.s32 7, %v2137
  %v2139 = vrot.slane %v1501, %v2138
  %v2140 = vlaneseq
  %v2141 = vshrl.u32 %v2140, 7
  %v2142 = vsub.s32 7, %v2141
  %v2143 = vrot.slane %v1502, %v2142
  %v2144 = vlaneseq
  %v2145 = vshrl.u32 %v2144, 7
  %v2146 = vsub.s32 7, %v2145
  %v2147 = vrot.slane %v1503, %v2146
  %v2148 = vmul.f32 %v2110, %v2135
  %v2149 = vmul.f32 %v2110, %v2139
  %v2150 = vmul.f32 %v2110, %v2143
  %v2151 = vmul.f32 %v2110, %v2147
  %v2152 = vmul.f32 %v2114, %v2135
  %v2153 = vmul.f32 %v2114, %v2139
  %v2154 = vmul.f32 %v2114, %v2143
  %v2155 = vmul.f32 %v2114, %v2147
  %v2156 = vmul.f32 %v2118, %v2135
  %v2157 = vmul.f32 %v2118, %v2139
  %v2158 = vmul.f32 %v2118, %v2143
  %v2159 = vmul.f32 %v2118, %v2147
  %v2160 = vmul.f32 %v2122, %v2135
  %v2161 = vmul.f32 %v2122, %v2139
  %v2162 = vmul.f32 %v2122, %v2143
  %v2163 = vmul.f32 %v2122, %v2147
  %v2164 = vmul.f32 %v2126, %v2135
  %v2165 = vmul.f32 %v2126, %v2139
  %v2166 = vmul.f32 %v2126, %v2143
  %v2167 = vmul.f32 %v2126, %v2147
  %v2168 = vmul.f32 %v2130, %v2135
  %v2169 = vmul.f32 %v2130, %v2139
  %v2170 = vmul.f32 %v2130, %v2143
  %v2171 = vmul.f32 %v2130, %v2147
  %v2172 = vadd.f32 %v2084, %v2148
  %v2173 = vadd.f32 %v2085, %v2149
  %v2174 = vadd.f32 %v2086, %v2150
  %v2175 = vadd.f32 %v2087, %v2151
  %v2176 = vadd.f32 %v2088, %v2152
  %v2177 = vadd.f32 %v2089, %v2153
  %v2178 = vadd.f32 %v2090, %v2154
  %v2179 = vadd.f32 %v2091, %v2155
  %v2180 = vadd.f32 %v2092, %v2156
  %v2181 = vadd.f32 %v2093, %v2157
  %v2182 = vadd.f32 %v2094, %v2158
  %v2183 = vadd.f32 %v2095, %v2159
  %v2184 = vadd.f32 %v2096, %v2160
  %v2185 = vadd.f32 %v2097, %v2161
  %v2186 = vadd.f32 %v2098, %v2162
  %v2187 = vadd.f32 %v2099, %v2163
  %v2188 = vadd.f32 %v2100, %v2164
  %v2189 = vadd.f32 %v2101, %v2165
  %v2190 = vadd.f32 %v2102, %v2166
  %v2191 = vadd.f32 %v2103, %v2167
  %v2192 = vadd.f32 %v2104, %v2168
  %v2193 = vadd.f32 %v2105, %v2169
  %v2194 = vadd.f32 %v2106, %v2170
  %v2195 = vadd.f32 %v2107, %v2171
  %v2196 = vld [vmem:[%s8] sm:$0xff]
  %v2197 = vld [vmem:[%s8 + $0x8] sm:$0xff]
  %v2198 = vld [vmem:[%s8 + $0x10] sm:$0xff]
  %v2199 = vld [vmem:[%s8 + $0x18] sm:$0xff]
  %v2200 = vld [vmem:[%s8 + $0x20] sm:$0xff]
  %v2201 = vld [vmem:[%s8 + $0x28] sm:$0xff]
  %v2202 = vld [vmem:[%s8 + $0x30] sm:$0xff]
  %v2203 = vld [vmem:[%s8 + $0x38] sm:$0xff]
  %v2204 = vld [vmem:[%s8 + $0x40] sm:$0xff]
  %v2205 = vld [vmem:[%s8 + $0x48] sm:$0xff]
  %v2206 = vld [vmem:[%s8 + $0x50] sm:$0xff]
  %v2207 = vld [vmem:[%s8 + $0x58] sm:$0xff]
  %v2208 = vld [vmem:[%s8 + $0x60] sm:$0xff]
  %2210 = vset.pattern.permute.xlu0 0
  %2211 = vperm.xlu0 %2210, %v2196
  %v2212 = vpop.permute.xlu0 %2211
  %2215 = vset.pattern.permute.xlu0 0
  %2216 = vperm.xlu0 %2215, %v2197
  %v2217 = vpop.permute.xlu0 %2216
  %2220 = vset.pattern.permute.xlu0 0
  %2221 = vperm.xlu0 %2220, %v2198
  %v2222 = vpop.permute.xlu0 %2221
  %2225 = vset.pattern.permute.xlu0 0
  %2226 = vperm.xlu0 %2225, %v2199
  %v2227 = vpop.permute.xlu0 %2226
  %2230 = vset.pattern.permute.xlu0 0
  %2231 = vperm.xlu0 %2230, %v2200
  %v2232 = vpop.permute.xlu0 %2231
  %2235 = vset.pattern.permute.xlu0 0
  %2236 = vperm.xlu0 %2235, %v2201
  %v2237 = vpop.permute.xlu0 %2236
  %v2239 = vadd.f32 %v2172, %v2212
  %v2240 = vadd.f32 %v2173, %v2212
  %v2241 = vadd.f32 %v2174, %v2212
  %v2242 = vadd.f32 %v2175, %v2212
  %v2243 = vadd.f32 %v2176, %v2217
  %v2244 = vadd.f32 %v2177, %v2217
  %v2245 = vadd.f32 %v2178, %v2217
  %v2246 = vadd.f32 %v2179, %v2217
  %v2247 = vadd.f32 %v2180, %v2222
  %v2248 = vadd.f32 %v2181, %v2222
  %v2249 = vadd.f32 %v2182, %v2222
  %v2250 = vadd.f32 %v2183, %v2222
  %v2251 = vadd.f32 %v2184, %v2227
  %v2252 = vadd.f32 %v2185, %v2227
  %v2253 = vadd.f32 %v2186, %v2227
  %v2254 = vadd.f32 %v2187, %v2227
  %v2255 = vadd.f32 %v2188, %v2232
  %v2256 = vadd.f32 %v2189, %v2232
  %v2257 = vadd.f32 %v2190, %v2232
  %v2258 = vadd.f32 %v2191, %v2232
  %v2259 = vadd.f32 %v2192, %v2237
  %v2260 = vadd.f32 %v2193, %v2237
  %v2261 = vadd.f32 %v2194, %v2237
  %v2262 = vadd.f32 %v2195, %v2237
  %v2263 = vmax.f32 %v2239, 0.0
  %v2264 = vmax.f32 %v2240, 0.0
  %v2265 = vmax.f32 %v2241, 0.0
  %v2266 = vmax.f32 %v2242, 0.0
  %v2267 = vmax.f32 %v2243, 0.0
  %v2268 = vmax.f32 %v2244, 0.0
  %v2269 = vmax.f32 %v2245, 0.0
  %v2270 = vmax.f32 %v2246, 0.0
  %v2271 = vmax.f32 %v2247, 0.0
  %v2272 = vmax.f32 %v2248, 0.0
  %v2273 = vmax.f32 %v2249, 0.0
  %v2274 = vmax.f32 %v2250, 0.0
  %v2275 = vmax.f32 %v2251, 0.0
  %v2276 = vmax.f32 %v2252, 0.0
  %v2277 = vmax.f32 %v2253, 0.0
  %v2278 = vmax.f32 %v2254, 0.0
  %v2279 = vmax.f32 %v2255, 0.0
  %v2280 = vmax.f32 %v2256, 0.0
  %v2281 = vmax.f32 %v2257, 0.0
  %v2282 = vmax.f32 %v2258, 0.0
  %v2283 = vmax.f32 %v2259, 0.0
  %v2284 = vmax.f32 %v2260, 0.0
  %v2285 = vmax.f32 %v2261, 0.0
  %v2286 = vmax.f32 %v2262, 0.0
  %v2287 = vmin.f32 %v2263, 6.0
  %v2288 = vmin.f32 %v2264, 6.0
  %v2289 = vmin.f32 %v2265, 6.0
  %v2290 = vmin.f32 %v2266, 6.0
  %v2291 = vmin.f32 %v2267, 6.0
  %v2292 = vmin.f32 %v2268, 6.0
  %v2293 = vmin.f32 %v2269, 6.0
  %v2294 = vmin.f32 %v2270, 6.0
  %v2295 = vmin.f32 %v2271, 6.0
  %v2296 = vmin.f32 %v2272, 6.0
  %v2297 = vmin.f32 %v2273, 6.0
  %v2298 = vmin.f32 %v2274, 6.0
  %v2299 = vmin.f32 %v2275, 6.0
  %v2300 = vmin.f32 %v2276, 6.0
  %v2301 = vmin.f32 %v2277, 6.0
  %v2302 = vmin.f32 %v2278, 6.0
  %v2303 = vmin.f32 %v2279, 6.0
  %v2304 = vmin.f32 %v2280, 6.0
  %v2305 = vmin.f32 %v2281, 6.0
  %v2306 = vmin.f32 %v2282, 6.0
  %v2307 = vmin.f32 %v2283, 6.0
  %v2308 = vmin.f32 %v2284, 6.0
  %v2309 = vmin.f32 %v2285, 6.0
  %v2310 = vmin.f32 %v2286, 6.0
  %2311 = vrot.lane.b32.xlu0 %v2287, 17
  %v2312 = vpop.permute.xlu0 %2311
  %2313 = vrot.lane.b32.xlu0 %v2291, 17
  %v2314 = vpop.permute.xlu0 %2313
  %2315 = vrot.lane.b32.xlu0 %v2295, 17
  %v2316 = vpop.permute.xlu0 %2315
  %2317 = vrot.lane.b32.xlu0 %v2299, 17
  %v2318 = vpop.permute.xlu0 %2317
  %2319 = vrot.lane.b32.xlu0 %v2303, 17
  %v2320 = vpop.permute.xlu0 %2319
  %2321 = vrot.lane.b32.xlu0 %v2307, 17
  %v2322 = vpop.permute.xlu0 %2321
  %2323 = vrot.lane.b32.xlu0 %v2288, 17
  %v2324 = vpop.permute.xlu0 %2323
  %2325 = vrot.lane.b32.xlu0 %v2292, 17
  %v2326 = vpop.permute.xlu0 %2325
  %2327 = vrot.lane.b32.xlu0 %v2296, 17
  %v2328 = vpop.permute.xlu0 %2327
  %2329 = vrot.lane.b32.xlu0 %v2300, 17
  %v2330 = vpop.permute.xlu0 %2329
  %2331 = vrot.lane.b32.xlu0 %v2304, 17
  %v2332 = vpop.permute.xlu0 %2331
  %2333 = vrot.lane.b32.xlu0 %v2308, 17
  %v2334 = vpop.permute.xlu0 %2333
  %2335 = vrot.lane.b32.xlu0 %v2289, 17
  %v2336 = vpop.permute.xlu0 %2335
  %2337 = vrot.lane.b32.xlu0 %v2293, 17
  %v2338 = vpop.permute.xlu0 %2337
  %2339 = vrot.lane.b32.xlu0 %v2297, 17
  %v2340 = vpop.permute.xlu0 %2339
  %2341 = vrot.lane.b32.xlu0 %v2301, 17
  %v2342 = vpop.permute.xlu0 %2341
  %2343 = vrot.lane.b32.xlu0 %v2305, 17
  %v2344 = vpop.permute.xlu0 %2343
  %2345 = vrot.lane.b32.xlu0 %v2309, 17
  %v2346 = vpop.permute.xlu0 %2345
  %2347 = vrot.lane.b32.xlu0 %v2290, 17
  %v2348 = vpop.permute.xlu0 %2347
  %2349 = vrot.lane.b32.xlu0 %v2294, 17
  %v2350 = vpop.permute.xlu0 %2349
  %2351 = vrot.lane.b32.xlu0 %v2298, 17
  %v2352 = vpop.permute.xlu0 %2351
  %2353 = vrot.lane.b32.xlu0 %v2302, 17
  %v2354 = vpop.permute.xlu0 %2353
  %2355 = vrot.lane.b32.xlu0 %v2306, 17
  %v2356 = vpop.permute.xlu0 %2355
  %2357 = vrot.lane.b32.xlu0 %v2310, 17
  %v2358 = vpop.permute.xlu0 %2357
  %v2359 = vsel %vm595, %v2336, %v2348
  %v2360 = vsel %vm595, %v2338, %v2350
  %v2361 = vsel %vm595, %v2340, %v2352
  %v2362 = vsel %vm595, %v2342, %v2354
  %v2363 = vsel %vm595, %v2344, %v2356
  %v2364 = vsel %vm595, %v2346, %v2358
  %v2365 = vsel %vm595, %v2324, %v2336
  %v2366 = vsel %vm595, %v2326, %v2338
  %v2367 = vsel %vm595, %v2328, %v2340
  %v2368 = vsel %vm595, %v2330, %v2342
  %v2369 = vsel %vm595, %v2332, %v2344
  %v2370 = vsel %vm595, %v2334, %v2346
  %v2371 = vsel %vm595, %v2312, %v2324
  %v2372 = vsel %vm595, %v2314, %v2326
  %v2373 = vsel %vm595, %v2316, %v2328
  %v2374 = vsel %vm595, %v2318, %v2330
  %v2375 = vsel %vm595, %v2320, %v2332
  %v2376 = vsel %vm595, %v2322, %v2334
  %v2377 = vsel %vm595, %v2348, %v2312
  %v2378 = vsel %vm595, %v2350, %v2314
  %v2379 = vsel %vm595, %v2352, %v2316
  %v2380 = vsel %vm595, %v2354, %v2318
  %v2381 = vsel %vm595, %v2356, %v2320
  %v2382 = vsel %vm595, %v2358, %v2322
  %v2383 = vld [vmem:[%s6] sm:$0xff]
  %v2384 = vld [vmem:[%s6 + $0x8] sm:$0xff]
  %v2385 = vld [vmem:[%s6 + $0x10] sm:$0xff]
  %v2386 = vld [vmem:[%s6 + $0x18] sm:$0xff]
  %v2387 = vld [vmem:[%s6 + $0x20] sm:$0xff]
  %v2388 = vld [vmem:[%s6 + $0x28] sm:$0xff]
  %2390 = vset.pattern.permute.xlu0 0
  %2391 = vperm.xlu0 %2390, %v2383
  %v2392 = vpop.permute.xlu0 %2391
  %2395 = vset.pattern.permute.xlu0 0
  %2396 = vperm.xlu0 %2395, %v2384
  %v2397 = vpop.permute.xlu0 %2396
  %2400 = vset.pattern.permute.xlu0 0
  %2401 = vperm.xlu0 %2400, %v2385
  %v2402 = vpop.permute.xlu0 %2401
  %2405 = vset.pattern.permute.xlu0 0
  %2406 = vperm.xlu0 %2405, %v2386
  %v2407 = vpop.permute.xlu0 %2406
  %2410 = vset.pattern.permute.xlu0 0
  %2411 = vperm.xlu0 %2410, %v2387
  %v2412 = vpop.permute.xlu0 %2411
  %2415 = vset.pattern.permute.xlu0 0
  %2416 = vperm.xlu0 %2415, %v2388
  %v2417 = vpop.permute.xlu0 %2416
  %v2419 = vmul.f32 %v2377, %v2392
  %v2420 = vmul.f32 %v2371, %v2392
  %v2421 = vmul.f32 %v2365, %v2392
  %v2422 = vmul.f32 %v2359, %v2392
  %v2423 = vmul.f32 %v2378, %v2397
  %v2424 = vmul.f32 %v2372, %v2397
  %v2425 = vmul.f32 %v2366, %v2397
  %v2426 = vmul.f32 %v2360, %v2397
  %v2427 = vmul.f32 %v2379, %v2402
  %v2428 = vmul.f32 %v2373, %v2402
  %v2429 = vmul.f32 %v2367, %v2402
  %v2430 = vmul.f32 %v2361, %v2402
  %v2431 = vmul.f32 %v2380, %v2407
  %v2432 = vmul.f32 %v2374, %v2407
  %v2433 = vmul.f32 %v2368, %v2407
  %v2434 = vmul.f32 %v2362, %v2407
  %v2435 = vmul.f32 %v2381, %v2412
  %v2436 = vmul.f32 %v2375, %v2412
  %v2437 = vmul.f32 %v2369, %v2412
  %v2438 = vmul.f32 %v2363, %v2412
  %v2439 = vmul.f32 %v2382, %v2417
  %v2440 = vmul.f32 %v2376, %v2417
  %v2441 = vmul.f32 %v2370, %v2417
  %v2442 = vmul.f32 %v2364, %v2417
  %v2443 = vmul.f32 %v2419, %v638
  %v2444 = vmul.f32 %v2420, %v639
  %v2445 = vmul.f32 %v2421, %v640
  %v2446 = vmul.f32 %v2422, %v641
  %v2447 = vmul.f32 %v2423, %v638
  %v2448 = vmul.f32 %v2424, %v639
  %v2449 = vmul.f32 %v2425, %v640
  %v2450 = vmul.f32 %v2426, %v641
  %v2451 = vmul.f32 %v2427, %v638
  %v2452 = vmul.f32 %v2428, %v639
  %v2453 = vmul.f32 %v2429, %v640
  %v2454 = vmul.f32 %v2430, %v641
  %v2455 = vmul.f32 %v2431, %v638
  %v2456 = vmul.f32 %v2432, %v639
  %v2457 = vmul.f32 %v2433, %v640
  %v2458 = vmul.f32 %v2434, %v641
  %v2459 = vmul.f32 %v2435, %v638
  %v2460 = vmul.f32 %v2436, %v639
  %v2461 = vmul.f32 %v2437, %v640
  %v2462 = vmul.f32 %v2438, %v641
  %v2463 = vmul.f32 %v2439, %v638
  %v2464 = vmul.f32 %v2440, %v639
  %v2465 = vmul.f32 %v2441, %v640
  %v2466 = vmul.f32 %v2442, %v641
  %2467 = vrot.lane.b32.xlu0 %v2287, 16
  %v2468 = vpop.permute.xlu0 %2467
  %2469 = vrot.lane.b32.xlu0 %v2291, 16
  %v2470 = vpop.permute.xlu0 %2469
  %2471 = vrot.lane.b32.xlu0 %v2295, 16
  %v2472 = vpop.permute.xlu0 %2471
  %2473 = vrot.lane.b32.xlu0 %v2299, 16
  %v2474 = vpop.permute.xlu0 %2473
  %2475 = vrot.lane.b32.xlu0 %v2303, 16
  %v2476 = vpop.permute.xlu0 %2475
  %2477 = vrot.lane.b32.xlu0 %v2307, 16
  %v2478 = vpop.permute.xlu0 %2477
  %2479 = vrot.lane.b32.xlu0 %v2288, 16
  %v2480 = vpop.permute.xlu0 %2479
  %2481 = vrot.lane.b32.xlu0 %v2292, 16
  %v2482 = vpop.permute.xlu0 %2481
  %2483 = vrot.lane.b32.xlu0 %v2296, 16
  %v2484 = vpop.permute.xlu0 %2483
  %2485 = vrot.lane.b32.xlu0 %v2300, 16
  %v2486 = vpop.permute.xlu0 %2485
  %2487 = vrot.lane.b32.xlu0 %v2304, 16
  %v2488 = vpop.permute.xlu0 %2487
  %2489 = vrot.lane.b32.xlu0 %v2308, 16
  %v2490 = vpop.permute.xlu0 %2489
  %2491 = vrot.lane.b32.xlu0 %v2289, 16
  %v2492 = vpop.permute.xlu0 %2491
  %2493 = vrot.lane.b32.xlu0 %v2293, 16
  %v2494 = vpop.permute.xlu0 %2493
  %2495 = vrot.lane.b32.xlu0 %v2297, 16
  %v2496 = vpop.permute.xlu0 %2495
  %2497 = vrot.lane.b32.xlu0 %v2301, 16
  %v2498 = vpop.permute.xlu0 %2497
  %2499 = vrot.lane.b32.xlu0 %v2305, 16
  %v2500 = vpop.permute.xlu0 %2499
  %2501 = vrot.lane.b32.xlu0 %v2309, 16
  %v2502 = vpop.permute.xlu0 %2501
  %2503 = vrot.lane.b32.xlu0 %v2290, 16
  %v2504 = vpop.permute.xlu0 %2503
  %2505 = vrot.lane.b32.xlu0 %v2294, 16
  %v2506 = vpop.permute.xlu0 %2505
  %2507 = vrot.lane.b32.xlu0 %v2298, 16
  %v2508 = vpop.permute.xlu0 %2507
  %2509 = vrot.lane.b32.xlu0 %v2302, 16
  %v2510 = vpop.permute.xlu0 %2509
  %2511 = vrot.lane.b32.xlu0 %v2306, 16
  %v2512 = vpop.permute.xlu0 %2511
  %2513 = vrot.lane.b32.xlu0 %v2310, 16
  %v2514 = vpop.permute.xlu0 %2513
  %v2515 = vsel %vm678, %v2492, %v2504
  %v2516 = vsel %vm678, %v2494, %v2506
  %v2517 = vsel %vm678, %v2496, %v2508
  %v2518 = vsel %vm678, %v2498, %v2510
  %v2519 = vsel %vm678, %v2500, %v2512
  %v2520 = vsel %vm678, %v2502, %v2514
  %v2521 = vsel %vm678, %v2480, %v2492
  %v2522 = vsel %vm678, %v2482, %v2494
  %v2523 = vsel %vm678, %v2484, %v2496
  %v2524 = vsel %vm678, %v2486, %v2498
  %v2525 = vsel %vm678, %v2488, %v2500
  %v2526 = vsel %vm678, %v2490, %v2502
  %v2527 = vsel %vm678, %v2468, %v2480
  %v2528 = vsel %vm678, %v2470, %v2482
  %v2529 = vsel %vm678, %v2472, %v2484
  %v2530 = vsel %vm678, %v2474, %v2486
  %v2531 = vsel %vm678, %v2476, %v2488
  %v2532 = vsel %vm678, %v2478, %v2490
  %v2533 = vsel %vm678, %v2504, %v2468
  %v2534 = vsel %vm678, %v2506, %v2470
  %v2535 = vsel %vm678, %v2508, %v2472
  %v2536 = vsel %vm678, %v2510, %v2474
  %v2537 = vsel %vm678, %v2512, %v2476
  %v2538 = vsel %vm678, %v2514, %v2478
  %2539 = vset.pattern.permute.xlu0 1
  %2540 = vperm.xlu0 %2539, %v2383
  %v2541 = vpop.permute.xlu0 %2540
  %2543 = vset.pattern.permute.xlu0 1
  %2544 = vperm.xlu0 %2543, %v2384
  %v2545 = vpop.permute.xlu0 %2544
  %2547 = vset.pattern.permute.xlu0 1
  %2548 = vperm.xlu0 %2547, %v2385
  %v2549 = vpop.permute.xlu0 %2548
  %2551 = vset.pattern.permute.xlu0 1
  %2552 = vperm.xlu0 %2551, %v2386
  %v2553 = vpop.permute.xlu0 %2552
  %2555 = vset.pattern.permute.xlu0 1
  %2556 = vperm.xlu0 %2555, %v2387
  %v2557 = vpop.permute.xlu0 %2556
  %2559 = vset.pattern.permute.xlu0 1
  %2560 = vperm.xlu0 %2559, %v2388
  %v2561 = vpop.permute.xlu0 %2560
  %v2563 = vmul.f32 %v2533, %v2541
  %v2564 = vmul.f32 %v2527, %v2541
  %v2565 = vmul.f32 %v2521, %v2541
  %v2566 = vmul.f32 %v2515, %v2541
  %v2567 = vmul.f32 %v2534, %v2545
  %v2568 = vmul.f32 %v2528, %v2545
  %v2569 = vmul.f32 %v2522, %v2545
  %v2570 = vmul.f32 %v2516, %v2545
  %v2571 = vmul.f32 %v2535, %v2549
  %v2572 = vmul.f32 %v2529, %v2549
  %v2573 = vmul.f32 %v2523, %v2549
  %v2574 = vmul.f32 %v2517, %v2549
  %v2575 = vmul.f32 %v2536, %v2553
  %v2576 = vmul.f32 %v2530, %v2553
  %v2577 = vmul.f32 %v2524, %v2553
  %v2578 = vmul.f32 %v2518, %v2553
  %v2579 = vmul.f32 %v2537, %v2557
  %v2580 = vmul.f32 %v2531, %v2557
  %v2581 = vmul.f32 %v2525, %v2557
  %v2582 = vmul.f32 %v2519, %v2557
  %v2583 = vmul.f32 %v2538, %v2561
  %v2584 = vmul.f32 %v2532, %v2561
  %v2585 = vmul.f32 %v2526, %v2561
  %v2586 = vmul.f32 %v2520, %v2561
  %v2587 = vmul.f32 %v2563, %v555
  %v2588 = vmul.f32 %v2564, %v556
  %v2589 = vmul.f32 %v2565, %v557
  %v2590 = vmul.f32 %v2566, %v558
  %v2591 = vmul.f32 %v2567, %v555
  %v2592 = vmul.f32 %v2568, %v556
  %v2593 = vmul.f32 %v2569, %v557
  %v2594 = vmul.f32 %v2570, %v558
  %v2595 = vmul.f32 %v2571, %v555
  %v2596 = vmul.f32 %v2572, %v556
  %v2597 = vmul.f32 %v2573, %v557
  %v2598 = vmul.f32 %v2574, %v558
  %v2599 = vmul.f32 %v2575, %v555
  %v2600 = vmul.f32 %v2576, %v556
  %v2601 = vmul.f32 %v2577, %v557
  %v2602 = vmul.f32 %v2578, %v558
  %v2603 = vmul.f32 %v2579, %v555
  %v2604 = vmul.f32 %v2580, %v556
  %v2605 = vmul.f32 %v2581, %v557
  %v2606 = vmul.f32 %v2582, %v558
  %v2607 = vmul.f32 %v2583, %v555
  %v2608 = vmul.f32 %v2584, %v556
  %v2609 = vmul.f32 %v2585, %v557
  %v2610 = vmul.f32 %v2586, %v558
  %v2611 = vadd.f32 %v2443, %v2587
  %v2612 = vadd.f32 %v2444, %v2588
  %v2613 = vadd.f32 %v2445, %v2589
  %v2614 = vadd.f32 %v2446, %v2590
  %v2615 = vadd.f32 %v2447, %v2591
  %v2616 = vadd.f32 %v2448, %v2592
  %v2617 = vadd.f32 %v2449, %v2593
  %v2618 = vadd.f32 %v2450, %v2594
  %v2619 = vadd.f32 %v2451, %v2595
  %v2620 = vadd.f32 %v2452, %v2596
  %v2621 = vadd.f32 %v2453, %v2597
  %v2622 = vadd.f32 %v2454, %v2598
  %v2623 = vadd.f32 %v2455, %v2599
  %v2624 = vadd.f32 %v2456, %v2600
  %v2625 = vadd.f32 %v2457, %v2601
  %v2626 = vadd.f32 %v2458, %v2602
  %v2627 = vadd.f32 %v2459, %v2603
  %v2628 = vadd.f32 %v2460, %v2604
  %v2629 = vadd.f32 %v2461, %v2605
  %v2630 = vadd.f32 %v2462, %v2606
  %v2631 = vadd.f32 %v2463, %v2607
  %v2632 = vadd.f32 %v2464, %v2608
  %v2633 = vadd.f32 %v2465, %v2609
  %v2634 = vadd.f32 %v2466, %v2610
  %2635 = vrot.lane.b32.xlu0 %v2287, 15
  %v2636 = vpop.permute.xlu0 %2635
  %2637 = vrot.lane.b32.xlu0 %v2291, 15
  %v2638 = vpop.permute.xlu0 %2637
  %2639 = vrot.lane.b32.xlu0 %v2295, 15
  %v2640 = vpop.permute.xlu0 %2639
  %2641 = vrot.lane.b32.xlu0 %v2299, 15
  %v2642 = vpop.permute.xlu0 %2641
  %2643 = vrot.lane.b32.xlu0 %v2303, 15
  %v2644 = vpop.permute.xlu0 %2643
  %2645 = vrot.lane.b32.xlu0 %v2307, 15
  %v2646 = vpop.permute.xlu0 %2645
  %2647 = vrot.lane.b32.xlu0 %v2288, 15
  %v2648 = vpop.permute.xlu0 %2647
  %2649 = vrot.lane.b32.xlu0 %v2292, 15
  %v2650 = vpop.permute.xlu0 %2649
  %2651 = vrot.lane.b32.xlu0 %v2296, 15
  %v2652 = vpop.permute.xlu0 %2651
  %2653 = vrot.lane.b32.xlu0 %v2300, 15
  %v2654 = vpop.permute.xlu0 %2653
  %2655 = vrot.lane.b32.xlu0 %v2304, 15
  %v2656 = vpop.permute.xlu0 %2655
  %2657 = vrot.lane.b32.xlu0 %v2308, 15
  %v2658 = vpop.permute.xlu0 %2657
  %2659 = vrot.lane.b32.xlu0 %v2289, 15
  %v2660 = vpop.permute.xlu0 %2659
  %2661 = vrot.lane.b32.xlu0 %v2293, 15
  %v2662 = vpop.permute.xlu0 %2661
  %2663 = vrot.lane.b32.xlu0 %v2297, 15
  %v2664 = vpop.permute.xlu0 %2663
  %2665 = vrot.lane.b32.xlu0 %v2301, 15
  %v2666 = vpop.permute.xlu0 %2665
  %2667 = vrot.lane.b32.xlu0 %v2305, 15
  %v2668 = vpop.permute.xlu0 %2667
  %2669 = vrot.lane.b32.xlu0 %v2309, 15
  %v2670 = vpop.permute.xlu0 %2669
  %2671 = vrot.lane.b32.xlu0 %v2290, 15
  %v2672 = vpop.permute.xlu0 %2671
  %2673 = vrot.lane.b32.xlu0 %v2294, 15
  %v2674 = vpop.permute.xlu0 %2673
  %2675 = vrot.lane.b32.xlu0 %v2298, 15
  %v2676 = vpop.permute.xlu0 %2675
  %2677 = vrot.lane.b32.xlu0 %v2302, 15
  %v2678 = vpop.permute.xlu0 %2677
  %2679 = vrot.lane.b32.xlu0 %v2306, 15
  %v2680 = vpop.permute.xlu0 %2679
  %2681 = vrot.lane.b32.xlu0 %v2310, 15
  %v2682 = vpop.permute.xlu0 %2681
  %v2683 = vsel %vm763, %v2660, %v2672
  %v2684 = vsel %vm763, %v2662, %v2674
  %v2685 = vsel %vm763, %v2664, %v2676
  %v2686 = vsel %vm763, %v2666, %v2678
  %v2687 = vsel %vm763, %v2668, %v2680
  %v2688 = vsel %vm763, %v2670, %v2682
  %v2689 = vsel %vm763, %v2648, %v2660
  %v2690 = vsel %vm763, %v2650, %v2662
  %v2691 = vsel %vm763, %v2652, %v2664
  %v2692 = vsel %vm763, %v2654, %v2666
  %v2693 = vsel %vm763, %v2656, %v2668
  %v2694 = vsel %vm763, %v2658, %v2670
  %v2695 = vsel %vm763, %v2636, %v2648
  %v2696 = vsel %vm763, %v2638, %v2650
  %v2697 = vsel %vm763, %v2640, %v2652
  %v2698 = vsel %vm763, %v2642, %v2654
  %v2699 = vsel %vm763, %v2644, %v2656
  %v2700 = vsel %vm763, %v2646, %v2658
  %v2701 = vsel %vm763, %v2672, %v2636
  %v2702 = vsel %vm763, %v2674, %v2638
  %v2703 = vsel %vm763, %v2676, %v2640
  %v2704 = vsel %vm763, %v2678, %v2642
  %v2705 = vsel %vm763, %v2680, %v2644
  %v2706 = vsel %vm763, %v2682, %v2646
  %2707 = vset.pattern.permute.xlu0 2
  %2708 = vperm.xlu0 %2707, %v2383
  %v2709 = vpop.permute.xlu0 %2708
  %2711 = vset.pattern.permute.xlu0 2
  %2712 = vperm.xlu0 %2711, %v2384
  %v2713 = vpop.permute.xlu0 %2712
  %2715 = vset.pattern.permute.xlu0 2
  %2716 = vperm.xlu0 %2715, %v2385
  %v2717 = vpop.permute.xlu0 %2716
  %2719 = vset.pattern.permute.xlu0 2
  %2720 = vperm.xlu0 %2719, %v2386
  %v2721 = vpop.permute.xlu0 %2720
  %2723 = vset.pattern.permute.xlu0 2
  %2724 = vperm.xlu0 %2723, %v2387
  %v2725 = vpop.permute.xlu0 %2724
  %2727 = vset.pattern.permute.xlu0 2
  %2728 = vperm.xlu0 %2727, %v2388
  %v2729 = vpop.permute.xlu0 %2728
  %v2731 = vmul.f32 %v2701, %v2709
  %v2732 = vmul.f32 %v2695, %v2709
  %v2733 = vmul.f32 %v2689, %v2709
  %v2734 = vmul.f32 %v2683, %v2709
  %v2735 = vmul.f32 %v2702, %v2713
  %v2736 = vmul.f32 %v2696, %v2713
  %v2737 = vmul.f32 %v2690, %v2713
  %v2738 = vmul.f32 %v2684, %v2713
  %v2739 = vmul.f32 %v2703, %v2717
  %v2740 = vmul.f32 %v2697, %v2717
  %v2741 = vmul.f32 %v2691, %v2717
  %v2742 = vmul.f32 %v2685, %v2717
  %v2743 = vmul.f32 %v2704, %v2721
  %v2744 = vmul.f32 %v2698, %v2721
  %v2745 = vmul.f32 %v2692, %v2721
  %v2746 = vmul.f32 %v2686, %v2721
  %v2747 = vmul.f32 %v2705, %v2725
  %v2748 = vmul.f32 %v2699, %v2725
  %v2749 = vmul.f32 %v2693, %v2725
  %v2750 = vmul.f32 %v2687, %v2725
  %v2751 = vmul.f32 %v2706, %v2729
  %v2752 = vmul.f32 %v2700, %v2729
  %v2753 = vmul.f32 %v2694, %v2729
  %v2754 = vmul.f32 %v2688, %v2729
  %v2755 = vmul.f32 %v2731, %v800
  %v2756 = vmul.f32 %v2732, %v801
  %v2757 = vmul.f32 %v2733, %v802
  %v2758 = vmul.f32 %v2734, %v803
  %v2759 = vmul.f32 %v2735, %v800
  %v2760 = vmul.f32 %v2736, %v801
  %v2761 = vmul.f32 %v2737, %v802
  %v2762 = vmul.f32 %v2738, %v803
  %v2763 = vmul.f32 %v2739, %v800
  %v2764 = vmul.f32 %v2740, %v801
  %v2765 = vmul.f32 %v2741, %v802
  %v2766 = vmul.f32 %v2742, %v803
  %v2767 = vmul.f32 %v2743, %v800
  %v2768 = vmul.f32 %v2744, %v801
  %v2769 = vmul.f32 %v2745, %v802
  %v2770 = vmul.f32 %v2746, %v803
  %v2771 = vmul.f32 %v2747, %v800
  %v2772 = vmul.f32 %v2748, %v801
  %v2773 = vmul.f32 %v2749, %v802
  %v2774 = vmul.f32 %v2750, %v803
  %v2775 = vmul.f32 %v2751, %v800
  %v2776 = vmul.f32 %v2752, %v801
  %v2777 = vmul.f32 %v2753, %v802
  %v2778 = vmul.f32 %v2754, %v803
  %v2779 = vadd.f32 %v2611, %v2755
  %v2780 = vadd.f32 %v2612, %v2756
  %v2781 = vadd.f32 %v2613, %v2757
  %v2782 = vadd.f32 %v2614, %v2758
  %v2783 = vadd.f32 %v2615, %v2759
  %v2784 = vadd.f32 %v2616, %v2760
  %v2785 = vadd.f32 %v2617, %v2761
  %v2786 = vadd.f32 %v2618, %v2762
  %v2787 = vadd.f32 %v2619, %v2763
  %v2788 = vadd.f32 %v2620, %v2764
  %v2789 = vadd.f32 %v2621, %v2765
  %v2790 = vadd.f32 %v2622, %v2766
  %v2791 = vadd.f32 %v2623, %v2767
  %v2792 = vadd.f32 %v2624, %v2768
  %v2793 = vadd.f32 %v2625, %v2769
  %v2794 = vadd.f32 %v2626, %v2770
  %v2795 = vadd.f32 %v2627, %v2771
  %v2796 = vadd.f32 %v2628, %v2772
  %v2797 = vadd.f32 %v2629, %v2773
  %v2798 = vadd.f32 %v2630, %v2774
  %v2799 = vadd.f32 %v2631, %v2775
  %v2800 = vadd.f32 %v2632, %v2776
  %v2801 = vadd.f32 %v2633, %v2777
  %v2802 = vadd.f32 %v2634, %v2778
  %2803 = vrot.lane.b32.xlu0 %v2287, 1
  %v2804 = vpop.permute.xlu0 %2803
  %2805 = vrot.lane.b32.xlu0 %v2291, 1
  %v2806 = vpop.permute.xlu0 %2805
  %2807 = vrot.lane.b32.xlu0 %v2295, 1
  %v2808 = vpop.permute.xlu0 %2807
  %2809 = vrot.lane.b32.xlu0 %v2299, 1
  %v2810 = vpop.permute.xlu0 %2809
  %2811 = vrot.lane.b32.xlu0 %v2303, 1
  %v2812 = vpop.permute.xlu0 %2811
  %2813 = vrot.lane.b32.xlu0 %v2307, 1
  %v2814 = vpop.permute.xlu0 %2813
  %2815 = vrot.lane.b32.xlu0 %v2288, 1
  %v2816 = vpop.permute.xlu0 %2815
  %2817 = vrot.lane.b32.xlu0 %v2292, 1
  %v2818 = vpop.permute.xlu0 %2817
  %2819 = vrot.lane.b32.xlu0 %v2296, 1
  %v2820 = vpop.permute.xlu0 %2819
  %2821 = vrot.lane.b32.xlu0 %v2300, 1
  %v2822 = vpop.permute.xlu0 %2821
  %2823 = vrot.lane.b32.xlu0 %v2304, 1
  %v2824 = vpop.permute.xlu0 %2823
  %2825 = vrot.lane.b32.xlu0 %v2308, 1
  %v2826 = vpop.permute.xlu0 %2825
  %2827 = vrot.lane.b32.xlu0 %v2289, 1
  %v2828 = vpop.permute.xlu0 %2827
  %2829 = vrot.lane.b32.xlu0 %v2293, 1
  %v2830 = vpop.permute.xlu0 %2829
  %2831 = vrot.lane.b32.xlu0 %v2297, 1
  %v2832 = vpop.permute.xlu0 %2831
  %2833 = vrot.lane.b32.xlu0 %v2301, 1
  %v2834 = vpop.permute.xlu0 %2833
  %2835 = vrot.lane.b32.xlu0 %v2305, 1
  %v2836 = vpop.permute.xlu0 %2835
  %2837 = vrot.lane.b32.xlu0 %v2309, 1
  %v2838 = vpop.permute.xlu0 %2837
  %2839 = vrot.lane.b32.xlu0 %v2290, 1
  %v2840 = vpop.permute.xlu0 %2839
  %2841 = vrot.lane.b32.xlu0 %v2294, 1
  %v2842 = vpop.permute.xlu0 %2841
  %2843 = vrot.lane.b32.xlu0 %v2298, 1
  %v2844 = vpop.permute.xlu0 %2843
  %2845 = vrot.lane.b32.xlu0 %v2302, 1
  %v2846 = vpop.permute.xlu0 %2845
  %2847 = vrot.lane.b32.xlu0 %v2306, 1
  %v2848 = vpop.permute.xlu0 %2847
  %2849 = vrot.lane.b32.xlu0 %v2310, 1
  %v2850 = vpop.permute.xlu0 %2849
  %v2851 = vsel %vm852, %v2828, %v2840
  %v2852 = vsel %vm852, %v2830, %v2842
  %v2853 = vsel %vm852, %v2832, %v2844
  %v2854 = vsel %vm852, %v2834, %v2846
  %v2855 = vsel %vm852, %v2836, %v2848
  %v2856 = vsel %vm852, %v2838, %v2850
  %v2857 = vsel %vm852, %v2816, %v2828
  %v2858 = vsel %vm852, %v2818, %v2830
  %v2859 = vsel %vm852, %v2820, %v2832
  %v2860 = vsel %vm852, %v2822, %v2834
  %v2861 = vsel %vm852, %v2824, %v2836
  %v2862 = vsel %vm852, %v2826, %v2838
  %v2863 = vsel %vm852, %v2804, %v2816
  %v2864 = vsel %vm852, %v2806, %v2818
  %v2865 = vsel %vm852, %v2808, %v2820
  %v2866 = vsel %vm852, %v2810, %v2822
  %v2867 = vsel %vm852, %v2812, %v2824
  %v2868 = vsel %vm852, %v2814, %v2826
  %v2869 = vsel %vm852, %v2840, %v2804
  %v2870 = vsel %vm852, %v2842, %v2806
  %v2871 = vsel %vm852, %v2844, %v2808
  %v2872 = vsel %vm852, %v2846, %v2810
  %v2873 = vsel %vm852, %v2848, %v2812
  %v2874 = vsel %vm852, %v2850, %v2814
  %2875 = vset.pattern.permute.xlu0 3
  %2876 = vperm.xlu0 %2875, %v2383
  %v2877 = vpop.permute.xlu0 %2876
  %2879 = vset.pattern.permute.xlu0 3
  %2880 = vperm.xlu0 %2879, %v2384
  %v2881 = vpop.permute.xlu0 %2880
  %2883 = vset.pattern.permute.xlu0 3
  %2884 = vperm.xlu0 %2883, %v2385
  %v2885 = vpop.permute.xlu0 %2884
  %2887 = vset.pattern.permute.xlu0 3
  %2888 = vperm.xlu0 %2887, %v2386
  %v2889 = vpop.permute.xlu0 %2888
  %2891 = vset.pattern.permute.xlu0 3
  %2892 = vperm.xlu0 %2891, %v2387
  %v2893 = vpop.permute.xlu0 %2892
  %2895 = vset.pattern.permute.xlu0 3
  %2896 = vperm.xlu0 %2895, %v2388
  %v2897 = vpop.permute.xlu0 %2896
  %v2899 = vmul.f32 %v2869, %v2877
  %v2900 = vmul.f32 %v2863, %v2877
  %v2901 = vmul.f32 %v2857, %v2877
  %v2902 = vmul.f32 %v2851, %v2877
  %v2903 = vmul.f32 %v2870, %v2881
  %v2904 = vmul.f32 %v2864, %v2881
  %v2905 = vmul.f32 %v2858, %v2881
  %v2906 = vmul.f32 %v2852, %v2881
  %v2907 = vmul.f32 %v2871, %v2885
  %v2908 = vmul.f32 %v2865, %v2885
  %v2909 = vmul.f32 %v2859, %v2885
  %v2910 = vmul.f32 %v2853, %v2885
  %v2911 = vmul.f32 %v2872, %v2889
  %v2912 = vmul.f32 %v2866, %v2889
  %v2913 = vmul.f32 %v2860, %v2889
  %v2914 = vmul.f32 %v2854, %v2889
  %v2915 = vmul.f32 %v2873, %v2893
  %v2916 = vmul.f32 %v2867, %v2893
  %v2917 = vmul.f32 %v2861, %v2893
  %v2918 = vmul.f32 %v2855, %v2893
  %v2919 = vmul.f32 %v2874, %v2897
  %v2920 = vmul.f32 %v2868, %v2897
  %v2921 = vmul.f32 %v2862, %v2897
  %v2922 = vmul.f32 %v2856, %v2897
  %v2923 = vmul.f32 %v2899, %v531
  %v2924 = vmul.f32 %v2900, %v532
  %v2925 = vmul.f32 %v2901, %v533
  %v2926 = vmul.f32 %v2902, %v534
  %v2927 = vmul.f32 %v2903, %v531
  %v2928 = vmul.f32 %v2904, %v532
  %v2929 = vmul.f32 %v2905, %v533
  %v2930 = vmul.f32 %v2906, %v534
  %v2931 = vmul.f32 %v2907, %v531
  %v2932 = vmul.f32 %v2908, %v532
  %v2933 = vmul.f32 %v2909, %v533
  %v2934 = vmul.f32 %v2910, %v534
  %v2935 = vmul.f32 %v2911, %v531
  %v2936 = vmul.f32 %v2912, %v532
  %v2937 = vmul.f32 %v2913, %v533
  %v2938 = vmul.f32 %v2914, %v534
  %v2939 = vmul.f32 %v2915, %v531
  %v2940 = vmul.f32 %v2916, %v532
  %v2941 = vmul.f32 %v2917, %v533
  %v2942 = vmul.f32 %v2918, %v534
  %v2943 = vmul.f32 %v2919, %v531
  %v2944 = vmul.f32 %v2920, %v532
  %v2945 = vmul.f32 %v2921, %v533
  %v2946 = vmul.f32 %v2922, %v534
  %v2947 = vadd.f32 %v2779, %v2923
  %v2948 = vadd.f32 %v2780, %v2924
  %v2949 = vadd.f32 %v2781, %v2925
  %v2950 = vadd.f32 %v2782, %v2926
  %v2951 = vadd.f32 %v2783, %v2927
  %v2952 = vadd.f32 %v2784, %v2928
  %v2953 = vadd.f32 %v2785, %v2929
  %v2954 = vadd.f32 %v2786, %v2930
  %v2955 = vadd.f32 %v2787, %v2931
  %v2956 = vadd.f32 %v2788, %v2932
  %v2957 = vadd.f32 %v2789, %v2933
  %v2958 = vadd.f32 %v2790, %v2934
  %v2959 = vadd.f32 %v2791, %v2935
  %v2960 = vadd.f32 %v2792, %v2936
  %v2961 = vadd.f32 %v2793, %v2937
  %v2962 = vadd.f32 %v2794, %v2938
  %v2963 = vadd.f32 %v2795, %v2939
  %v2964 = vadd.f32 %v2796, %v2940
  %v2965 = vadd.f32 %v2797, %v2941
  %v2966 = vadd.f32 %v2798, %v2942
  %v2967 = vadd.f32 %v2799, %v2943
  %v2968 = vadd.f32 %v2800, %v2944
  %v2969 = vadd.f32 %v2801, %v2945
  %v2970 = vadd.f32 %v2802, %v2946
  %2971 = vset.pattern.permute.xlu0 4
  %2972 = vperm.xlu0 %2971, %v2383
  %v2973 = vpop.permute.xlu0 %2972
  %2975 = vset.pattern.permute.xlu0 4
  %2976 = vperm.xlu0 %2975, %v2384
  %v2977 = vpop.permute.xlu0 %2976
  %2979 = vset.pattern.permute.xlu0 4
  %2980 = vperm.xlu0 %2979, %v2385
  %v2981 = vpop.permute.xlu0 %2980
  %2983 = vset.pattern.permute.xlu0 4
  %2984 = vperm.xlu0 %2983, %v2386
  %v2985 = vpop.permute.xlu0 %2984
  %2987 = vset.pattern.permute.xlu0 4
  %2988 = vperm.xlu0 %2987, %v2387
  %v2989 = vpop.permute.xlu0 %2988
  %2991 = vset.pattern.permute.xlu0 4
  %2992 = vperm.xlu0 %2991, %v2388
  %v2993 = vpop.permute.xlu0 %2992
  %v2995 = vmul.f32 %v2287, %v2973
  %v2996 = vmul.f32 %v2288, %v2973
  %v2997 = vmul.f32 %v2289, %v2973
  %v2998 = vmul.f32 %v2290, %v2973
  %v2999 = vmul.f32 %v2291, %v2977
  %v3000 = vmul.f32 %v2292, %v2977
  %v3001 = vmul.f32 %v2293, %v2977
  %v3002 = vmul.f32 %v2294, %v2977
  %v3003 = vmul.f32 %v2295, %v2981
  %v3004 = vmul.f32 %v2296, %v2981
  %v3005 = vmul.f32 %v2297, %v2981
  %v3006 = vmul.f32 %v2298, %v2981
  %v3007 = vmul.f32 %v2299, %v2985
  %v3008 = vmul.f32 %v2300, %v2985
  %v3009 = vmul.f32 %v2301, %v2985
  %v3010 = vmul.f32 %v2302, %v2985
  %v3011 = vmul.f32 %v2303, %v2989
  %v3012 = vmul.f32 %v2304, %v2989
  %v3013 = vmul.f32 %v2305, %v2989
  %v3014 = vmul.f32 %v2306, %v2989
  %v3015 = vmul.f32 %v2307, %v2993
  %v3016 = vmul.f32 %v2308, %v2993
  %v3017 = vmul.f32 %v2309, %v2993
  %v3018 = vmul.f32 %v2310, %v2993
  %v3019 = vadd.f32 %v2947, %v2995
  %v3020 = vadd.f32 %v2948, %v2996
  %v3021 = vadd.f32 %v2949, %v2997
  %v3022 = vadd.f32 %v2950, %v2998
  %v3023 = vadd.f32 %v2951, %v2999
  %v3024 = vadd.f32 %v2952, %v3000
  %v3025 = vadd.f32 %v2953, %v3001
  %v3026 = vadd.f32 %v2954, %v3002
  %v3027 = vadd.f32 %v2955, %v3003
  %v3028 = vadd.f32 %v2956, %v3004
  %v3029 = vadd.f32 %v2957, %v3005
  %v3030 = vadd.f32 %v2958, %v3006
  %v3031 = vadd.f32 %v2959, %v3007
  %v3032 = vadd.f32 %v2960, %v3008
  %v3033 = vadd.f32 %v2961, %v3009
  %v3034 = vadd.f32 %v2962, %v3010
  %v3035 = vadd.f32 %v2963, %v3011
  %v3036 = vadd.f32 %v2964, %v3012
  %v3037 = vadd.f32 %v2965, %v3013
  %v3038 = vadd.f32 %v2966, %v3014
  %v3039 = vadd.f32 %v2967, %v3015
  %v3040 = vadd.f32 %v2968, %v3016
  %v3041 = vadd.f32 %v2969, %v3017
  %v3042 = vadd.f32 %v2970, %v3018
  %3043 = vrot.lane.b32.xlu0 %v2287, 127
  %v3044 = vpop.permute.xlu0 %3043
  %3045 = vrot.lane.b32.xlu0 %v2291, 127
  %v3046 = vpop.permute.xlu0 %3045
  %3047 = vrot.lane.b32.xlu0 %v2295, 127
  %v3048 = vpop.permute.xlu0 %3047
  %3049 = vrot.lane.b32.xlu0 %v2299, 127
  %v3050 = vpop.permute.xlu0 %3049
  %3051 = vrot.lane.b32.xlu0 %v2303, 127
  %v3052 = vpop.permute.xlu0 %3051
  %3053 = vrot.lane.b32.xlu0 %v2307, 127
  %v3054 = vpop.permute.xlu0 %3053
  %3055 = vrot.lane.b32.xlu0 %v2288, 127
  %v3056 = vpop.permute.xlu0 %3055
  %3057 = vrot.lane.b32.xlu0 %v2292, 127
  %v3058 = vpop.permute.xlu0 %3057
  %3059 = vrot.lane.b32.xlu0 %v2296, 127
  %v3060 = vpop.permute.xlu0 %3059
  %3061 = vrot.lane.b32.xlu0 %v2300, 127
  %v3062 = vpop.permute.xlu0 %3061
  %3063 = vrot.lane.b32.xlu0 %v2304, 127
  %v3064 = vpop.permute.xlu0 %3063
  %3065 = vrot.lane.b32.xlu0 %v2308, 127
  %v3066 = vpop.permute.xlu0 %3065
  %3067 = vrot.lane.b32.xlu0 %v2289, 127
  %v3068 = vpop.permute.xlu0 %3067
  %3069 = vrot.lane.b32.xlu0 %v2293, 127
  %v3070 = vpop.permute.xlu0 %3069
  %3071 = vrot.lane.b32.xlu0 %v2297, 127
  %v3072 = vpop.permute.xlu0 %3071
  %3073 = vrot.lane.b32.xlu0 %v2301, 127
  %v3074 = vpop.permute.xlu0 %3073
  %3075 = vrot.lane.b32.xlu0 %v2305, 127
  %v3076 = vpop.permute.xlu0 %3075
  %3077 = vrot.lane.b32.xlu0 %v2309, 127
  %v3078 = vpop.permute.xlu0 %3077
  %3079 = vrot.lane.b32.xlu0 %v2290, 127
  %v3080 = vpop.permute.xlu0 %3079
  %3081 = vrot.lane.b32.xlu0 %v2294, 127
  %v3082 = vpop.permute.xlu0 %3081
  %3083 = vrot.lane.b32.xlu0 %v2298, 127
  %v3084 = vpop.permute.xlu0 %3083
  %3085 = vrot.lane.b32.xlu0 %v2302, 127
  %v3086 = vpop.permute.xlu0 %3085
  %3087 = vrot.lane.b32.xlu0 %v2306, 127
  %v3088 = vpop.permute.xlu0 %3087
  %3089 = vrot.lane.b32.xlu0 %v2310, 127
  %v3090 = vpop.permute.xlu0 %3089
  %v3091 = vsel %vm973, %v3068, %v3080
  %v3092 = vsel %vm973, %v3070, %v3082
  %v3093 = vsel %vm973, %v3072, %v3084
  %v3094 = vsel %vm973, %v3074, %v3086
  %v3095 = vsel %vm973, %v3076, %v3088
  %v3096 = vsel %vm973, %v3078, %v3090
  %v3097 = vsel %vm973, %v3056, %v3068
  %v3098 = vsel %vm973, %v3058, %v3070
  %v3099 = vsel %vm973, %v3060, %v3072
  %v3100 = vsel %vm973, %v3062, %v3074
  %v3101 = vsel %vm973, %v3064, %v3076
  %v3102 = vsel %vm973, %v3066, %v3078
  %v3103 = vsel %vm973, %v3044, %v3056
  %v3104 = vsel %vm973, %v3046, %v3058
  %v3105 = vsel %vm973, %v3048, %v3060
  %v3106 = vsel %vm973, %v3050, %v3062
  %v3107 = vsel %vm973, %v3052, %v3064
  %v3108 = vsel %vm973, %v3054, %v3066
  %v3109 = vsel %vm973, %v3080, %v3044
  %v3110 = vsel %vm973, %v3082, %v3046
  %v3111 = vsel %vm973, %v3084, %v3048
  %v3112 = vsel %vm973, %v3086, %v3050
  %v3113 = vsel %vm973, %v3088, %v3052
  %v3114 = vsel %vm973, %v3090, %v3054
  %3115 = vset.pattern.permute.xlu0 5
  %3116 = vperm.xlu0 %3115, %v2383
  %v3117 = vpop.permute.xlu0 %3116
  %3119 = vset.pattern.permute.xlu0 5
  %3120 = vperm.xlu0 %3119, %v2384
  %v3121 = vpop.permute.xlu0 %3120
  %3123 = vset.pattern.permute.xlu0 5
  %3124 = vperm.xlu0 %3123, %v2385
  %v3125 = vpop.permute.xlu0 %3124
  %3127 = vset.pattern.permute.xlu0 5
  %3128 = vperm.xlu0 %3127, %v2386
  %v3129 = vpop.permute.xlu0 %3128
  %3131 = vset.pattern.permute.xlu0 5
  %3132 = vperm.xlu0 %3131, %v2387
  %v3133 = vpop.permute.xlu0 %3132
  %3135 = vset.pattern.permute.xlu0 5
  %3136 = vperm.xlu0 %3135, %v2388
  %v3137 = vpop.permute.xlu0 %3136
  %v3139 = vmul.f32 %v3103, %v3117
  %v3140 = vmul.f32 %v3097, %v3117
  %v3141 = vmul.f32 %v3091, %v3117
  %v3142 = vmul.f32 %v3109, %v3117
  %v3143 = vmul.f32 %v3104, %v3121
  %v3144 = vmul.f32 %v3098, %v3121
  %v3145 = vmul.f32 %v3092, %v3121
  %v3146 = vmul.f32 %v3110, %v3121
  %v3147 = vmul.f32 %v3105, %v3125
  %v3148 = vmul.f32 %v3099, %v3125
  %v3149 = vmul.f32 %v3093, %v3125
  %v3150 = vmul.f32 %v3111, %v3125
  %v3151 = vmul.f32 %v3106, %v3129
  %v3152 = vmul.f32 %v3100, %v3129
  %v3153 = vmul.f32 %v3094, %v3129
  %v3154 = vmul.f32 %v3112, %v3129
  %v3155 = vmul.f32 %v3107, %v3133
  %v3156 = vmul.f32 %v3101, %v3133
  %v3157 = vmul.f32 %v3095, %v3133
  %v3158 = vmul.f32 %v3113, %v3133
  %v3159 = vmul.f32 %v3108, %v3137
  %v3160 = vmul.f32 %v3102, %v3137
  %v3161 = vmul.f32 %v3096, %v3137
  %v3162 = vmul.f32 %v3114, %v3137
  %v3163 = vmul.f32 %v3139, %v543
  %v3164 = vmul.f32 %v3140, %v544
  %v3165 = vmul.f32 %v3141, %v545
  %v3166 = vmul.f32 %v3142, %v546
  %v3167 = vmul.f32 %v3143, %v543
  %v3168 = vmul.f32 %v3144, %v544
  %v3169 = vmul.f32 %v3145, %v545
  %v3170 = vmul.f32 %v3146, %v546
  %v3171 = vmul.f32 %v3147, %v543
  %v3172 = vmul.f32 %v3148, %v544
  %v3173 = vmul.f32 %v3149, %v545
  %v3174 = vmul.f32 %v3150, %v546
  %v3175 = vmul.f32 %v3151, %v543
  %v3176 = vmul.f32 %v3152, %v544
  %v3177 = vmul.f32 %v3153, %v545
  %v3178 = vmul.f32 %v3154, %v546
  %v3179 = vmul.f32 %v3155, %v543
  %v3180 = vmul.f32 %v3156, %v544
  %v3181 = vmul.f32 %v3157, %v545
  %v3182 = vmul.f32 %v3158, %v546
  %v3183 = vmul.f32 %v3159, %v543
  %v3184 = vmul.f32 %v3160, %v544
  %v3185 = vmul.f32 %v3161, %v545
  %v3186 = vmul.f32 %v3162, %v546
  %v3187 = vadd.f32 %v3019, %v3163
  %v3188 = vadd.f32 %v3020, %v3164
  %v3189 = vadd.f32 %v3021, %v3165
  %v3190 = vadd.f32 %v3022, %v3166
  %v3191 = vadd.f32 %v3023, %v3167
  %v3192 = vadd.f32 %v3024, %v3168
  %v3193 = vadd.f32 %v3025, %v3169
  %v3194 = vadd.f32 %v3026, %v3170
  %v3195 = vadd.f32 %v3027, %v3171
  %v3196 = vadd.f32 %v3028, %v3172
  %v3197 = vadd.f32 %v3029, %v3173
  %v3198 = vadd.f32 %v3030, %v3174
  %v3199 = vadd.f32 %v3031, %v3175
  %v3200 = vadd.f32 %v3032, %v3176
  %v3201 = vadd.f32 %v3033, %v3177
  %v3202 = vadd.f32 %v3034, %v3178
  %v3203 = vadd.f32 %v3035, %v3179
  %v3204 = vadd.f32 %v3036, %v3180
  %v3205 = vadd.f32 %v3037, %v3181
  %v3206 = vadd.f32 %v3038, %v3182
  %v3207 = vadd.f32 %v3039, %v3183
  %v3208 = vadd.f32 %v3040, %v3184
  %v3209 = vadd.f32 %v3041, %v3185
  %v3210 = vadd.f32 %v3042, %v3186
  %3211 = vrot.lane.b32.xlu0 %v2287, 113
  %v3212 = vpop.permute.xlu0 %3211
  %3213 = vrot.lane.b32.xlu0 %v2291, 113
  %v3214 = vpop.permute.xlu0 %3213
  %3215 = vrot.lane.b32.xlu0 %v2295, 113
  %v3216 = vpop.permute.xlu0 %3215
  %3217 = vrot.lane.b32.xlu0 %v2299, 113
  %v3218 = vpop.permute.xlu0 %3217
  %3219 = vrot.lane.b32.xlu0 %v2303, 113
  %v3220 = vpop.permute.xlu0 %3219
  %3221 = vrot.lane.b32.xlu0 %v2307, 113
  %v3222 = vpop.permute.xlu0 %3221
  %3223 = vrot.lane.b32.xlu0 %v2288, 113
  %v3224 = vpop.permute.xlu0 %3223
  %3225 = vrot.lane.b32.xlu0 %v2292, 113
  %v3226 = vpop.permute.xlu0 %3225
  %3227 = vrot.lane.b32.xlu0 %v2296, 113
  %v3228 = vpop.permute.xlu0 %3227
  %3229 = vrot.lane.b32.xlu0 %v2300, 113
  %v3230 = vpop.permute.xlu0 %3229
  %3231 = vrot.lane.b32.xlu0 %v2304, 113
  %v3232 = vpop.permute.xlu0 %3231
  %3233 = vrot.lane.b32.xlu0 %v2308, 113
  %v3234 = vpop.permute.xlu0 %3233
  %3235 = vrot.lane.b32.xlu0 %v2289, 113
  %v3236 = vpop.permute.xlu0 %3235
  %3237 = vrot.lane.b32.xlu0 %v2293, 113
  %v3238 = vpop.permute.xlu0 %3237
  %3239 = vrot.lane.b32.xlu0 %v2297, 113
  %v3240 = vpop.permute.xlu0 %3239
  %3241 = vrot.lane.b32.xlu0 %v2301, 113
  %v3242 = vpop.permute.xlu0 %3241
  %3243 = vrot.lane.b32.xlu0 %v2305, 113
  %v3244 = vpop.permute.xlu0 %3243
  %3245 = vrot.lane.b32.xlu0 %v2309, 113
  %v3246 = vpop.permute.xlu0 %3245
  %3247 = vrot.lane.b32.xlu0 %v2290, 113
  %v3248 = vpop.permute.xlu0 %3247
  %3249 = vrot.lane.b32.xlu0 %v2294, 113
  %v3250 = vpop.permute.xlu0 %3249
  %3251 = vrot.lane.b32.xlu0 %v2298, 113
  %v3252 = vpop.permute.xlu0 %3251
  %3253 = vrot.lane.b32.xlu0 %v2302, 113
  %v3254 = vpop.permute.xlu0 %3253
  %3255 = vrot.lane.b32.xlu0 %v2306, 113
  %v3256 = vpop.permute.xlu0 %3255
  %3257 = vrot.lane.b32.xlu0 %v2310, 113
  %v3258 = vpop.permute.xlu0 %3257
  %v3259 = vsel %vm1058, %v3236, %v3248
  %v3260 = vsel %vm1058, %v3238, %v3250
  %v3261 = vsel %vm1058, %v3240, %v3252
  %v3262 = vsel %vm1058, %v3242, %v3254
  %v3263 = vsel %vm1058, %v3244, %v3256
  %v3264 = vsel %vm1058, %v3246, %v3258
  %v3265 = vsel %vm1058, %v3224, %v3236
  %v3266 = vsel %vm1058, %v3226, %v3238
  %v3267 = vsel %vm1058, %v3228, %v3240
  %v3268 = vsel %vm1058, %v3230, %v3242
  %v3269 = vsel %vm1058, %v3232, %v3244
  %v3270 = vsel %vm1058, %v3234, %v3246
  %v3271 = vsel %vm1058, %v3212, %v3224
  %v3272 = vsel %vm1058, %v3214, %v3226
  %v3273 = vsel %vm1058, %v3216, %v3228
  %v3274 = vsel %vm1058, %v3218, %v3230
  %v3275 = vsel %vm1058, %v3220, %v3232
  %v3276 = vsel %vm1058, %v3222, %v3234
  %v3277 = vsel %vm1058, %v3248, %v3212
  %v3278 = vsel %vm1058, %v3250, %v3214
  %v3279 = vsel %vm1058, %v3252, %v3216
  %v3280 = vsel %vm1058, %v3254, %v3218
  %v3281 = vsel %vm1058, %v3256, %v3220
  %v3282 = vsel %vm1058, %v3258, %v3222
  %3283 = vset.pattern.permute.xlu0 6
  %3284 = vperm.xlu0 %3283, %v2383
  %v3285 = vpop.permute.xlu0 %3284
  %3287 = vset.pattern.permute.xlu0 6
  %3288 = vperm.xlu0 %3287, %v2384
  %v3289 = vpop.permute.xlu0 %3288
  %3291 = vset.pattern.permute.xlu0 6
  %3292 = vperm.xlu0 %3291, %v2385
  %v3293 = vpop.permute.xlu0 %3292
  %3295 = vset.pattern.permute.xlu0 6
  %3296 = vperm.xlu0 %3295, %v2386
  %v3297 = vpop.permute.xlu0 %3296
  %3299 = vset.pattern.permute.xlu0 6
  %3300 = vperm.xlu0 %3299, %v2387
  %v3301 = vpop.permute.xlu0 %3300
  %3303 = vset.pattern.permute.xlu0 6
  %3304 = vperm.xlu0 %3303, %v2388
  %v3305 = vpop.permute.xlu0 %3304
  %v3307 = vmul.f32 %v3271, %v3285
  %v3308 = vmul.f32 %v3265, %v3285
  %v3309 = vmul.f32 %v3259, %v3285
  %v3310 = vmul.f32 %v3277, %v3285
  %v3311 = vmul.f32 %v3272, %v3289
  %v3312 = vmul.f32 %v3266, %v3289
  %v3313 = vmul.f32 %v3260, %v3289
  %v3314 = vmul.f32 %v3278, %v3289
  %v3315 = vmul.f32 %v3273, %v3293
  %v3316 = vmul.f32 %v3267, %v3293
  %v3317 = vmul.f32 %v3261, %v3293
  %v3318 = vmul.f32 %v3279, %v3293
  %v3319 = vmul.f32 %v3274, %v3297
  %v3320 = vmul.f32 %v3268, %v3297
  %v3321 = vmul.f32 %v3262, %v3297
  %v3322 = vmul.f32 %v3280, %v3297
  %v3323 = vmul.f32 %v3275, %v3301
  %v3324 = vmul.f32 %v3269, %v3301
  %v3325 = vmul.f32 %v3263, %v3301
  %v3326 = vmul.f32 %v3281, %v3301
  %v3327 = vmul.f32 %v3276, %v3305
  %v3328 = vmul.f32 %v3270, %v3305
  %v3329 = vmul.f32 %v3264, %v3305
  %v3330 = vmul.f32 %v3282, %v3305
  %v3331 = vmul.f32 %v3307, %v1095
  %v3332 = vmul.f32 %v3308, %v1096
  %v3333 = vmul.f32 %v3309, %v1097
  %v3334 = vmul.f32 %v3310, %v1098
  %v3335 = vmul.f32 %v3311, %v1095
  %v3336 = vmul.f32 %v3312, %v1096
  %v3337 = vmul.f32 %v3313, %v1097
  %v3338 = vmul.f32 %v3314, %v1098
  %v3339 = vmul.f32 %v3315, %v1095
  %v3340 = vmul.f32 %v3316, %v1096
  %v3341 = vmul.f32 %v3317, %v1097
  %v3342 = vmul.f32 %v3318, %v1098
  %v3343 = vmul.f32 %v3319, %v1095
  %v3344 = vmul.f32 %v3320, %v1096
  %v3345 = vmul.f32 %v3321, %v1097
  %v3346 = vmul.f32 %v3322, %v1098
  %v3347 = vmul.f32 %v3323, %v1095
  %v3348 = vmul.f32 %v3324, %v1096
  %v3349 = vmul.f32 %v3325, %v1097
  %v3350 = vmul.f32 %v3326, %v1098
  %v3351 = vmul.f32 %v3327, %v1095
  %v3352 = vmul.f32 %v3328, %v1096
  %v3353 = vmul.f32 %v3329, %v1097
  %v3354 = vmul.f32 %v3330, %v1098
  %v3355 = vadd.f32 %v3187, %v3331
  %v3356 = vadd.f32 %v3188, %v3332
  %v3357 = vadd.f32 %v3189, %v3333
  %v3358 = vadd.f32 %v3190, %v3334
  %v3359 = vadd.f32 %v3191, %v3335
  %v3360 = vadd.f32 %v3192, %v3336
  %v3361 = vadd.f32 %v3193, %v3337
  %v3362 = vadd.f32 %v3194, %v3338
  %v3363 = vadd.f32 %v3195, %v3339
  %v3364 = vadd.f32 %v3196, %v3340
  %v3365 = vadd.f32 %v3197, %v3341
  %v3366 = vadd.f32 %v3198, %v3342
  %v3367 = vadd.f32 %v3199, %v3343
  %v3368 = vadd.f32 %v3200, %v3344
  %v3369 = vadd.f32 %v3201, %v3345
  %v3370 = vadd.f32 %v3202, %v3346
  %v3371 = vadd.f32 %v3203, %v3347
  %v3372 = vadd.f32 %v3204, %v3348
  %v3373 = vadd.f32 %v3205, %v3349
  %v3374 = vadd.f32 %v3206, %v3350
  %v3375 = vadd.f32 %v3207, %v3351
  %v3376 = vadd.f32 %v3208, %v3352
  %v3377 = vadd.f32 %v3209, %v3353
  %v3378 = vadd.f32 %v3210, %v3354
  %3379 = vrot.lane.b32.xlu0 %v2287, 112
  %v3380 = vpop.permute.xlu0 %3379
  %3381 = vrot.lane.b32.xlu0 %v2291, 112
  %v3382 = vpop.permute.xlu0 %3381
  %3383 = vrot.lane.b32.xlu0 %v2295, 112
  %v3384 = vpop.permute.xlu0 %3383
  %3385 = vrot.lane.b32.xlu0 %v2299, 112
  %v3386 = vpop.permute.xlu0 %3385
  %3387 = vrot.lane.b32.xlu0 %v2303, 112
  %v3388 = vpop.permute.xlu0 %3387
  %3389 = vrot.lane.b32.xlu0 %v2307, 112
  %v3390 = vpop.permute.xlu0 %3389
  %3391 = vrot.lane.b32.xlu0 %v2288, 112
  %v3392 = vpop.permute.xlu0 %3391
  %3393 = vrot.lane.b32.xlu0 %v2292, 112
  %v3394 = vpop.permute.xlu0 %3393
  %3395 = vrot.lane.b32.xlu0 %v2296, 112
  %v3396 = vpop.permute.xlu0 %3395
  %3397 = vrot.lane.b32.xlu0 %v2300, 112
  %v3398 = vpop.permute.xlu0 %3397
  %3399 = vrot.lane.b32.xlu0 %v2304, 112
  %v3400 = vpop.permute.xlu0 %3399
  %3401 = vrot.lane.b32.xlu0 %v2308, 112
  %v3402 = vpop.permute.xlu0 %3401
  %3403 = vrot.lane.b32.xlu0 %v2289, 112
  %v3404 = vpop.permute.xlu0 %3403
  %3405 = vrot.lane.b32.xlu0 %v2293, 112
  %v3406 = vpop.permute.xlu0 %3405
  %3407 = vrot.lane.b32.xlu0 %v2297, 112
  %v3408 = vpop.permute.xlu0 %3407
  %3409 = vrot.lane.b32.xlu0 %v2301, 112
  %v3410 = vpop.permute.xlu0 %3409
  %3411 = vrot.lane.b32.xlu0 %v2305, 112
  %v3412 = vpop.permute.xlu0 %3411
  %3413 = vrot.lane.b32.xlu0 %v2309, 112
  %v3414 = vpop.permute.xlu0 %3413
  %3415 = vrot.lane.b32.xlu0 %v2290, 112
  %v3416 = vpop.permute.xlu0 %3415
  %3417 = vrot.lane.b32.xlu0 %v2294, 112
  %v3418 = vpop.permute.xlu0 %3417
  %3419 = vrot.lane.b32.xlu0 %v2298, 112
  %v3420 = vpop.permute.xlu0 %3419
  %3421 = vrot.lane.b32.xlu0 %v2302, 112
  %v3422 = vpop.permute.xlu0 %3421
  %3423 = vrot.lane.b32.xlu0 %v2306, 112
  %v3424 = vpop.permute.xlu0 %3423
  %3425 = vrot.lane.b32.xlu0 %v2310, 112
  %v3426 = vpop.permute.xlu0 %3425
  %v3427 = vsel %vm1147, %v3404, %v3416
  %v3428 = vsel %vm1147, %v3406, %v3418
  %v3429 = vsel %vm1147, %v3408, %v3420
  %v3430 = vsel %vm1147, %v3410, %v3422
  %v3431 = vsel %vm1147, %v3412, %v3424
  %v3432 = vsel %vm1147, %v3414, %v3426
  %v3433 = vsel %vm1147, %v3392, %v3404
  %v3434 = vsel %vm1147, %v3394, %v3406
  %v3435 = vsel %vm1147, %v3396, %v3408
  %v3436 = vsel %vm1147, %v3398, %v3410
  %v3437 = vsel %vm1147, %v3400, %v3412
  %v3438 = vsel %vm1147, %v3402, %v3414
  %v3439 = vsel %vm1147, %v3380, %v3392
  %v3440 = vsel %vm1147, %v3382, %v3394
  %v3441 = vsel %vm1147, %v3384, %v3396
  %v3442 = vsel %vm1147, %v3386, %v3398
  %v3443 = vsel %vm1147, %v3388, %v3400
  %v3444 = vsel %vm1147, %v3390, %v3402
  %v3445 = vsel %vm1147, %v3416, %v3380
  %v3446 = vsel %vm1147, %v3418, %v3382
  %v3447 = vsel %vm1147, %v3420, %v3384
  %v3448 = vsel %vm1147, %v3422, %v3386
  %v3449 = vsel %vm1147, %v3424, %v3388
  %v3450 = vsel %vm1147, %v3426, %v3390
  %3451 = vset.pattern.permute.xlu0 7
  %3452 = vperm.xlu0 %3451, %v2383
  %v3453 = vpop.permute.xlu0 %3452
  %3455 = vset.pattern.permute.xlu0 7
  %3456 = vperm.xlu0 %3455, %v2384
  %v3457 = vpop.permute.xlu0 %3456
  %3459 = vset.pattern.permute.xlu0 7
  %3460 = vperm.xlu0 %3459, %v2385
  %v3461 = vpop.permute.xlu0 %3460
  %3463 = vset.pattern.permute.xlu0 7
  %3464 = vperm.xlu0 %3463, %v2386
  %v3465 = vpop.permute.xlu0 %3464
  %3467 = vset.pattern.permute.xlu0 7
  %3468 = vperm.xlu0 %3467, %v2387
  %v3469 = vpop.permute.xlu0 %3468
  %3471 = vset.pattern.permute.xlu0 7
  %3472 = vperm.xlu0 %3471, %v2388
  %v3473 = vpop.permute.xlu0 %3472
  %v3475 = vmul.f32 %v3439, %v3453
  %v3476 = vmul.f32 %v3433, %v3453
  %v3477 = vmul.f32 %v3427, %v3453
  %v3478 = vmul.f32 %v3445, %v3453
  %v3479 = vmul.f32 %v3440, %v3457
  %v3480 = vmul.f32 %v3434, %v3457
  %v3481 = vmul.f32 %v3428, %v3457
  %v3482 = vmul.f32 %v3446, %v3457
  %v3483 = vmul.f32 %v3441, %v3461
  %v3484 = vmul.f32 %v3435, %v3461
  %v3485 = vmul.f32 %v3429, %v3461
  %v3486 = vmul.f32 %v3447, %v3461
  %v3487 = vmul.f32 %v3442, %v3465
  %v3488 = vmul.f32 %v3436, %v3465
  %v3489 = vmul.f32 %v3430, %v3465
  %v3490 = vmul.f32 %v3448, %v3465
  %v3491 = vmul.f32 %v3443, %v3469
  %v3492 = vmul.f32 %v3437, %v3469
  %v3493 = vmul.f32 %v3431, %v3469
  %v3494 = vmul.f32 %v3449, %v3469
  %v3495 = vmul.f32 %v3444, %v3473
  %v3496 = vmul.f32 %v3438, %v3473
  %v3497 = vmul.f32 %v3432, %v3473
  %v3498 = vmul.f32 %v3450, %v3473
  %v3499 = vmul.f32 %v3475, %v567
  %v3500 = vmul.f32 %v3476, %v568
  %v3501 = vmul.f32 %v3477, %v569
  %v3502 = vmul.f32 %v3478, %v570
  %v3503 = vmul.f32 %v3479, %v567
  %v3504 = vmul.f32 %v3480, %v568
  %v3505 = vmul.f32 %v3481, %v569
  %v3506 = vmul.f32 %v3482, %v570
  %v3507 = vmul.f32 %v3483, %v567
  %v3508 = vmul.f32 %v3484, %v568
  %v3509 = vmul.f32 %v3485, %v569
  %v3510 = vmul.f32 %v3486, %v570
  %v3511 = vmul.f32 %v3487, %v567
  %v3512 = vmul.f32 %v3488, %v568
  %v3513 = vmul.f32 %v3489, %v569
  %v3514 = vmul.f32 %v3490, %v570
  %v3515 = vmul.f32 %v3491, %v567
  %v3516 = vmul.f32 %v3492, %v568
  %v3517 = vmul.f32 %v3493, %v569
  %v3518 = vmul.f32 %v3494, %v570
  %v3519 = vmul.f32 %v3495, %v567
  %v3520 = vmul.f32 %v3496, %v568
  %v3521 = vmul.f32 %v3497, %v569
  %v3522 = vmul.f32 %v3498, %v570
  %v3523 = vadd.f32 %v3355, %v3499
  %v3524 = vadd.f32 %v3356, %v3500
  %v3525 = vadd.f32 %v3357, %v3501
  %v3526 = vadd.f32 %v3358, %v3502
  %v3527 = vadd.f32 %v3359, %v3503
  %v3528 = vadd.f32 %v3360, %v3504
  %v3529 = vadd.f32 %v3361, %v3505
  %v3530 = vadd.f32 %v3362, %v3506
  %v3531 = vadd.f32 %v3363, %v3507
  %v3532 = vadd.f32 %v3364, %v3508
  %v3533 = vadd.f32 %v3365, %v3509
  %v3534 = vadd.f32 %v3366, %v3510
  %v3535 = vadd.f32 %v3367, %v3511
  %v3536 = vadd.f32 %v3368, %v3512
  %v3537 = vadd.f32 %v3369, %v3513
  %v3538 = vadd.f32 %v3370, %v3514
  %v3539 = vadd.f32 %v3371, %v3515
  %v3540 = vadd.f32 %v3372, %v3516
  %v3541 = vadd.f32 %v3373, %v3517
  %v3542 = vadd.f32 %v3374, %v3518
  %v3543 = vadd.f32 %v3375, %v3519
  %v3544 = vadd.f32 %v3376, %v3520
  %v3545 = vadd.f32 %v3377, %v3521
  %v3546 = vadd.f32 %v3378, %v3522
  %3547 = vrot.lane.b32.xlu0 %v2287, 111
  %v3548 = vpop.permute.xlu0 %3547
  %3549 = vrot.lane.b32.xlu0 %v2291, 111
  %v3550 = vpop.permute.xlu0 %3549
  %3551 = vrot.lane.b32.xlu0 %v2295, 111
  %v3552 = vpop.permute.xlu0 %3551
  %3553 = vrot.lane.b32.xlu0 %v2299, 111
  %v3554 = vpop.permute.xlu0 %3553
  %3555 = vrot.lane.b32.xlu0 %v2303, 111
  %v3556 = vpop.permute.xlu0 %3555
  %3557 = vrot.lane.b32.xlu0 %v2307, 111
  %v3558 = vpop.permute.xlu0 %3557
  %3559 = vrot.lane.b32.xlu0 %v2288, 111
  %v3560 = vpop.permute.xlu0 %3559
  %3561 = vrot.lane.b32.xlu0 %v2292, 111
  %v3562 = vpop.permute.xlu0 %3561
  %3563 = vrot.lane.b32.xlu0 %v2296, 111
  %v3564 = vpop.permute.xlu0 %3563
  %3565 = vrot.lane.b32.xlu0 %v2300, 111
  %v3566 = vpop.permute.xlu0 %3565
  %3567 = vrot.lane.b32.xlu0 %v2304, 111
  %v3568 = vpop.permute.xlu0 %3567
  %3569 = vrot.lane.b32.xlu0 %v2308, 111
  %v3570 = vpop.permute.xlu0 %3569
  %3571 = vrot.lane.b32.xlu0 %v2289, 111
  %v3572 = vpop.permute.xlu0 %3571
  %3573 = vrot.lane.b32.xlu0 %v2293, 111
  %v3574 = vpop.permute.xlu0 %3573
  %3575 = vrot.lane.b32.xlu0 %v2297, 111
  %v3576 = vpop.permute.xlu0 %3575
  %3577 = vrot.lane.b32.xlu0 %v2301, 111
  %v3578 = vpop.permute.xlu0 %3577
  %3579 = vrot.lane.b32.xlu0 %v2305, 111
  %v3580 = vpop.permute.xlu0 %3579
  %3581 = vrot.lane.b32.xlu0 %v2309, 111
  %v3582 = vpop.permute.xlu0 %3581
  %3583 = vrot.lane.b32.xlu0 %v2290, 111
  %v3584 = vpop.permute.xlu0 %3583
  %3585 = vrot.lane.b32.xlu0 %v2294, 111
  %v3586 = vpop.permute.xlu0 %3585
  %3587 = vrot.lane.b32.xlu0 %v2298, 111
  %v3588 = vpop.permute.xlu0 %3587
  %3589 = vrot.lane.b32.xlu0 %v2302, 111
  %v3590 = vpop.permute.xlu0 %3589
  %3591 = vrot.lane.b32.xlu0 %v2306, 111
  %v3592 = vpop.permute.xlu0 %3591
  %3593 = vrot.lane.b32.xlu0 %v2310, 111
  %v3594 = vpop.permute.xlu0 %3593
  %v3595 = vsel %vm1232, %v3572, %v3584
  %v3596 = vsel %vm1232, %v3574, %v3586
  %v3597 = vsel %vm1232, %v3576, %v3588
  %v3598 = vsel %vm1232, %v3578, %v3590
  %v3599 = vsel %vm1232, %v3580, %v3592
  %v3600 = vsel %vm1232, %v3582, %v3594
  %v3601 = vsel %vm1232, %v3560, %v3572
  %v3602 = vsel %vm1232, %v3562, %v3574
  %v3603 = vsel %vm1232, %v3564, %v3576
  %v3604 = vsel %vm1232, %v3566, %v3578
  %v3605 = vsel %vm1232, %v3568, %v3580
  %v3606 = vsel %vm1232, %v3570, %v3582
  %v3607 = vsel %vm1232, %v3548, %v3560
  %v3608 = vsel %vm1232, %v3550, %v3562
  %v3609 = vsel %vm1232, %v3552, %v3564
  %v3610 = vsel %vm1232, %v3554, %v3566
  %v3611 = vsel %vm1232, %v3556, %v3568
  %v3612 = vsel %vm1232, %v3558, %v3570
  %v3613 = vsel %vm1232, %v3584, %v3548
  %v3614 = vsel %vm1232, %v3586, %v3550
  %v3615 = vsel %vm1232, %v3588, %v3552
  %v3616 = vsel %vm1232, %v3590, %v3554
  %v3617 = vsel %vm1232, %v3592, %v3556
  %v3618 = vsel %vm1232, %v3594, %v3558
  %3619 = vset.pattern.permute.xlu0 8
  %3620 = vperm.xlu0 %3619, %v2383
  %v3621 = vpop.permute.xlu0 %3620
  %3623 = vset.pattern.permute.xlu0 8
  %3624 = vperm.xlu0 %3623, %v2384
  %v3625 = vpop.permute.xlu0 %3624
  %3627 = vset.pattern.permute.xlu0 8
  %3628 = vperm.xlu0 %3627, %v2385
  %v3629 = vpop.permute.xlu0 %3628
  %3631 = vset.pattern.permute.xlu0 8
  %3632 = vperm.xlu0 %3631, %v2386
  %v3633 = vpop.permute.xlu0 %3632
  %3635 = vset.pattern.permute.xlu0 8
  %3636 = vperm.xlu0 %3635, %v2387
  %v3637 = vpop.permute.xlu0 %3636
  %3639 = vset.pattern.permute.xlu0 8
  %3640 = vperm.xlu0 %3639, %v2388
  %v3641 = vpop.permute.xlu0 %3640
  %v3643 = vmul.f32 %v3607, %v3621
  %v3644 = vmul.f32 %v3601, %v3621
  %v3645 = vmul.f32 %v3595, %v3621
  %v3646 = vmul.f32 %v3613, %v3621
  %v3647 = vmul.f32 %v3608, %v3625
  %v3648 = vmul.f32 %v3602, %v3625
  %v3649 = vmul.f32 %v3596, %v3625
  %v3650 = vmul.f32 %v3614, %v3625
  %v3651 = vmul.f32 %v3609, %v3629
  %v3652 = vmul.f32 %v3603, %v3629
  %v3653 = vmul.f32 %v3597, %v3629
  %v3654 = vmul.f32 %v3615, %v3629
  %v3655 = vmul.f32 %v3610, %v3633
  %v3656 = vmul.f32 %v3604, %v3633
  %v3657 = vmul.f32 %v3598, %v3633
  %v3658 = vmul.f32 %v3616, %v3633
  %v3659 = vmul.f32 %v3611, %v3637
  %v3660 = vmul.f32 %v3605, %v3637
  %v3661 = vmul.f32 %v3599, %v3637
  %v3662 = vmul.f32 %v3617, %v3637
  %v3663 = vmul.f32 %v3612, %v3641
  %v3664 = vmul.f32 %v3606, %v3641
  %v3665 = vmul.f32 %v3600, %v3641
  %v3666 = vmul.f32 %v3618, %v3641
  %v3667 = vmul.f32 %v3643, %v1269
  %v3668 = vmul.f32 %v3644, %v1270
  %v3669 = vmul.f32 %v3645, %v1271
  %v3670 = vmul.f32 %v3646, %v1272
  %v3671 = vmul.f32 %v3647, %v1269
  %v3672 = vmul.f32 %v3648, %v1270
  %v3673 = vmul.f32 %v3649, %v1271
  %v3674 = vmul.f32 %v3650, %v1272
  %v3675 = vmul.f32 %v3651, %v1269
  %v3676 = vmul.f32 %v3652, %v1270
  %v3677 = vmul.f32 %v3653, %v1271
  %v3678 = vmul.f32 %v3654, %v1272
  %v3679 = vmul.f32 %v3655, %v1269
  %v3680 = vmul.f32 %v3656, %v1270
  %v3681 = vmul.f32 %v3657, %v1271
  %v3682 = vmul.f32 %v3658, %v1272
  %v3683 = vmul.f32 %v3659, %v1269
  %v3684 = vmul.f32 %v3660, %v1270
  %v3685 = vmul.f32 %v3661, %v1271
  %v3686 = vmul.f32 %v3662, %v1272
  %v3687 = vmul.f32 %v3663, %v1269
  %v3688 = vmul.f32 %v3664, %v1270
  %v3689 = vmul.f32 %v3665, %v1271
  %v3690 = vmul.f32 %v3666, %v1272
  %v3691 = vadd.f32 %v3523, %v3667
  %v3692 = vadd.f32 %v3524, %v3668
  %v3693 = vadd.f32 %v3525, %v3669
  %v3694 = vadd.f32 %v3526, %v3670
  %v3695 = vadd.f32 %v3527, %v3671
  %v3696 = vadd.f32 %v3528, %v3672
  %v3697 = vadd.f32 %v3529, %v3673
  %v3698 = vadd.f32 %v3530, %v3674
  %v3699 = vadd.f32 %v3531, %v3675
  %v3700 = vadd.f32 %v3532, %v3676
  %v3701 = vadd.f32 %v3533, %v3677
  %v3702 = vadd.f32 %v3534, %v3678
  %v3703 = vadd.f32 %v3535, %v3679
  %v3704 = vadd.f32 %v3536, %v3680
  %v3705 = vadd.f32 %v3537, %v3681
  %v3706 = vadd.f32 %v3538, %v3682
  %v3707 = vadd.f32 %v3539, %v3683
  %v3708 = vadd.f32 %v3540, %v3684
  %v3709 = vadd.f32 %v3541, %v3685
  %v3710 = vadd.f32 %v3542, %v3686
  %v3711 = vadd.f32 %v3543, %v3687
  %v3712 = vadd.f32 %v3544, %v3688
  %v3713 = vadd.f32 %v3545, %v3689
  %v3714 = vadd.f32 %v3546, %v3690
  %3716 = vset.pattern.permute.xlu0 0
  %3717 = vperm.xlu0 %3716, %v2202
  %v3718 = vpop.permute.xlu0 %3717
  %3721 = vset.pattern.permute.xlu0 0
  %3722 = vperm.xlu0 %3721, %v2203
  %v3723 = vpop.permute.xlu0 %3722
  %3726 = vset.pattern.permute.xlu0 0
  %3727 = vperm.xlu0 %3726, %v2204
  %v3728 = vpop.permute.xlu0 %3727
  %3731 = vset.pattern.permute.xlu0 0
  %3732 = vperm.xlu0 %3731, %v2205
  %v3733 = vpop.permute.xlu0 %3732
  %3736 = vset.pattern.permute.xlu0 0
  %3737 = vperm.xlu0 %3736, %v2206
  %v3738 = vpop.permute.xlu0 %3737
  %3741 = vset.pattern.permute.xlu0 0
  %3742 = vperm.xlu0 %3741, %v2207
  %v3743 = vpop.permute.xlu0 %3742
  %v3745 = vadd.f32 %v3691, %v3718
  %v3746 = vadd.f32 %v3692, %v3718
  %v3747 = vadd.f32 %v3693, %v3718
  %v3748 = vadd.f32 %v3694, %v3718
  %v3749 = vadd.f32 %v3695, %v3723
  %v3750 = vadd.f32 %v3696, %v3723
  %v3751 = vadd.f32 %v3697, %v3723
  %v3752 = vadd.f32 %v3698, %v3723
  %v3753 = vadd.f32 %v3699, %v3728
  %v3754 = vadd.f32 %v3700, %v3728
  %v3755 = vadd.f32 %v3701, %v3728
  %v3756 = vadd.f32 %v3702, %v3728
  %v3757 = vadd.f32 %v3703, %v3733
  %v3758 = vadd.f32 %v3704, %v3733
  %v3759 = vadd.f32 %v3705, %v3733
  %v3760 = vadd.f32 %v3706, %v3733
  %v3761 = vadd.f32 %v3707, %v3738
  %v3762 = vadd.f32 %v3708, %v3738
  %v3763 = vadd.f32 %v3709, %v3738
  %v3764 = vadd.f32 %v3710, %v3738
  %v3765 = vadd.f32 %v3711, %v3743
  %v3766 = vadd.f32 %v3712, %v3743
  %v3767 = vadd.f32 %v3713, %v3743
  %v3768 = vadd.f32 %v3714, %v3743
  %v3769 = vmax.f32 %v3745, 0.0
  %v3770 = vmax.f32 %v3746, 0.0
  %v3771 = vmax.f32 %v3747, 0.0
  %v3772 = vmax.f32 %v3748, 0.0
  %v3773 = vmax.f32 %v3749, 0.0
  %v3774 = vmax.f32 %v3750, 0.0
  %v3775 = vmax.f32 %v3751, 0.0
  %v3776 = vmax.f32 %v3752, 0.0
  %v3777 = vmax.f32 %v3753, 0.0
  %v3778 = vmax.f32 %v3754, 0.0
  %v3779 = vmax.f32 %v3755, 0.0
  %v3780 = vmax.f32 %v3756, 0.0
  %v3781 = vmax.f32 %v3757, 0.0
  %v3782 = vmax.f32 %v3758, 0.0
  %v3783 = vmax.f32 %v3759, 0.0
  %v3784 = vmax.f32 %v3760, 0.0
  %v3785 = vmax.f32 %v3761, 0.0
  %v3786 = vmax.f32 %v3762, 0.0
  %v3787 = vmax.f32 %v3763, 0.0
  %v3788 = vmax.f32 %v3764, 0.0
  %v3789 = vmax.f32 %v3765, 0.0
  %v3790 = vmax.f32 %v3766, 0.0
  %v3791 = vmax.f32 %v3767, 0.0
  %v3792 = vmax.f32 %v3768, 0.0
  %v3793 = vmin.f32 %v3769, 6.0
  %v3794 = vmin.f32 %v3770, 6.0
  %v3795 = vmin.f32 %v3771, 6.0
  %v3796 = vmin.f32 %v3772, 6.0
  %v3797 = vmin.f32 %v3773, 6.0
  %v3798 = vmin.f32 %v3774, 6.0
  %v3799 = vmin.f32 %v3775, 6.0
  %v3800 = vmin.f32 %v3776, 6.0
  %v3801 = vmin.f32 %v3777, 6.0
  %v3802 = vmin.f32 %v3778, 6.0
  %v3803 = vmin.f32 %v3779, 6.0
  %v3804 = vmin.f32 %v3780, 6.0
  %v3805 = vmin.f32 %v3781, 6.0
  %v3806 = vmin.f32 %v3782, 6.0
  %v3807 = vmin.f32 %v3783, 6.0
  %v3808 = vmin.f32 %v3784, 6.0
  %v3809 = vmin.f32 %v3785, 6.0
  %v3810 = vmin.f32 %v3786, 6.0
  %v3811 = vmin.f32 %v3787, 6.0
  %v3812 = vmin.f32 %v3788, 6.0
  %v3813 = vmin.f32 %v3789, 6.0
  %v3814 = vmin.f32 %v3790, 6.0
  %v3815 = vmin.f32 %v3791, 6.0
  %v3816 = vmin.f32 %v3792, 6.0
  %v3817 = vld [vmem:[%s7] sm:$0xff]
  %3819 = vset.pattern.permute.xlu0 0
  %3820 = vperm.xlu0 %3819, %v2208
  %v3821 = vpop.permute.xlu0 %3820
  %vm3823 = vcmask 392192
  %v3825 = vsel %vm3823, %v3817, 0
  %3827 = vmatprep.subr.mxu0 %v3794
  %3828 = vmatpush1.msra.mxu0 %v3793
  %3829 = vmatprep.subr.mxu0 %v3798
  %3830 = vmatpush1.msra.mxu0 %v3797
  %3831 = vmatprep.subr.mxu0 %v3802
  %3832 = vmatpush1.msra.mxu0 %v3801
  %3833 = vmatprep.subr.mxu0 %v3806
  %3834 = vmatpush1.msra.mxu0 %v3805
  %3835 = vmatprep.subr.mxu0 %v3810
  %3836 = vmatpush1.msra.mxu0 %v3809
  %3837 = vmatprep.subr.mxu0 %v3814
  %3838 = vmatpush1.msra.mxu0 %v3813
  %3839 = vmatprep.subr.mxu0 0.0
  %3840 = vmatpush1.msra.mxu0 0.0
  %3841 = vmatprep.subr.mxu0 0.0
  %3842 = vmatpush1.msra.mxu0 0.0
  %3843 = vmatprep.subr.mxu0 0.0
  %3844 = vmatpush1.msra.mxu0 0.0
  %3845 = vmatprep.subr.mxu0 0.0
  %3846 = vmatpush1.msra.mxu0 0.0
  %3847 = vmatprep.subr.mxu0 0.0
  %3848 = vmatpush1.msra.mxu0 0.0
  %3849 = vmatprep.subr.mxu0 0.0
  %3850 = vmatpush1.msra.mxu0 0.0
  %3851 = vmatprep.subr.mxu0 0.0
  %3852 = vmatpush1.msra.mxu0 0.0
  %3853 = vmatprep.subr.mxu0 0.0
  %3854 = vmatpush1.msra.mxu0 0.0
  %3855 = vmatprep.subr.mxu0 0.0
  %3856 = vmatpush1.msra.mxu0 0.0
  %3857 = vmatprep.subr.mxu0 0.0
  %3858 = vmatpush1.msra.mxu0 0.0
  %3859 = vmatprep.subr.mxu0 0.0
  %3860 = vmatpush1.msra.mxu0 0.0
  %3861 = vmatprep.subr.mxu0 0.0
  %3862 = vmatpush1.msra.mxu0 0.0
  %3863 = vmatprep.subr.mxu0 0.0
  %3864 = vmatpush1.msra.mxu0 0.0
  %3865 = vmatprep.subr.mxu0 0.0
  %3866 = vmatpush1.msra.mxu0 0.0
  %3867 = vmatprep.subr.mxu0 0.0
  %3868 = vmatpush1.msra.mxu0 0.0
  %3869 = vmatprep.subr.mxu0 0.0
  %3870 = vmatpush1.msra.mxu0 0.0
  %3871 = vmatprep.subr.mxu0 0.0
  %3872 = vmatpush1.msra.mxu0 0.0
  %3873 = vmatprep.subr.mxu0 0.0
  %3874 = vmatpush1.msra.mxu0 0.0
  %3875 = vmatprep.subr.mxu0 0.0
  %3876 = vmatpush1.msra.mxu0 0.0
  %3877 = vmatprep.subr.mxu0 0.0
  %3878 = vmatpush1.msra.mxu0 0.0
  %3879 = vmatprep.subr.mxu0 0.0
  %3880 = vmatpush1.msra.mxu0 0.0
  %3881 = vmatprep.subr.mxu0 0.0
  %3882 = vmatpush1.msra.mxu0 0.0
  %3883 = vmatprep.subr.mxu0 0.0
  %3884 = vmatpush1.msra.mxu0 0.0
  %3885 = vmatprep.subr.mxu0 0.0
  %3886 = vmatpush1.msra.mxu0 0.0
  %3887 = vmatprep.subr.mxu0 0.0
  %3888 = vmatpush1.msra.mxu0 0.0
  %3889 = vmatprep.subr.mxu0 0.0
  %3890 = vmatpush1.msra.mxu0 0.0
  %3891 = vmatprep.mubr.f32.mxu0 0.0
  %3892 = vmatmul.mubr.f32.gmra.mrb[0].mxu0 %v3825
  %v3893 = vpop.f32.mrb[0].mxu0
  %v3894 = vadd.f32 %v3821, %v3893
  %v3895 = vpop.f32.mrb[0].mxu0
  %v3896 = vadd.f32 %v3821, %v3895
  %3897 = vdwg.mxu0
  %3898 = vmatprep.subr.mxu0 %v3796
  %3899 = vmatpush1.msra.mxu0 %v3795
  %3900 = vmatprep.subr.mxu0 %v3800
  %3901 = vmatpush1.msra.mxu0 %v3799
  %3902 = vmatprep.subr.mxu0 %v3804
  %3903 = vmatpush1.msra.mxu0 %v3803
  %3904 = vmatprep.subr.mxu0 %v3808
  %3905 = vmatpush1.msra.mxu0 %v3807
  %3906 = vmatprep.subr.mxu0 %v3812
  %3907 = vmatpush1.msra.mxu0 %v3811
  %3908 = vmatprep.subr.mxu0 %v3816
  %3909 = vmatpush1.msra.mxu0 %v3815
  %3910 = vmatprep.subr.mxu0 0.0
  %3911 = vmatpush1.msra.mxu0 0.0
  %3912 = vmatprep.subr.mxu0 0.0
  %3913 = vmatpush1.msra.mxu0 0.0
  %3914 = vmatprep.subr.mxu0 0.0
  %3915 = vmatpush1.msra.mxu0 0.0
  %3916 = vmatprep.subr.mxu0 0.0
  %3917 = vmatpush1.msra.mxu0 0.0
  %3918 = vmatprep.subr.mxu0 0.0
  %3919 = vmatpush1.msra.mxu0 0.0
  %3920 = vmatprep.subr.mxu0 0.0
  %3921 = vmatpush1.msra.mxu0 0.0
  %3922 = vmatprep.subr.mxu0 0.0
  %3923 = vmatpush1.msra.mxu0 0.0
  %3924 = vmatprep.subr.mxu0 0.0
  %3925 = vmatpush1.msra.mxu0 0.0
  %3926 = vmatprep.subr.mxu0 0.0
  %3927 = vmatpush1.msra.mxu0 0.0
  %3928 = vmatprep.subr.mxu0 0.0
  %3929 = vmatpush1.msra.mxu0 0.0
  %3930 = vmatprep.subr.mxu0 0.0
  %3931 = vmatpush1.msra.mxu0 0.0
  %3932 = vmatprep.subr.mxu0 0.0
  %3933 = vmatpush1.msra.mxu0 0.0
  %3934 = vmatprep.subr.mxu0 0.0
  %3935 = vmatpush1.msra.mxu0 0.0
  %3936 = vmatprep.subr.mxu0 0.0
  %3937 = vmatpush1.msra.mxu0 0.0
  %3938 = vmatprep.subr.mxu0 0.0
  %3939 = vmatpush1.msra.mxu0 0.0
  %3940 = vmatprep.subr.mxu0 0.0
  %3941 = vmatpush1.msra.mxu0 0.0
  %3942 = vmatprep.subr.mxu0 0.0
  %3943 = vmatpush1.msra.mxu0 0.0
  %3944 = vmatprep.subr.mxu0 0.0
  %3945 = vmatpush1.msra.mxu0 0.0
  %3946 = vmatprep.subr.mxu0 0.0
  %3947 = vmatpush1.msra.mxu0 0.0
  %3948 = vmatprep.subr.mxu0 0.0
  %3949 = vmatpush1.msra.mxu0 0.0
  %3950 = vmatprep.subr.mxu0 0.0
  %3951 = vmatpush1.msra.mxu0 0.0
  %3952 = vmatprep.subr.mxu0 0.0
  %3953 = vmatpush1.msra.mxu0 0.0
  %3954 = vmatprep.subr.mxu0 0.0
  %3955 = vmatpush1.msra.mxu0 0.0
  %3956 = vmatprep.subr.mxu0 0.0
  %3957 = vmatpush1.msra.mxu0 0.0
  %3958 = vmatprep.subr.mxu0 0.0
  %3959 = vmatpush1.msra.mxu0 0.0
  %3960 = vmatprep.subr.mxu0 0.0
  %3961 = vmatpush1.msra.mxu0 0.0
  %3962 = vmatprep.mubr.f32.mxu0 0.0
  %3963 = vmatmul.mubr.f32.gmra.mrb[0].mxu0 %v3825
  %v3964 = vpop.f32.mrb[0].mxu0
  %v3965 = vadd.f32 %v3821, %v3964
  %v3966 = vpop.f32.mrb[0].mxu0
  %v3967 = vadd.f32 %v3821, %v3966
  %3968 = vdwg.mxu0
  %v3969 = vadd.f32 %v3894, %v1500
  %v3970 = vadd.f32 %v3896, %v1501
  %v3971 = vadd.f32 %v3965, %v1502
  %v3972 = vadd.f32 %v3967, %v1503
  %3973 = vst [vmem:[%s9] sm:$0xff] %v3969
  %3974 = vst [vmem:[%s9 + $0x8] sm:$0xff] %v3970
  %3975 = vst [vmem:[%s9 + $0x10] sm:$0xff] %v3971
  %3976 = vst [vmem:[%s9 + $0x18] sm:$0xff] %v3972
  // Predicated region
  $region38: #{double_conv.1} parent=0 // pred_check
    _
  $region39: #{double_conv.1} parent=0 // pred_check_branch
    %3978 = sbr.rel (0) target = $region41
  $region40: #{double_conv.1} parent=0 // pred_region
    _
  $region41: #{double_conv.1} parent=0 // pred_fallthru
    _
  // Predicated region
  $region42: #{double_conv.1} parent=0 // pred_check
    _
  $region43: #{double_conv.1} parent=0 // pred_check_branch
    %3980 = sbr.rel (0) target = $region45
  $region44: #{double_conv.1} parent=0 // pred_region
    _
  $region45: #{double_conv.1} parent=0 // pred_fallthru
    _

</llo_original>
